<compile_context>
chip_gen: v7x
topology: tpu7x:2x2x1
jax: 0.10.0
libtpu: 0.0.40
codegen_flags: <defaults>
</compile_context>

<pallas_src>
import functools

import jax
import jax.numpy as jnp
import numpy as np
from jax import lax
from jax.experimental import pallas as pl
from jax.experimental.pallas import tpu as pltpu

INPUT_CH = 3
CONV_CH = 4
BLOCK_DEPTH = 4
UPSCALE = 2
OUT12 = INPUT_CH * UPSCALE * UPSCALE   # 12 conv_last channels


# --------------------------------------------------------------------------
# Pallas kernel: whole forward pass for ONE batch element.
#
# Layout: every activation is a 2-D slab (channels, flat padded pixels):
#   sublanes = channels (3 / 4 / 8 / 12), lanes = Q = (H+2)*(W+2) flat pixels
#   (lane-dense even for small images: Q >= 128 already at 16x16).
# A 3x3 conv tap is a lane-offset slice of the slab followed by a tiny
# (C_out, C_in) @ (C_in, Q) matmul with bf16 operands and f32 accumulation.
# Padded-grid border pixels ("ring") are zeroed with a mask so they provide the
# zero padding of the next conv; their own outputs are garbage and are cropped
# away in the JAX glue.  The slab carries an extra zero margin of M = W+3 lanes
# on each side so all tap slices stay in bounds.
# --------------------------------------------------------------------------
def _anime4k_kernel(H, W,
                    xe_ref,    # (1, 3, Q + 2M)  edge-padded input, zero margins (f32)
                    mask_ref,  # (1, Q)          1 at interior pixels, 0 on ring (f32)
                    w0_ref,    # (9, 4, 8)       conv_0 taps (in-cols 3:8 zero)   bf16
                    b0_ref,    # (4, 1)          conv_0 bias                      f32
                    wh_ref,    # (3, 9, 4, 8)    hidden conv taps (CReLU fused)   bf16
                    bh_ref,    # (3, 4, 1)       hidden biases                    f32
                    wl_ref,    # (4, 12, 8)      conv_last per depth, rows sp*3+c bf16
                    bl_ref,    # (12, 1)         conv_last bias,      rows sp*3+c f32
                    o_ref,     # (1, 12, Q)      per-subpixel output, rows sp*3+c f32
                    zin_ref,   # scratch (8, Q + 2M) bf16 : masked activations + margins
                    acc_ref):  # scratch (12, Q)     f32  : conv_last accumulator
    f32, bf16 = jnp.float32, jnp.bfloat16
    S = W + 2
    Q = (H + 2) * S
    M = S + 1                                   # zero margin on each side

    # Fresh zero slab every grid step (margins + unused rows must be exact zeros;
    # no reliance on cross-iteration scratch state -> safe under megacore split).
    zin_ref[...] = jnp.zeros_like(zin_ref)

    mask = mask_ref[...]                        # (1, Q)

    xe_cache = {}

    def xe_tap(di, dj):                         # (3, Q) f32, loaded once per offset
        if (di, dj) not in xe_cache:
            off = M + di * S + dj
            xe_cache[(di, dj)] = xe_ref[0, :, off:off + Q]
        return xe_cache[(di, dj)]

    # ---- conv_0 input: zero-padded image == edge-padded image * mask --------
    zin_ref[0:INPUT_CH, M:M + Q] = (xe_tap(0, 0) * mask).astype(bf16)

    def conv3x3(w_tap, bias):                   # -> (4, Q) f32
        y = jnp.zeros((CONV_CH, Q), f32)
        for t in range(9):
            dh, dw = divmod(t, 3)
            off = dh * S + dw
            y = y + jnp.dot(w_tap(t), zin_ref[:, off:off + Q],
                            preferred_element_type=f32)
        return y + bias

    def crelu_masked(y):                        # -> (8, Q) bf16, CReLU fused + masked
        z = jnp.concatenate([jnp.maximum(y, 0.0), jnp.maximum(-y, 0.0)], axis=0)
        return (z * mask).astype(bf16)

    # ---- conv_0 + CReLU, conv_last depth-0 contribution ----------------------
    zmb = crelu_masked(conv3x3(lambda t: w0_ref[t], b0_ref[...]))
    acc_ref[...] = jnp.broadcast_to(bl_ref[...], (OUT12, Q))
    acc_ref[...] += jnp.dot(wl_ref[0], zmb, preferred_element_type=f32)

    # ---- hidden 3x3 convs (pos/neg branches contracted together, K = 8) ------
    for j in range(BLOCK_DEPTH - 1):
        zin_ref[:, M:M + Q] = zmb
        zmb = crelu_masked(conv3x3(lambda t, j=j: wh_ref[j, t], bh_ref[j]))
        acc_ref[...] += jnp.dot(wl_ref[j + 1], zmb, preferred_element_type=f32)

    # ---- bilinear x2 base (align_corners=False) + PixelShuffle add -----------
    bases = []
    for i in range(2):
        rw = (0.25, 0.75) if i == 0 else (0.75, 0.25)
        for jj in range(2):
            cw = (0.25, 0.75) if jj == 0 else (0.75, 0.25)
            base = jnp.zeros((INPUT_CH, Q), f32)
            for a in range(2):
                for b in range(2):
                    base = base + (rw[a] * cw[b]) * xe_tap(i + a - 1, jj + b - 1)
            bases.append(base)
    # single lane-dense store: rows ordered sp*3 + c, matching acc / wl / bl
    o_ref[0, :, :] = jnp.concatenate(bases, axis=0) + acc_ref[...]


# --------------------------------------------------------------------------
# Parameter initialization (deterministic, PyTorch OIHW conv shapes)
# --------------------------------------------------------------------------
def init_params(key):
    ks = jax.random.split(key, 16)
    p = {}
    p["w0"] = 0.1 * jax.random.normal(ks[0], (CONV_CH, INPUT_CH, 3, 3), jnp.float32)
    p["b0"] = 0.1 * jax.random.normal(ks[1], (CONV_CH,), jnp.float32)
    wb, bb = [], []
    for i in range(BLOCK_DEPTH - 1):
        wb.append(0.1 * jax.random.normal(ks[2 + 2 * i],
                                          (CONV_CH, 2 * CONV_CH, 3, 3), jnp.float32))
        bb.append(0.1 * jax.random.normal(ks[3 + 2 * i], (CONV_CH,), jnp.float32))
    p["wb"] = jnp.stack(wb)
    p["bb"] = jnp.stack(bb)
    p["wl"] = 0.1 * jax.random.normal(
        ks[10], (OUT12, BLOCK_DEPTH * 2 * CONV_CH, 1, 1), jnp.float32)
    p["bl"] = 0.1 * jax.random.normal(ks[11], (OUT12,), jnp.float32)
    return p


# --------------------------------------------------------------------------
# Pack PyTorch-style (OIHW) weights into tiny per-tap matmul operands.
# Image-size independent and O(kB); call ONCE and reuse across forward calls.
# --------------------------------------------------------------------------
def pack_params(p):
    bf16 = jnp.bfloat16
    # conv_0: (4, 3, 3, 3) -> (9, 4, 3) -> zero-pad input channels to 8
    w0 = jnp.transpose(p["w0"], (2, 3, 0, 1)).reshape(9, CONV_CH, INPUT_CH)
    w0 = jnp.pad(w0, ((0, 0), (0, 0), (0, 2 * CONV_CH - INPUT_CH))).astype(bf16)
    b0 = p["b0"].reshape(CONV_CH, 1).astype(jnp.float32)
    # hidden convs: (3, 4, 8, 3, 3) -> (3, 9, 4, 8); K=8 covers [relu(y); relu(-y)]
    wh = jnp.transpose(p["wb"], (0, 3, 4, 1, 2)).reshape(
        BLOCK_DEPTH - 1, 9, CONV_CH, 2 * CONV_CH).astype(bf16)
    bh = p["bb"].reshape(BLOCK_DEPTH - 1, CONV_CH, 1).astype(jnp.float32)
    # conv_last: (12, 32); reorder rows to sp*3 + c (PixelShuffle order) and
    # split input channels per depth -> (4, 12, 8)
    perm = [c * UPSCALE * UPSCALE + sp
            for sp in range(UPSCALE * UPSCALE) for c in range(INPUT_CH)]
    klast = p["wl"][:, :, 0, 0][jnp.asarray(perm)]                 # (12, 32)
    wl = jnp.transpose(klast.reshape(OUT12, BLOCK_DEPTH, 2 * CONV_CH),
                       (1, 0, 2)).astype(bf16)                     # (4, 12, 8)
    bl = p["bl"][jnp.asarray(perm)].reshape(OUT12, 1).astype(jnp.float32)
    return {"w0": w0, "b0": b0, "wh": wh, "bh": bh, "wl": wl, "bl": bl}


# --------------------------------------------------------------------------
# Forward wrapper (NCHW in, NCHW out)
# --------------------------------------------------------------------------
@jax.jit
def anime4k_forward(x, packed):
    N, C, H, W = x.shape
    assert C == INPUT_CH
    S = W + 2
    Q = (H + 2) * S
    M = S + 1

    # single edge-padded input, flattened to (C, Q) with M zero lanes of margin
    xp = jnp.pad(x.astype(jnp.float32), ((0, 0), (0, 0), (1, 1), (1, 1)),
                 mode="edge").reshape(N, INPUT_CH, Q)
    xe = jnp.pad(xp, ((0, 0), (0, 0), (M, M)))

    # interior mask over the padded grid (1 inside the image, 0 on the ring)
    mask = jnp.zeros((H + 2, W + 2), jnp.float32)
    mask = mask.at[1:H + 1, 1:W + 1].set(1.0).reshape(1, Q)

    kernel = functools.partial(_anime4k_kernel, H, W)
    grid_spec = pltpu.PrefetchScalarGridSpec(
        num_scalar_prefetch=0,
        grid=(N,),
        in_specs=[
            pl.BlockSpec((1, INPUT_CH, Q + 2 * M), lambda b: (b, 0, 0)),
            pl.BlockSpec((1, Q), lambda b: (0, 0)),
            pl.BlockSpec((9, CONV_CH, 2 * CONV_CH), lambda b: (0, 0, 0)),
            pl.BlockSpec((CONV_CH, 1), lambda b: (0, 0)),
            pl.BlockSpec((BLOCK_DEPTH - 1, 9, CONV_CH, 2 * CONV_CH),
                         lambda b: (0, 0, 0, 0)),
            pl.BlockSpec((BLOCK_DEPTH - 1, CONV_CH, 1), lambda b: (0, 0, 0)),
            pl.BlockSpec((BLOCK_DEPTH, OUT12, 2 * CONV_CH), lambda b: (0, 0, 0)),
            pl.BlockSpec((OUT12, 1), lambda b: (0, 0)),
        ],
        out_specs=pl.BlockSpec((1, OUT12, Q), lambda b: (b, 0, 0)),
        scratch_shapes=[
            pltpu.VMEM((2 * CONV_CH, Q + 2 * M), jnp.bfloat16),   # activation slab
            pltpu.VMEM((OUT12, Q), jnp.float32),                  # conv_last acc
        ],
    )

    o = pl.pallas_call(
        kernel,
        out_shape=jax.ShapeDtypeStruct((N, OUT12, Q), jnp.float32),
        grid_spec=grid_spec,
        compiler_params=pltpu.CompilerParams(
            dimension_semantics=("parallel",),
            vmem_limit_bytes=48 * 1024 * 1024),
    )(xe, mask, packed["w0"], packed["b0"], packed["wh"], packed["bh"],
      packed["wl"], packed["bl"])

    # (N, sp*3+c, (H+2)*(W+2)) -> crop ring -> PixelShuffle to NCHW (pure glue)
    o = o.reshape(N, OUT12, H + 2, W + 2)[:, :, 1:H + 1, 1:W + 1]
    o = o.reshape(N, UPSCALE, UPSCALE, INPUT_CH, H, W)
    o = jnp.transpose(o, (0, 3, 4, 1, 5, 2)).reshape(
        N, INPUT_CH, UPSCALE * H, UPSCALE * W)
    return o


# --------------------------------------------------------------------------
# Pure-JAX reference (mirrors the PyTorch forward exactly, f32 precision)
# --------------------------------------------------------------------------
def _bilinear_up2_ref(x):
    N, C, H, W = x.shape

    def idx(in_size):
        o = jnp.arange(UPSCALE * in_size, dtype=jnp.float32)
        src = (o + 0.5) / UPSCALE - 0.5
        i0 = jnp.floor(src)
        frac = src - i0
        lo = jnp.clip(i0, 0, in_size - 1).astype(jnp.int32)
        hi = jnp.clip(i0 + 1, 0, in_size - 1).astype(jnp.int32)
        return lo, hi, frac

    r0, r1, fr = idx(H)
    c0, c1, fc = idx(W)
    fr = fr[None, None, :, None]
    fc = fc[None, None, None, :]
    x00 = x[:, :, r0, :][:, :, :, c0]
    x01 = x[:, :, r0, :][:, :, :, c1]
    x10 = x[:, :, r1, :][:, :, :, c0]
    x11 = x[:, :, r1, :][:, :, :, c1]
    return (x00 * (1 - fr) * (1 - fc) + x01 * (1 - fr) * fc
            + x10 * fr * (1 - fc) + x11 * fr * fc)


def reference_forward(x, p):
    dn = ("NCHW", "OIHW", "NCHW")

    def conv(v, w, b, pad):
        o = lax.conv_general_dilated(v, w, (1, 1), ((pad, pad), (pad, pad)),
                                     dimension_numbers=dn,
                                     precision=lax.Precision.HIGHEST)
        return o + b[None, :, None, None]

    def crelu(v):
        return jnp.concatenate([jnp.maximum(v, 0.0), jnp.maximum(-v, 0.0)], axis=1)

    feats = []
    out = crelu(conv(x, p["w0"], p["b0"], 1))
    feats.append(out)
    for j in range(BLOCK_DEPTH - 1):
        out = crelu(conv(out, p["wb"][j], p["bb"][j], 1))
        feats.append(out)
    z = conv(jnp.concatenate(feats, axis=1), p["wl"], p["bl"], 0)   # (N,12,H,W)

    N, C12, H, W = z.shape
    r = UPSCALE
    z = z.reshape(N, C12 // (r * r), r, r, H, W)
    z = jnp.transpose(z, (0, 1, 4, 2, 5, 3)).reshape(N, C12 // (r * r), H * r, W * r)
    return _bilinear_up2_ref(x) + z


# --------------------------------------------------------------------------
if __name__ == "__main__":
    key = jax.random.PRNGKey(0)
    kp, kx = jax.random.split(key)
    params = init_params(kp)
    packed = pack_params(params)            # packed once, reused across calls
    x = jax.random.normal(kx, (2, INPUT_CH, 16, 16), jnp.float32)

    out = jax.block_until_ready(anime4k_forward(x, packed))
    assert out.shape == (2, INPUT_CH, 2 * 16, 2 * 16)

    ref = reference_forward(x, params)
    # bf16 MXU operands (f32 accumulation) vs. f32 reference -> loosened tolerance
    np.testing.assert_allclose(np.asarray(out), np.asarray(ref),
                               rtol=5e-2, atol=5e-2)
    print("KERNEL_OK")
</pallas_src>

<mosaic_0001>
module attributes {stable_mosaic.version = 11 : i64} {
  func.func @_anime4k_kernel(%arg0: i32, %arg1: memref<1x3x362xf32, #tpu.memory_space<vmem>>, %arg2: memref<1x324xf32, #tpu.memory_space<vmem>>, %arg3: memref<9x4x8xbf16, #tpu.memory_space<vmem>>, %arg4: memref<4x1xf32, #tpu.memory_space<vmem>>, %arg5: memref<3x9x4x8xbf16, #tpu.memory_space<vmem>>, %arg6: memref<3x4x1xf32, #tpu.memory_space<vmem>>, %arg7: memref<4x12x8xbf16, #tpu.memory_space<vmem>>, %arg8: memref<12x1xf32, #tpu.memory_space<vmem>>, %arg9: memref<1x12x324xf32, #tpu.memory_space<vmem>>, %arg10: memref<8x362xbf16, #tpu.memory_space<vmem>>, %arg11: memref<12x324xf32, #tpu.memory_space<vmem>>) attributes {dimension_semantics = [#tpu.dimension_semantics<parallel>], iteration_bounds = array<i64: 2>, scalar_prefetch = 0 : i64, scratch_operands = 2 : i64, tpu.core_type = #tpu.core_type<tc>, window_params = [{transform_indices = @transform_0, window_bounds = array<i64: 1, 3, 362>}, {pipeline_mode = #tpu.pipeline_mode<synchronous>, transform_indices = @transform_1, window_bounds = array<i64: 1, 324>}, {pipeline_mode = #tpu.pipeline_mode<synchronous>, transform_indices = @transform_2, window_bounds = array<i64: 9, 4, 8>}, {pipeline_mode = #tpu.pipeline_mode<synchronous>, transform_indices = @transform_3, window_bounds = array<i64: 4, 1>}, {pipeline_mode = #tpu.pipeline_mode<synchronous>, transform_indices = @transform_4, window_bounds = array<i64: 3, 9, 4, 8>}, {pipeline_mode = #tpu.pipeline_mode<synchronous>, transform_indices = @transform_5, window_bounds = array<i64: 3, 4, 1>}, {pipeline_mode = #tpu.pipeline_mode<synchronous>, transform_indices = @transform_6, window_bounds = array<i64: 4, 12, 8>}, {pipeline_mode = #tpu.pipeline_mode<synchronous>, transform_indices = @transform_7, window_bounds = array<i64: 12, 1>}, {transform_indices = @transform_8, window_bounds = array<i64: 1, 12, 324>}]} {
    %cst = arith.constant 0.000000e+00 : bf16
    %0 = vector.broadcast %cst : bf16 to vector<8x362xbf16>
    %c0 = arith.constant 0 : index
    %c0_0 = arith.constant 0 : index
    %1 = vector.load %arg10[%c0, %c0_0] : memref<8x362xbf16, #tpu.memory_space<vmem>>, vector<8x362xbf16>
    tpu.vector_store %arg10[%c0, %c0_0], %0 {strides = array<i32>} : memref<8x362xbf16, #tpu.memory_space<vmem>>, vector<8x362xbf16>,
    %c0_1 = arith.constant 0 : index
    %c0_2 = arith.constant 0 : index
    %2 = vector.load %arg2[%c0_1, %c0_2] : memref<1x324xf32, #tpu.memory_space<vmem>>, vector<1x324xf32>
    %c0_3 = arith.constant 0 : index
    %c0_4 = arith.constant 0 : index
    %c19 = arith.constant 19 : index
    %3 = vector.load %arg1[%c0_3, %c0_4, %c19] : memref<1x3x362xf32, #tpu.memory_space<vmem>>, vector<1x3x324xf32>
    %4 = vector.shape_cast %3 : vector<1x3x324xf32> to vector<3x324xf32>
    %5 = vector.broadcast %2 : vector<1x324xf32> to vector<3x324xf32>
    %6 = arith.mulf %4, %5 : vector<3x324xf32>
    %7 = arith.truncf %6 : vector<3x324xf32> to vector<3x324xbf16>
    %c0_5 = arith.constant 0 : index
    %c19_6 = arith.constant 19 : index
    %8 = vector.load %arg10[%c0_5, %c19_6] : memref<8x362xbf16, #tpu.memory_space<vmem>>, vector<3x324xbf16>
    tpu.vector_store %arg10[%c0_5, %c19_6], %7 {strides = array<i32>} : memref<8x362xbf16, #tpu.memory_space<vmem>>, vector<3x324xbf16>,
    %c0_7 = arith.constant 0 : index
    %c0_8 = arith.constant 0 : index
    %9 = vector.load %arg4[%c0_7, %c0_8] : memref<4x1xf32, #tpu.memory_space<vmem>>, vector<4x1xf32>
    %cst_9 = arith.constant 0.000000e+00 : f32
    %10 = vector.broadcast %cst_9 : f32 to vector<4x324xf32>
    %c0_10 = arith.constant 0 : index
    %c0_11 = arith.constant 0 : index
    %c0_12 = arith.constant 0 : index
    %11 = vector.load %arg3[%c0_10, %c0_11, %c0_12] : memref<9x4x8xbf16, #tpu.memory_space<vmem>>, vector<1x4x8xbf16>
    %12 = vector.shape_cast %11 : vector<1x4x8xbf16> to vector<4x8xbf16>
    %c0_13 = arith.constant 0 : index
    %c0_14 = arith.constant 0 : index
    %13 = vector.load %arg10[%c0_13, %c0_14] : memref<8x362xbf16, #tpu.memory_space<vmem>>, vector<8x324xbf16>
    %cst_15 = arith.constant dense<0.000000e+00> : vector<4x324xf32>
    %14 = tpu.matmul %12, %13, %cst_15 {dimension_numbers = #tpu.dot_dimension_numbers<[1], [0], [0], [1], [0, 0, 1, 1], [], []>} : vector<4x8xbf16>, vector<8x324xbf16>, vector<4x324xf32> -> vector<4x324xf32>
    %15 = arith.addf %10, %14 : vector<4x324xf32>
    %c1 = arith.constant 1 : index
    %c0_16 = arith.constant 0 : index
    %c0_17 = arith.constant 0 : index
    %16 = vector.load %arg3[%c1, %c0_16, %c0_17] : memref<9x4x8xbf16, #tpu.memory_space<vmem>>, vector<1x4x8xbf16>
    %17 = vector.shape_cast %16 : vector<1x4x8xbf16> to vector<4x8xbf16>
    %c0_18 = arith.constant 0 : index
    %c1_19 = arith.constant 1 : index
    %18 = vector.load %arg10[%c0_18, %c1_19] : memref<8x362xbf16, #tpu.memory_space<vmem>>, vector<8x324xbf16>
    %cst_20 = arith.constant dense<0.000000e+00> : vector<4x324xf32>
    %19 = tpu.matmul %17, %18, %cst_20 {dimension_numbers = #tpu.dot_dimension_numbers<[1], [0], [0], [1], [0, 0, 1, 1], [], []>} : vector<4x8xbf16>, vector<8x324xbf16>, vector<4x324xf32> -> vector<4x324xf32>
    %20 = arith.addf %15, %19 : vector<4x324xf32>
    %c2 = arith.constant 2 : index
    %c0_21 = arith.constant 0 : index
    %c0_22 = arith.constant 0 : index
    %21 = vector.load %arg3[%c2, %c0_21, %c0_22] : memref<9x4x8xbf16, #tpu.memory_space<vmem>>, vector<1x4x8xbf16>
    %22 = vector.shape_cast %21 : vector<1x4x8xbf16> to vector<4x8xbf16>
    %c0_23 = arith.constant 0 : index
    %c2_24 = arith.constant 2 : index
    %23 = vector.load %arg10[%c0_23, %c2_24] : memref<8x362xbf16, #tpu.memory_space<vmem>>, vector<8x324xbf16>
    %cst_25 = arith.constant dense<0.000000e+00> : vector<4x324xf32>
    %24 = tpu.matmul %22, %23, %cst_25 {dimension_numbers = #tpu.dot_dimension_numbers<[1], [0], [0], [1], [0, 0, 1, 1], [], []>} : vector<4x8xbf16>, vector<8x324xbf16>, vector<4x324xf32> -> vector<4x324xf32>
    %25 = arith.addf %20, %24 : vector<4x324xf32>
    %c3 = arith.constant 3 : index
    %c0_26 = arith.constant 0 : index
    %c0_27 = arith.constant 0 : index
    %26 = vector.load %arg3[%c3, %c0_26, %c0_27] : memref<9x4x8xbf16, #tpu.memory_space<vmem>>, vector<1x4x8xbf16>
    %27 = vector.shape_cast %26 : vector<1x4x8xbf16> to vector<4x8xbf16>
    %c0_28 = arith.constant 0 : index
    %c18 = arith.constant 18 : index
    %28 = vector.load %arg10[%c0_28, %c18] : memref<8x362xbf16, #tpu.memory_space<vmem>>, vector<8x324xbf16>
    %cst_29 = arith.constant dense<0.000000e+00> : vector<4x324xf32>
    %29 = tpu.matmul %27, %28, %cst_29 {dimension_numbers = #tpu.dot_dimension_numbers<[1], [0], [0], [1], [0, 0, 1, 1], [], []>} : vector<4x8xbf16>, vector<8x324xbf16>, vector<4x324xf32> -> vector<4x324xf32>
    %30 = arith.addf %25, %29 : vector<4x324xf32>
    %c4 = arith.constant 4 : index
    %c0_30 = arith.constant 0 : index
    %c0_31 = arith.constant 0 : index
    %31 = vector.load %arg3[%c4, %c0_30, %c0_31] : memref<9x4x8xbf16, #tpu.memory_space<vmem>>, vector<1x4x8xbf16>
    %32 = vector.shape_cast %31 : vector<1x4x8xbf16> to vector<4x8xbf16>
    %c0_32 = arith.constant 0 : index
    %c19_33 = arith.constant 19 : index
    %33 = vector.load %arg10[%c0_32, %c19_33] : memref<8x362xbf16, #tpu.memory_space<vmem>>, vector<8x324xbf16>
    %cst_34 = arith.constant dense<0.000000e+00> : vector<4x324xf32>
    %34 = tpu.matmul %32, %33, %cst_34 {dimension_numbers = #tpu.dot_dimension_numbers<[1], [0], [0], [1], [0, 0, 1, 1], [], []>} : vector<4x8xbf16>, vector<8x324xbf16>, vector<4x324xf32> -> vector<4x324xf32>
    %35 = arith.addf %30, %34 : vector<4x324xf32>
    %c5 = arith.constant 5 : index
    %c0_35 = arith.constant 0 : index
    %c0_36 = arith.constant 0 : index
    %36 = vector.load %arg3[%c5, %c0_35, %c0_36] : memref<9x4x8xbf16, #tpu.memory_space<vmem>>, vector<1x4x8xbf16>
    %37 = vector.shape_cast %36 : vector<1x4x8xbf16> to vector<4x8xbf16>
    %c0_37 = arith.constant 0 : index
    %c20 = arith.constant 20 : index
    %38 = vector.load %arg10[%c0_37, %c20] : memref<8x362xbf16, #tpu.memory_space<vmem>>, vector<8x324xbf16>
    %cst_38 = arith.constant dense<0.000000e+00> : vector<4x324xf32>
    %39 = tpu.matmul %37, %38, %cst_38 {dimension_numbers = #tpu.dot_dimension_numbers<[1], [0], [0], [1], [0, 0, 1, 1], [], []>} : vector<4x8xbf16>, vector<8x324xbf16>, vector<4x324xf32> -> vector<4x324xf32>
    %40 = arith.addf %35, %39 : vector<4x324xf32>
    %c6 = arith.constant 6 : index
    %c0_39 = arith.constant 0 : index
    %c0_40 = arith.constant 0 : index
    %41 = vector.load %arg3[%c6, %c0_39, %c0_40] : memref<9x4x8xbf16, #tpu.memory_space<vmem>>, vector<1x4x8xbf16>
    %42 = vector.shape_cast %41 : vector<1x4x8xbf16> to vector<4x8xbf16>
    %c0_41 = arith.constant 0 : index
    %c36 = arith.constant 36 : index
    %43 = vector.load %arg10[%c0_41, %c36] : memref<8x362xbf16, #tpu.memory_space<vmem>>, vector<8x324xbf16>
    %cst_42 = arith.constant dense<0.000000e+00> : vector<4x324xf32>
    %44 = tpu.matmul %42, %43, %cst_42 {dimension_numbers = #tpu.dot_dimension_numbers<[1], [0], [0], [1], [0, 0, 1, 1], [], []>} : vector<4x8xbf16>, vector<8x324xbf16>, vector<4x324xf32> -> vector<4x324xf32>
    %45 = arith.addf %40, %44 : vector<4x324xf32>
    %c7 = arith.constant 7 : index
    %c0_43 = arith.constant 0 : index
    %c0_44 = arith.constant 0 : index
    %46 = vector.load %arg3[%c7, %c0_43, %c0_44] : memref<9x4x8xbf16, #tpu.memory_space<vmem>>, vector<1x4x8xbf16>
    %47 = vector.shape_cast %46 : vector<1x4x8xbf16> to vector<4x8xbf16>
    %c0_45 = arith.constant 0 : index
    %c37 = arith.constant 37 : index
    %48 = vector.load %arg10[%c0_45, %c37] : memref<8x362xbf16, #tpu.memory_space<vmem>>, vector<8x324xbf16>
    %cst_46 = arith.constant dense<0.000000e+00> : vector<4x324xf32>
    %49 = tpu.matmul %47, %48, %cst_46 {dimension_numbers = #tpu.dot_dimension_numbers<[1], [0], [0], [1], [0, 0, 1, 1], [], []>} : vector<4x8xbf16>, vector<8x324xbf16>, vector<4x324xf32> -> vector<4x324xf32>
    %50 = arith.addf %45, %49 : vector<4x324xf32>
    %c8 = arith.constant 8 : index
    %c0_47 = arith.constant 0 : index
    %c0_48 = arith.constant 0 : index
    %51 = vector.load %arg3[%c8, %c0_47, %c0_48] : memref<9x4x8xbf16, #tpu.memory_space<vmem>>, vector<1x4x8xbf16>
    %52 = vector.shape_cast %51 : vector<1x4x8xbf16> to vector<4x8xbf16>
    %c0_49 = arith.constant 0 : index
    %c38 = arith.constant 38 : index
    %53 = vector.load %arg10[%c0_49, %c38] : memref<8x362xbf16, #tpu.memory_space<vmem>>, vector<8x324xbf16>
    %cst_50 = arith.constant dense<0.000000e+00> : vector<4x324xf32>
    %54 = tpu.matmul %52, %53, %cst_50 {dimension_numbers = #tpu.dot_dimension_numbers<[1], [0], [0], [1], [0, 0, 1, 1], [], []>} : vector<4x8xbf16>, vector<8x324xbf16>, vector<4x324xf32> -> vector<4x324xf32>
    %55 = arith.addf %50, %54 : vector<4x324xf32>
    %56 = vector.broadcast %9 : vector<4x1xf32> to vector<4x324xf32>
    %57 = arith.addf %55, %56 : vector<4x324xf32>
    %cst_51 = arith.constant 0.000000e+00 : f32
    %58 = vector.broadcast %cst_51 : f32 to vector<4x324xf32>
    %59 = arith.maximumf %57, %58 : vector<4x324xf32>
    %cst_52 = arith.constant 0.000000e+00 : f32
    %60 = vector.broadcast %cst_52 : f32 to vector<4x324xf32>
    %61 = arith.subf %60, %57 : vector<4x324xf32>
    %cst_53 = arith.constant 0.000000e+00 : f32
    %62 = vector.broadcast %cst_53 : f32 to vector<4x324xf32>
    %63 = arith.maximumf %61, %62 : vector<4x324xf32>
    %64 = tpu.concatenate %59, %63 in 0 : vector<4x324xf32>, vector<4x324xf32> -> vector<8x324xf32>
    %65 = vector.broadcast %2 : vector<1x324xf32> to vector<8x324xf32>
    %66 = arith.mulf %64, %65 : vector<8x324xf32>
    %67 = arith.truncf %66 : vector<8x324xf32> to vector<8x324xbf16>
    %c0_54 = arith.constant 0 : index
    %c0_55 = arith.constant 0 : index
    %68 = vector.load %arg8[%c0_54, %c0_55] : memref<12x1xf32, #tpu.memory_space<vmem>>, vector<12x1xf32>
    %69 = vector.shape_cast %68 : vector<12x1xf32> to vector<12x1xf32>
    %70 = vector.broadcast %69 : vector<12x1xf32> to vector<12x324xf32>
    %c0_56 = arith.constant 0 : index
    %c0_57 = arith.constant 0 : index
    %71 = vector.load %arg11[%c0_56, %c0_57] : memref<12x324xf32, #tpu.memory_space<vmem>>, vector<12x324xf32>
    tpu.vector_store %arg11[%c0_56, %c0_57], %70 {strides = array<i32>} : memref<12x324xf32, #tpu.memory_space<vmem>>, vector<12x324xf32>,
    %c0_58 = arith.constant 0 : index
    %c0_59 = arith.constant 0 : index
    %72 = vector.load %arg11[%c0_58, %c0_59] : memref<12x324xf32, #tpu.memory_space<vmem>>, vector<12x324xf32>
    %c0_60 = arith.constant 0 : index
    %c0_61 = arith.constant 0 : index
    %c0_62 = arith.constant 0 : index
    %73 = vector.load %arg7[%c0_60, %c0_61, %c0_62] : memref<4x12x8xbf16, #tpu.memory_space<vmem>>, vector<1x12x8xbf16>
    %74 = vector.shape_cast %73 : vector<1x12x8xbf16> to vector<12x8xbf16>
    %cst_63 = arith.constant dense<0.000000e+00> : vector<12x324xf32>
    %75 = tpu.matmul %74, %67, %cst_63 {dimension_numbers = #tpu.dot_dimension_numbers<[1], [0], [0], [1], [0, 0, 1, 1], [], []>} : vector<12x8xbf16>, vector<8x324xbf16>, vector<12x324xf32> -> vector<12x324xf32>
    %76 = arith.addf %72, %75 : vector<12x324xf32>
    %c0_64 = arith.constant 0 : index
    %c0_65 = arith.constant 0 : index
    %77 = vector.load %arg11[%c0_64, %c0_65] : memref<12x324xf32, #tpu.memory_space<vmem>>, vector<12x324xf32>
    tpu.vector_store %arg11[%c0_64, %c0_65], %76 {strides = array<i32>} : memref<12x324xf32, #tpu.memory_space<vmem>>, vector<12x324xf32>,
    %c0_66 = arith.constant 0 : index
    %c19_67 = arith.constant 19 : index
    %78 = vector.load %arg10[%c0_66, %c19_67] : memref<8x362xbf16, #tpu.memory_space<vmem>>, vector<8x324xbf16>
    tpu.vector_store %arg10[%c0_66, %c19_67], %67 {strides = array<i32>} : memref<8x362xbf16, #tpu.memory_space<vmem>>, vector<8x324xbf16>,
    %c0_68 = arith.constant 0 : index
    %c0_69 = arith.constant 0 : index
    %c0_70 = arith.constant 0 : index
    %79 = vector.load %arg6[%c0_68, %c0_69, %c0_70] : memref<3x4x1xf32, #tpu.memory_space<vmem>>, vector<1x4x1xf32>
    %80 = vector.shape_cast %79 : vector<1x4x1xf32> to vector<4x1xf32>
    %cst_71 = arith.constant 0.000000e+00 : f32
    %81 = vector.broadcast %cst_71 : f32 to vector<4x324xf32>
    %c0_72 = arith.constant 0 : index
    %c0_73 = arith.constant 0 : index
    %c0_74 = arith.constant 0 : index
    %c0_75 = arith.constant 0 : index
    %82 = vector.load %arg5[%c0_72, %c0_73, %c0_74, %c0_75] : memref<3x9x4x8xbf16, #tpu.memory_space<vmem>>, vector<1x1x4x8xbf16>
    %83 = vector.shape_cast %82 : vector<1x1x4x8xbf16> to vector<4x8xbf16>
    %c0_76 = arith.constant 0 : index
    %c0_77 = arith.constant 0 : index
    %84 = vector.load %arg10[%c0_76, %c0_77] : memref<8x362xbf16, #tpu.memory_space<vmem>>, vector<8x324xbf16>
    %cst_78 = arith.constant dense<0.000000e+00> : vector<4x324xf32>
    %85 = tpu.matmul %83, %84, %cst_78 {dimension_numbers = #tpu.dot_dimension_numbers<[1], [0], [0], [1], [0, 0, 1, 1], [], []>} : vector<4x8xbf16>, vector<8x324xbf16>, vector<4x324xf32> -> vector<4x324xf32>
    %86 = arith.addf %81, %85 : vector<4x324xf32>
    %c0_79 = arith.constant 0 : index
    %c1_80 = arith.constant 1 : index
    %c0_81 = arith.constant 0 : index
    %c0_82 = arith.constant 0 : index
    %87 = vector.load %arg5[%c0_79, %c1_80, %c0_81, %c0_82] : memref<3x9x4x8xbf16, #tpu.memory_space<vmem>>, vector<1x1x4x8xbf16>
    %88 = vector.shape_cast %87 : vector<1x1x4x8xbf16> to vector<4x8xbf16>
    %c0_83 = arith.constant 0 : index
    %c1_84 = arith.constant 1 : index
    %89 = vector.load %arg10[%c0_83, %c1_84] : memref<8x362xbf16, #tpu.memory_space<vmem>>, vector<8x324xbf16>
    %cst_85 = arith.constant dense<0.000000e+00> : vector<4x324xf32>
    %90 = tpu.matmul %88, %89, %cst_85 {dimension_numbers = #tpu.dot_dimension_numbers<[1], [0], [0], [1], [0, 0, 1, 1], [], []>} : vector<4x8xbf16>, vector<8x324xbf16>, vector<4x324xf32> -> vector<4x324xf32>
    %91 = arith.addf %86, %90 : vector<4x324xf32>
    %c0_86 = arith.constant 0 : index
    %c2_87 = arith.constant 2 : index
    %c0_88 = arith.constant 0 : index
    %c0_89 = arith.constant 0 : index
    %92 = vector.load %arg5[%c0_86, %c2_87, %c0_88, %c0_89] : memref<3x9x4x8xbf16, #tpu.memory_space<vmem>>, vector<1x1x4x8xbf16>
    %93 = vector.shape_cast %92 : vector<1x1x4x8xbf16> to vector<4x8xbf16>
    %c0_90 = arith.constant 0 : index
    %c2_91 = arith.constant 2 : index
    %94 = vector.load %arg10[%c0_90, %c2_91] : memref<8x362xbf16, #tpu.memory_space<vmem>>, vector<8x324xbf16>
    %cst_92 = arith.constant dense<0.000000e+00> : vector<4x324xf32>
    %95 = tpu.matmul %93, %94, %cst_92 {dimension_numbers = #tpu.dot_dimension_numbers<[1], [0], [0], [1], [0, 0, 1, 1], [], []>} : vector<4x8xbf16>, vector<8x324xbf16>, vector<4x324xf32> -> vector<4x324xf32>
    %96 = arith.addf %91, %95 : vector<4x324xf32>
    %c0_93 = arith.constant 0 : index
    %c3_94 = arith.constant 3 : index
    %c0_95 = arith.constant 0 : index
    %c0_96 = arith.constant 0 : index
    %97 = vector.load %arg5[%c0_93, %c3_94, %c0_95, %c0_96] : memref<3x9x4x8xbf16, #tpu.memory_space<vmem>>, vector<1x1x4x8xbf16>
    %98 = vector.shape_cast %97 : vector<1x1x4x8xbf16> to vector<4x8xbf16>
    %c0_97 = arith.constant 0 : index
    %c18_98 = arith.constant 18 : index
    %99 = vector.load %arg10[%c0_97, %c18_98] : memref<8x362xbf16, #tpu.memory_space<vmem>>, vector<8x324xbf16>
    %cst_99 = arith.constant dense<0.000000e+00> : vector<4x324xf32>
    %100 = tpu.matmul %98, %99, %cst_99 {dimension_numbers = #tpu.dot_dimension_numbers<[1], [0], [0], [1], [0, 0, 1, 1], [], []>} : vector<4x8xbf16>, vector<8x324xbf16>, vector<4x324xf32> -> vector<4x324xf32>
    %101 = arith.addf %96, %100 : vector<4x324xf32>
    %c0_100 = arith.constant 0 : index
    %c4_101 = arith.constant 4 : index
    %c0_102 = arith.constant 0 : index
    %c0_103 = arith.constant 0 : index
    %102 = vector.load %arg5[%c0_100, %c4_101, %c0_102, %c0_103] : memref<3x9x4x8xbf16, #tpu.memory_space<vmem>>, vector<1x1x4x8xbf16>
    %103 = vector.shape_cast %102 : vector<1x1x4x8xbf16> to vector<4x8xbf16>
    %c0_104 = arith.constant 0 : index
    %c19_105 = arith.constant 19 : index
    %104 = vector.load %arg10[%c0_104, %c19_105] : memref<8x362xbf16, #tpu.memory_space<vmem>>, vector<8x324xbf16>
    %cst_106 = arith.constant dense<0.000000e+00> : vector<4x324xf32>
    %105 = tpu.matmul %103, %104, %cst_106 {dimension_numbers = #tpu.dot_dimension_numbers<[1], [0], [0], [1], [0, 0, 1, 1], [], []>} : vector<4x8xbf16>, vector<8x324xbf16>, vector<4x324xf32> -> vector<4x324xf32>
    %106 = arith.addf %101, %105 : vector<4x324xf32>
    %c0_107 = arith.constant 0 : index
    %c5_108 = arith.constant 5 : index
    %c0_109 = arith.constant 0 : index
    %c0_110 = arith.constant 0 : index
    %107 = vector.load %arg5[%c0_107, %c5_108, %c0_109, %c0_110] : memref<3x9x4x8xbf16, #tpu.memory_space<vmem>>, vector<1x1x4x8xbf16>
    %108 = vector.shape_cast %107 : vector<1x1x4x8xbf16> to vector<4x8xbf16>
    %c0_111 = arith.constant 0 : index
    %c20_112 = arith.constant 20 : index
    %109 = vector.load %arg10[%c0_111, %c20_112] : memref<8x362xbf16, #tpu.memory_space<vmem>>, vector<8x324xbf16>
    %cst_113 = arith.constant dense<0.000000e+00> : vector<4x324xf32>
    %110 = tpu.matmul %108, %109, %cst_113 {dimension_numbers = #tpu.dot_dimension_numbers<[1], [0], [0], [1], [0, 0, 1, 1], [], []>} : vector<4x8xbf16>, vector<8x324xbf16>, vector<4x324xf32> -> vector<4x324xf32>
    %111 = arith.addf %106, %110 : vector<4x324xf32>
    %c0_114 = arith.constant 0 : index
    %c6_115 = arith.constant 6 : index
    %c0_116 = arith.constant 0 : index
    %c0_117 = arith.constant 0 : index
    %112 = vector.load %arg5[%c0_114, %c6_115, %c0_116, %c0_117] : memref<3x9x4x8xbf16, #tpu.memory_space<vmem>>, vector<1x1x4x8xbf16>
    %113 = vector.shape_cast %112 : vector<1x1x4x8xbf16> to vector<4x8xbf16>
    %c0_118 = arith.constant 0 : index
    %c36_119 = arith.constant 36 : index
    %114 = vector.load %arg10[%c0_118, %c36_119] : memref<8x362xbf16, #tpu.memory_space<vmem>>, vector<8x324xbf16>
    %cst_120 = arith.constant dense<0.000000e+00> : vector<4x324xf32>
    %115 = tpu.matmul %113, %114, %cst_120 {dimension_numbers = #tpu.dot_dimension_numbers<[1], [0], [0], [1], [0, 0, 1, 1], [], []>} : vector<4x8xbf16>, vector<8x324xbf16>, vector<4x324xf32> -> vector<4x324xf32>
    %116 = arith.addf %111, %115 : vector<4x324xf32>
    %c0_121 = arith.constant 0 : index
    %c7_122 = arith.constant 7 : index
    %c0_123 = arith.constant 0 : index
    %c0_124 = arith.constant 0 : index
    %117 = vector.load %arg5[%c0_121, %c7_122, %c0_123, %c0_124] : memref<3x9x4x8xbf16, #tpu.memory_space<vmem>>, vector<1x1x4x8xbf16>
    %118 = vector.shape_cast %117 : vector<1x1x4x8xbf16> to vector<4x8xbf16>
    %c0_125 = arith.constant 0 : index
    %c37_126 = arith.constant 37 : index
    %119 = vector.load %arg10[%c0_125, %c37_126] : memref<8x362xbf16, #tpu.memory_space<vmem>>, vector<8x324xbf16>
    %cst_127 = arith.constant dense<0.000000e+00> : vector<4x324xf32>
    %120 = tpu.matmul %118, %119, %cst_127 {dimension_numbers = #tpu.dot_dimension_numbers<[1], [0], [0], [1], [0, 0, 1, 1], [], []>} : vector<4x8xbf16>, vector<8x324xbf16>, vector<4x324xf32> -> vector<4x324xf32>
    %121 = arith.addf %116, %120 : vector<4x324xf32>
    %c0_128 = arith.constant 0 : index
    %c8_129 = arith.constant 8 : index
    %c0_130 = arith.constant 0 : index
    %c0_131 = arith.constant 0 : index
    %122 = vector.load %arg5[%c0_128, %c8_129, %c0_130, %c0_131] : memref<3x9x4x8xbf16, #tpu.memory_space<vmem>>, vector<1x1x4x8xbf16>
    %123 = vector.shape_cast %122 : vector<1x1x4x8xbf16> to vector<4x8xbf16>
    %c0_132 = arith.constant 0 : index
    %c38_133 = arith.constant 38 : index
    %124 = vector.load %arg10[%c0_132, %c38_133] : memref<8x362xbf16, #tpu.memory_space<vmem>>, vector<8x324xbf16>
    %cst_134 = arith.constant dense<0.000000e+00> : vector<4x324xf32>
    %125 = tpu.matmul %123, %124, %cst_134 {dimension_numbers = #tpu.dot_dimension_numbers<[1], [0], [0], [1], [0, 0, 1, 1], [], []>} : vector<4x8xbf16>, vector<8x324xbf16>, vector<4x324xf32> -> vector<4x324xf32>
    %126 = arith.addf %121, %125 : vector<4x324xf32>
    %127 = vector.broadcast %80 : vector<4x1xf32> to vector<4x324xf32>
    %128 = arith.addf %126, %127 : vector<4x324xf32>
    %cst_135 = arith.constant 0.000000e+00 : f32
    %129 = vector.broadcast %cst_135 : f32 to vector<4x324xf32>
    %130 = arith.maximumf %128, %129 : vector<4x324xf32>
    %cst_136 = arith.constant 0.000000e+00 : f32
    %131 = vector.broadcast %cst_136 : f32 to vector<4x324xf32>
    %132 = arith.subf %131, %128 : vector<4x324xf32>
    %cst_137 = arith.constant 0.000000e+00 : f32
    %133 = vector.broadcast %cst_137 : f32 to vector<4x324xf32>
    %134 = arith.maximumf %132, %133 : vector<4x324xf32>
    %135 = tpu.concatenate %130, %134 in 0 : vector<4x324xf32>, vector<4x324xf32> -> vector<8x324xf32>
    %136 = vector.broadcast %2 : vector<1x324xf32> to vector<8x324xf32>
    %137 = arith.mulf %135, %136 : vector<8x324xf32>
    %138 = arith.truncf %137 : vector<8x324xf32> to vector<8x324xbf16>
    %c0_138 = arith.constant 0 : index
    %c0_139 = arith.constant 0 : index
    %139 = vector.load %arg11[%c0_138, %c0_139] : memref<12x324xf32, #tpu.memory_space<vmem>>, vector<12x324xf32>
    %c1_140 = arith.constant 1 : index
    %c0_141 = arith.constant 0 : index
    %c0_142 = arith.constant 0 : index
    %140 = vector.load %arg7[%c1_140, %c0_141, %c0_142] : memref<4x12x8xbf16, #tpu.memory_space<vmem>>, vector<1x12x8xbf16>
    %141 = vector.shape_cast %140 : vector<1x12x8xbf16> to vector<12x8xbf16>
    %cst_143 = arith.constant dense<0.000000e+00> : vector<12x324xf32>
    %142 = tpu.matmul %141, %138, %cst_143 {dimension_numbers = #tpu.dot_dimension_numbers<[1], [0], [0], [1], [0, 0, 1, 1], [], []>} : vector<12x8xbf16>, vector<8x324xbf16>, vector<12x324xf32> -> vector<12x324xf32>
    %143 = arith.addf %139, %142 : vector<12x324xf32>
    %c0_144 = arith.constant 0 : index
    %c0_145 = arith.constant 0 : index
    %144 = vector.load %arg11[%c0_144, %c0_145] : memref<12x324xf32, #tpu.memory_space<vmem>>, vector<12x324xf32>
    tpu.vector_store %arg11[%c0_144, %c0_145], %143 {strides = array<i32>} : memref<12x324xf32, #tpu.memory_space<vmem>>, vector<12x324xf32>,
    %c0_146 = arith.constant 0 : index
    %c19_147 = arith.constant 19 : index
    %145 = vector.load %arg10[%c0_146, %c19_147] : memref<8x362xbf16, #tpu.memory_space<vmem>>, vector<8x324xbf16>
    tpu.vector_store %arg10[%c0_146, %c19_147], %138 {strides = array<i32>} : memref<8x362xbf16, #tpu.memory_space<vmem>>, vector<8x324xbf16>,
    %c1_148 = arith.constant 1 : index
    %c0_149 = arith.constant 0 : index
    %c0_150 = arith.constant 0 : index
    %146 = vector.load %arg6[%c1_148, %c0_149, %c0_150] : memref<3x4x1xf32, #tpu.memory_space<vmem>>, vector<1x4x1xf32>
    %147 = vector.shape_cast %146 : vector<1x4x1xf32> to vector<4x1xf32>
    %cst_151 = arith.constant 0.000000e+00 : f32
    %148 = vector.broadcast %cst_151 : f32 to vector<4x324xf32>
    %c1_152 = arith.constant 1 : index
    %c0_153 = arith.constant 0 : index
    %c0_154 = arith.constant 0 : index
    %c0_155 = arith.constant 0 : index
    %149 = vector.load %arg5[%c1_152, %c0_153, %c0_154, %c0_155] : memref<3x9x4x8xbf16, #tpu.memory_space<vmem>>, vector<1x1x4x8xbf16>
    %150 = vector.shape_cast %149 : vector<1x1x4x8xbf16> to vector<4x8xbf16>
    %c0_156 = arith.constant 0 : index
    %c0_157 = arith.constant 0 : index
    %151 = vector.load %arg10[%c0_156, %c0_157] : memref<8x362xbf16, #tpu.memory_space<vmem>>, vector<8x324xbf16>
    %cst_158 = arith.constant dense<0.000000e+00> : vector<4x324xf32>
    %152 = tpu.matmul %150, %151, %cst_158 {dimension_numbers = #tpu.dot_dimension_numbers<[1], [0], [0], [1], [0, 0, 1, 1], [], []>} : vector<4x8xbf16>, vector<8x324xbf16>, vector<4x324xf32> -> vector<4x324xf32>
    %153 = arith.addf %148, %152 : vector<4x324xf32>
    %c1_159 = arith.constant 1 : index
    %c1_160 = arith.constant 1 : index
    %c0_161 = arith.constant 0 : index
    %c0_162 = arith.constant 0 : index
    %154 = vector.load %arg5[%c1_159, %c1_160, %c0_161, %c0_162] : memref<3x9x4x8xbf16, #tpu.memory_space<vmem>>, vector<1x1x4x8xbf16>
    %155 = vector.shape_cast %154 : vector<1x1x4x8xbf16> to vector<4x8xbf16>
    %c0_163 = arith.constant 0 : index
    %c1_164 = arith.constant 1 : index
    %156 = vector.load %arg10[%c0_163, %c1_164] : memref<8x362xbf16, #tpu.memory_space<vmem>>, vector<8x324xbf16>
    %cst_165 = arith.constant dense<0.000000e+00> : vector<4x324xf32>
    %157 = tpu.matmul %155, %156, %cst_165 {dimension_numbers = #tpu.dot_dimension_numbers<[1], [0], [0], [1], [0, 0, 1, 1], [], []>} : vector<4x8xbf16>, vector<8x324xbf16>, vector<4x324xf32> -> vector<4x324xf32>
    %158 = arith.addf %153, %157 : vector<4x324xf32>
    %c1_166 = arith.constant 1 : index
    %c2_167 = arith.constant 2 : index
    %c0_168 = arith.constant 0 : index
    %c0_169 = arith.constant 0 : index
    %159 = vector.load %arg5[%c1_166, %c2_167, %c0_168, %c0_169] : memref<3x9x4x8xbf16, #tpu.memory_space<vmem>>, vector<1x1x4x8xbf16>
    %160 = vector.shape_cast %159 : vector<1x1x4x8xbf16> to vector<4x8xbf16>
    %c0_170 = arith.constant 0 : index
    %c2_171 = arith.constant 2 : index
    %161 = vector.load %arg10[%c0_170, %c2_171] : memref<8x362xbf16, #tpu.memory_space<vmem>>, vector<8x324xbf16>
    %cst_172 = arith.constant dense<0.000000e+00> : vector<4x324xf32>
    %162 = tpu.matmul %160, %161, %cst_172 {dimension_numbers = #tpu.dot_dimension_numbers<[1], [0], [0], [1], [0, 0, 1, 1], [], []>} : vector<4x8xbf16>, vector<8x324xbf16>, vector<4x324xf32> -> vector<4x324xf32>
    %163 = arith.addf %158, %162 : vector<4x324xf32>
    %c1_173 = arith.constant 1 : index
    %c3_174 = arith.constant 3 : index
    %c0_175 = arith.constant 0 : index
    %c0_176 = arith.constant 0 : index
    %164 = vector.load %arg5[%c1_173, %c3_174, %c0_175, %c0_176] : memref<3x9x4x8xbf16, #tpu.memory_space<vmem>>, vector<1x1x4x8xbf16>
    %165 = vector.shape_cast %164 : vector<1x1x4x8xbf16> to vector<4x8xbf16>
    %c0_177 = arith.constant 0 : index
    %c18_178 = arith.constant 18 : index
    %166 = vector.load %arg10[%c0_177, %c18_178] : memref<8x362xbf16, #tpu.memory_space<vmem>>, vector<8x324xbf16>
    %cst_179 = arith.constant dense<0.000000e+00> : vector<4x324xf32>
    %167 = tpu.matmul %165, %166, %cst_179 {dimension_numbers = #tpu.dot_dimension_numbers<[1], [0], [0], [1], [0, 0, 1, 1], [], []>} : vector<4x8xbf16>, vector<8x324xbf16>, vector<4x324xf32> -> vector<4x324xf32>
    %168 = arith.addf %163, %167 : vector<4x324xf32>
    %c1_180 = arith.constant 1 : index
    %c4_181 = arith.constant 4 : index
    %c0_182 = arith.constant 0 : index
    %c0_183 = arith.constant 0 : index
    %169 = vector.load %arg5[%c1_180, %c4_181, %c0_182, %c0_183] : memref<3x9x4x8xbf16, #tpu.memory_space<vmem>>, vector<1x1x4x8xbf16>
    %170 = vector.shape_cast %169 : vector<1x1x4x8xbf16> to vector<4x8xbf16>
    %c0_184 = arith.constant 0 : index
    %c19_185 = arith.constant 19 : index
    %171 = vector.load %arg10[%c0_184, %c19_185] : memref<8x362xbf16, #tpu.memory_space<vmem>>, vector<8x324xbf16>
    %cst_186 = arith.constant dense<0.000000e+00> : vector<4x324xf32>
    %172 = tpu.matmul %170, %171, %cst_186 {dimension_numbers = #tpu.dot_dimension_numbers<[1], [0], [0], [1], [0, 0, 1, 1], [], []>} : vector<4x8xbf16>, vector<8x324xbf16>, vector<4x324xf32> -> vector<4x324xf32>
    %173 = arith.addf %168, %172 : vector<4x324xf32>
    %c1_187 = arith.constant 1 : index
    %c5_188 = arith.constant 5 : index
    %c0_189 = arith.constant 0 : index
    %c0_190 = arith.constant 0 : index
    %174 = vector.load %arg5[%c1_187, %c5_188, %c0_189, %c0_190] : memref<3x9x4x8xbf16, #tpu.memory_space<vmem>>, vector<1x1x4x8xbf16>
    %175 = vector.shape_cast %174 : vector<1x1x4x8xbf16> to vector<4x8xbf16>
    %c0_191 = arith.constant 0 : index
    %c20_192 = arith.constant 20 : index
    %176 = vector.load %arg10[%c0_191, %c20_192] : memref<8x362xbf16, #tpu.memory_space<vmem>>, vector<8x324xbf16>
    %cst_193 = arith.constant dense<0.000000e+00> : vector<4x324xf32>
    %177 = tpu.matmul %175, %176, %cst_193 {dimension_numbers = #tpu.dot_dimension_numbers<[1], [0], [0], [1], [0, 0, 1, 1], [], []>} : vector<4x8xbf16>, vector<8x324xbf16>, vector<4x324xf32> -> vector<4x324xf32>
    %178 = arith.addf %173, %177 : vector<4x324xf32>
    %c1_194 = arith.constant 1 : index
    %c6_195 = arith.constant 6 : index
    %c0_196 = arith.constant 0 : index
    %c0_197 = arith.constant 0 : index
    %179 = vector.load %arg5[%c1_194, %c6_195, %c0_196, %c0_197] : memref<3x9x4x8xbf16, #tpu.memory_space<vmem>>, vector<1x1x4x8xbf16>
    %180 = vector.shape_cast %179 : vector<1x1x4x8xbf16> to vector<4x8xbf16>
    %c0_198 = arith.constant 0 : index
    %c36_199 = arith.constant 36 : index
    %181 = vector.load %arg10[%c0_198, %c36_199] : memref<8x362xbf16, #tpu.memory_space<vmem>>, vector<8x324xbf16>
    %cst_200 = arith.constant dense<0.000000e+00> : vector<4x324xf32>
    %182 = tpu.matmul %180, %181, %cst_200 {dimension_numbers = #tpu.dot_dimension_numbers<[1], [0], [0], [1], [0, 0, 1, 1], [], []>} : vector<4x8xbf16>, vector<8x324xbf16>, vector<4x324xf32> -> vector<4x324xf32>
    %183 = arith.addf %178, %182 : vector<4x324xf32>
    %c1_201 = arith.constant 1 : index
    %c7_202 = arith.constant 7 : index
    %c0_203 = arith.constant 0 : index
    %c0_204 = arith.constant 0 : index
    %184 = vector.load %arg5[%c1_201, %c7_202, %c0_203, %c0_204] : memref<3x9x4x8xbf16, #tpu.memory_space<vmem>>, vector<1x1x4x8xbf16>
    %185 = vector.shape_cast %184 : vector<1x1x4x8xbf16> to vector<4x8xbf16>
    %c0_205 = arith.constant 0 : index
    %c37_206 = arith.constant 37 : index
    %186 = vector.load %arg10[%c0_205, %c37_206] : memref<8x362xbf16, #tpu.memory_space<vmem>>, vector<8x324xbf16>
    %cst_207 = arith.constant dense<0.000000e+00> : vector<4x324xf32>
    %187 = tpu.matmul %185, %186, %cst_207 {dimension_numbers = #tpu.dot_dimension_numbers<[1], [0], [0], [1], [0, 0, 1, 1], [], []>} : vector<4x8xbf16>, vector<8x324xbf16>, vector<4x324xf32> -> vector<4x324xf32>
    %188 = arith.addf %183, %187 : vector<4x324xf32>
    %c1_208 = arith.constant 1 : index
    %c8_209 = arith.constant 8 : index
    %c0_210 = arith.constant 0 : index
    %c0_211 = arith.constant 0 : index
    %189 = vector.load %arg5[%c1_208, %c8_209, %c0_210, %c0_211] : memref<3x9x4x8xbf16, #tpu.memory_space<vmem>>, vector<1x1x4x8xbf16>
    %190 = vector.shape_cast %189 : vector<1x1x4x8xbf16> to vector<4x8xbf16>
    %c0_212 = arith.constant 0 : index
    %c38_213 = arith.constant 38 : index
    %191 = vector.load %arg10[%c0_212, %c38_213] : memref<8x362xbf16, #tpu.memory_space<vmem>>, vector<8x324xbf16>
    %cst_214 = arith.constant dense<0.000000e+00> : vector<4x324xf32>
    %192 = tpu.matmul %190, %191, %cst_214 {dimension_numbers = #tpu.dot_dimension_numbers<[1], [0], [0], [1], [0, 0, 1, 1], [], []>} : vector<4x8xbf16>, vector<8x324xbf16>, vector<4x324xf32> -> vector<4x324xf32>
    %193 = arith.addf %188, %192 : vector<4x324xf32>
    %194 = vector.broadcast %147 : vector<4x1xf32> to vector<4x324xf32>
    %195 = arith.addf %193, %194 : vector<4x324xf32>
    %cst_215 = arith.constant 0.000000e+00 : f32
    %196 = vector.broadcast %cst_215 : f32 to vector<4x324xf32>
    %197 = arith.maximumf %195, %196 : vector<4x324xf32>
    %cst_216 = arith.constant 0.000000e+00 : f32
    %198 = vector.broadcast %cst_216 : f32 to vector<4x324xf32>
    %199 = arith.subf %198, %195 : vector<4x324xf32>
    %cst_217 = arith.constant 0.000000e+00 : f32
    %200 = vector.broadcast %cst_217 : f32 to vector<4x324xf32>
    %201 = arith.maximumf %199, %200 : vector<4x324xf32>
    %202 = tpu.concatenate %197, %201 in 0 : vector<4x324xf32>, vector<4x324xf32> -> vector<8x324xf32>
    %203 = vector.broadcast %2 : vector<1x324xf32> to vector<8x324xf32>
    %204 = arith.mulf %202, %203 : vector<8x324xf32>
    %205 = arith.truncf %204 : vector<8x324xf32> to vector<8x324xbf16>
    %c0_218 = arith.constant 0 : index
    %c0_219 = arith.constant 0 : index
    %206 = vector.load %arg11[%c0_218, %c0_219] : memref<12x324xf32, #tpu.memory_space<vmem>>, vector<12x324xf32>
    %c2_220 = arith.constant 2 : index
    %c0_221 = arith.constant 0 : index
    %c0_222 = arith.constant 0 : index
    %207 = vector.load %arg7[%c2_220, %c0_221, %c0_222] : memref<4x12x8xbf16, #tpu.memory_space<vmem>>, vector<1x12x8xbf16>
    %208 = vector.shape_cast %207 : vector<1x12x8xbf16> to vector<12x8xbf16>
    %cst_223 = arith.constant dense<0.000000e+00> : vector<12x324xf32>
    %209 = tpu.matmul %208, %205, %cst_223 {dimension_numbers = #tpu.dot_dimension_numbers<[1], [0], [0], [1], [0, 0, 1, 1], [], []>} : vector<12x8xbf16>, vector<8x324xbf16>, vector<12x324xf32> -> vector<12x324xf32>
    %210 = arith.addf %206, %209 : vector<12x324xf32>
    %c0_224 = arith.constant 0 : index
    %c0_225 = arith.constant 0 : index
    %211 = vector.load %arg11[%c0_224, %c0_225] : memref<12x324xf32, #tpu.memory_space<vmem>>, vector<12x324xf32>
    tpu.vector_store %arg11[%c0_224, %c0_225], %210 {strides = array<i32>} : memref<12x324xf32, #tpu.memory_space<vmem>>, vector<12x324xf32>,
    %c0_226 = arith.constant 0 : index
    %c19_227 = arith.constant 19 : index
    %212 = vector.load %arg10[%c0_226, %c19_227] : memref<8x362xbf16, #tpu.memory_space<vmem>>, vector<8x324xbf16>
    tpu.vector_store %arg10[%c0_226, %c19_227], %205 {strides = array<i32>} : memref<8x362xbf16, #tpu.memory_space<vmem>>, vector<8x324xbf16>,
    %c2_228 = arith.constant 2 : index
    %c0_229 = arith.constant 0 : index
    %c0_230 = arith.constant 0 : index
    %213 = vector.load %arg6[%c2_228, %c0_229, %c0_230] : memref<3x4x1xf32, #tpu.memory_space<vmem>>, vector<1x4x1xf32>
    %214 = vector.shape_cast %213 : vector<1x4x1xf32> to vector<4x1xf32>
    %cst_231 = arith.constant 0.000000e+00 : f32
    %215 = vector.broadcast %cst_231 : f32 to vector<4x324xf32>
    %c2_232 = arith.constant 2 : index
    %c0_233 = arith.constant 0 : index
    %c0_234 = arith.constant 0 : index
    %c0_235 = arith.constant 0 : index
    %216 = vector.load %arg5[%c2_232, %c0_233, %c0_234, %c0_235] : memref<3x9x4x8xbf16, #tpu.memory_space<vmem>>, vector<1x1x4x8xbf16>
    %217 = vector.shape_cast %216 : vector<1x1x4x8xbf16> to vector<4x8xbf16>
    %c0_236 = arith.constant 0 : index
    %c0_237 = arith.constant 0 : index
    %218 = vector.load %arg10[%c0_236, %c0_237] : memref<8x362xbf16, #tpu.memory_space<vmem>>, vector<8x324xbf16>
    %cst_238 = arith.constant dense<0.000000e+00> : vector<4x324xf32>
    %219 = tpu.matmul %217, %218, %cst_238 {dimension_numbers = #tpu.dot_dimension_numbers<[1], [0], [0], [1], [0, 0, 1, 1], [], []>} : vector<4x8xbf16>, vector<8x324xbf16>, vector<4x324xf32> -> vector<4x324xf32>
    %220 = arith.addf %215, %219 : vector<4x324xf32>
    %c2_239 = arith.constant 2 : index
    %c1_240 = arith.constant 1 : index
    %c0_241 = arith.constant 0 : index
    %c0_242 = arith.constant 0 : index
    %221 = vector.load %arg5[%c2_239, %c1_240, %c0_241, %c0_242] : memref<3x9x4x8xbf16, #tpu.memory_space<vmem>>, vector<1x1x4x8xbf16>
    %222 = vector.shape_cast %221 : vector<1x1x4x8xbf16> to vector<4x8xbf16>
    %c0_243 = arith.constant 0 : index
    %c1_244 = arith.constant 1 : index
    %223 = vector.load %arg10[%c0_243, %c1_244] : memref<8x362xbf16, #tpu.memory_space<vmem>>, vector<8x324xbf16>
    %cst_245 = arith.constant dense<0.000000e+00> : vector<4x324xf32>
    %224 = tpu.matmul %222, %223, %cst_245 {dimension_numbers = #tpu.dot_dimension_numbers<[1], [0], [0], [1], [0, 0, 1, 1], [], []>} : vector<4x8xbf16>, vector<8x324xbf16>, vector<4x324xf32> -> vector<4x324xf32>
    %225 = arith.addf %220, %224 : vector<4x324xf32>
    %c2_246 = arith.constant 2 : index
    %c2_247 = arith.constant 2 : index
    %c0_248 = arith.constant 0 : index
    %c0_249 = arith.constant 0 : index
    %226 = vector.load %arg5[%c2_246, %c2_247, %c0_248, %c0_249] : memref<3x9x4x8xbf16, #tpu.memory_space<vmem>>, vector<1x1x4x8xbf16>
    %227 = vector.shape_cast %226 : vector<1x1x4x8xbf16> to vector<4x8xbf16>
    %c0_250 = arith.constant 0 : index
    %c2_251 = arith.constant 2 : index
    %228 = vector.load %arg10[%c0_250, %c2_251] : memref<8x362xbf16, #tpu.memory_space<vmem>>, vector<8x324xbf16>
    %cst_252 = arith.constant dense<0.000000e+00> : vector<4x324xf32>
    %229 = tpu.matmul %227, %228, %cst_252 {dimension_numbers = #tpu.dot_dimension_numbers<[1], [0], [0], [1], [0, 0, 1, 1], [], []>} : vector<4x8xbf16>, vector<8x324xbf16>, vector<4x324xf32> -> vector<4x324xf32>
    %230 = arith.addf %225, %229 : vector<4x324xf32>
    %c2_253 = arith.constant 2 : index
    %c3_254 = arith.constant 3 : index
    %c0_255 = arith.constant 0 : index
    %c0_256 = arith.constant 0 : index
    %231 = vector.load %arg5[%c2_253, %c3_254, %c0_255, %c0_256] : memref<3x9x4x8xbf16, #tpu.memory_space<vmem>>, vector<1x1x4x8xbf16>
    %232 = vector.shape_cast %231 : vector<1x1x4x8xbf16> to vector<4x8xbf16>
    %c0_257 = arith.constant 0 : index
    %c18_258 = arith.constant 18 : index
    %233 = vector.load %arg10[%c0_257, %c18_258] : memref<8x362xbf16, #tpu.memory_space<vmem>>, vector<8x324xbf16>
    %cst_259 = arith.constant dense<0.000000e+00> : vector<4x324xf32>
    %234 = tpu.matmul %232, %233, %cst_259 {dimension_numbers = #tpu.dot_dimension_numbers<[1], [0], [0], [1], [0, 0, 1, 1], [], []>} : vector<4x8xbf16>, vector<8x324xbf16>, vector<4x324xf32> -> vector<4x324xf32>
    %235 = arith.addf %230, %234 : vector<4x324xf32>
    %c2_260 = arith.constant 2 : index
    %c4_261 = arith.constant 4 : index
    %c0_262 = arith.constant 0 : index
    %c0_263 = arith.constant 0 : index
    %236 = vector.load %arg5[%c2_260, %c4_261, %c0_262, %c0_263] : memref<3x9x4x8xbf16, #tpu.memory_space<vmem>>, vector<1x1x4x8xbf16>
    %237 = vector.shape_cast %236 : vector<1x1x4x8xbf16> to vector<4x8xbf16>
    %c0_264 = arith.constant 0 : index
    %c19_265 = arith.constant 19 : index
    %238 = vector.load %arg10[%c0_264, %c19_265] : memref<8x362xbf16, #tpu.memory_space<vmem>>, vector<8x324xbf16>
    %cst_266 = arith.constant dense<0.000000e+00> : vector<4x324xf32>
    %239 = tpu.matmul %237, %238, %cst_266 {dimension_numbers = #tpu.dot_dimension_numbers<[1], [0], [0], [1], [0, 0, 1, 1], [], []>} : vector<4x8xbf16>, vector<8x324xbf16>, vector<4x324xf32> -> vector<4x324xf32>
    %240 = arith.addf %235, %239 : vector<4x324xf32>
    %c2_267 = arith.constant 2 : index
    %c5_268 = arith.constant 5 : index
    %c0_269 = arith.constant 0 : index
    %c0_270 = arith.constant 0 : index
    %241 = vector.load %arg5[%c2_267, %c5_268, %c0_269, %c0_270] : memref<3x9x4x8xbf16, #tpu.memory_space<vmem>>, vector<1x1x4x8xbf16>
    %242 = vector.shape_cast %241 : vector<1x1x4x8xbf16> to vector<4x8xbf16>
    %c0_271 = arith.constant 0 : index
    %c20_272 = arith.constant 20 : index
    %243 = vector.load %arg10[%c0_271, %c20_272] : memref<8x362xbf16, #tpu.memory_space<vmem>>, vector<8x324xbf16>
    %cst_273 = arith.constant dense<0.000000e+00> : vector<4x324xf32>
    %244 = tpu.matmul %242, %243, %cst_273 {dimension_numbers = #tpu.dot_dimension_numbers<[1], [0], [0], [1], [0, 0, 1, 1], [], []>} : vector<4x8xbf16>, vector<8x324xbf16>, vector<4x324xf32> -> vector<4x324xf32>
    %245 = arith.addf %240, %244 : vector<4x324xf32>
    %c2_274 = arith.constant 2 : index
    %c6_275 = arith.constant 6 : index
    %c0_276 = arith.constant 0 : index
    %c0_277 = arith.constant 0 : index
    %246 = vector.load %arg5[%c2_274, %c6_275, %c0_276, %c0_277] : memref<3x9x4x8xbf16, #tpu.memory_space<vmem>>, vector<1x1x4x8xbf16>
    %247 = vector.shape_cast %246 : vector<1x1x4x8xbf16> to vector<4x8xbf16>
    %c0_278 = arith.constant 0 : index
    %c36_279 = arith.constant 36 : index
    %248 = vector.load %arg10[%c0_278, %c36_279] : memref<8x362xbf16, #tpu.memory_space<vmem>>, vector<8x324xbf16>
    %cst_280 = arith.constant dense<0.000000e+00> : vector<4x324xf32>
    %249 = tpu.matmul %247, %248, %cst_280 {dimension_numbers = #tpu.dot_dimension_numbers<[1], [0], [0], [1], [0, 0, 1, 1], [], []>} : vector<4x8xbf16>, vector<8x324xbf16>, vector<4x324xf32> -> vector<4x324xf32>
    %250 = arith.addf %245, %249 : vector<4x324xf32>
    %c2_281 = arith.constant 2 : index
    %c7_282 = arith.constant 7 : index
    %c0_283 = arith.constant 0 : index
    %c0_284 = arith.constant 0 : index
    %251 = vector.load %arg5[%c2_281, %c7_282, %c0_283, %c0_284] : memref<3x9x4x8xbf16, #tpu.memory_space<vmem>>, vector<1x1x4x8xbf16>
    %252 = vector.shape_cast %251 : vector<1x1x4x8xbf16> to vector<4x8xbf16>
    %c0_285 = arith.constant 0 : index
    %c37_286 = arith.constant 37 : index
    %253 = vector.load %arg10[%c0_285, %c37_286] : memref<8x362xbf16, #tpu.memory_space<vmem>>, vector<8x324xbf16>
    %cst_287 = arith.constant dense<0.000000e+00> : vector<4x324xf32>
    %254 = tpu.matmul %252, %253, %cst_287 {dimension_numbers = #tpu.dot_dimension_numbers<[1], [0], [0], [1], [0, 0, 1, 1], [], []>} : vector<4x8xbf16>, vector<8x324xbf16>, vector<4x324xf32> -> vector<4x324xf32>
    %255 = arith.addf %250, %254 : vector<4x324xf32>
    %c2_288 = arith.constant 2 : index
    %c8_289 = arith.constant 8 : index
    %c0_290 = arith.constant 0 : index
    %c0_291 = arith.constant 0 : index
    %256 = vector.load %arg5[%c2_288, %c8_289, %c0_290, %c0_291] : memref<3x9x4x8xbf16, #tpu.memory_space<vmem>>, vector<1x1x4x8xbf16>
    %257 = vector.shape_cast %256 : vector<1x1x4x8xbf16> to vector<4x8xbf16>
    %c0_292 = arith.constant 0 : index
    %c38_293 = arith.constant 38 : index
    %258 = vector.load %arg10[%c0_292, %c38_293] : memref<8x362xbf16, #tpu.memory_space<vmem>>, vector<8x324xbf16>
    %cst_294 = arith.constant dense<0.000000e+00> : vector<4x324xf32>
    %259 = tpu.matmul %257, %258, %cst_294 {dimension_numbers = #tpu.dot_dimension_numbers<[1], [0], [0], [1], [0, 0, 1, 1], [], []>} : vector<4x8xbf16>, vector<8x324xbf16>, vector<4x324xf32> -> vector<4x324xf32>
    %260 = arith.addf %255, %259 : vector<4x324xf32>
    %261 = vector.broadcast %214 : vector<4x1xf32> to vector<4x324xf32>
    %262 = arith.addf %260, %261 : vector<4x324xf32>
    %cst_295 = arith.constant 0.000000e+00 : f32
    %263 = vector.broadcast %cst_295 : f32 to vector<4x324xf32>
    %264 = arith.maximumf %262, %263 : vector<4x324xf32>
    %cst_296 = arith.constant 0.000000e+00 : f32
    %265 = vector.broadcast %cst_296 : f32 to vector<4x324xf32>
    %266 = arith.subf %265, %262 : vector<4x324xf32>
    %cst_297 = arith.constant 0.000000e+00 : f32
    %267 = vector.broadcast %cst_297 : f32 to vector<4x324xf32>
    %268 = arith.maximumf %266, %267 : vector<4x324xf32>
    %269 = tpu.concatenate %264, %268 in 0 : vector<4x324xf32>, vector<4x324xf32> -> vector<8x324xf32>
    %270 = vector.broadcast %2 : vector<1x324xf32> to vector<8x324xf32>
    %271 = arith.mulf %269, %270 : vector<8x324xf32>
    %272 = arith.truncf %271 : vector<8x324xf32> to vector<8x324xbf16>
    %c0_298 = arith.constant 0 : index
    %c0_299 = arith.constant 0 : index
    %273 = vector.load %arg11[%c0_298, %c0_299] : memref<12x324xf32, #tpu.memory_space<vmem>>, vector<12x324xf32>
    %c3_300 = arith.constant 3 : index
    %c0_301 = arith.constant 0 : index
    %c0_302 = arith.constant 0 : index
    %274 = vector.load %arg7[%c3_300, %c0_301, %c0_302] : memref<4x12x8xbf16, #tpu.memory_space<vmem>>, vector<1x12x8xbf16>
    %275 = vector.shape_cast %274 : vector<1x12x8xbf16> to vector<12x8xbf16>
    %cst_303 = arith.constant dense<0.000000e+00> : vector<12x324xf32>
    %276 = tpu.matmul %275, %272, %cst_303 {dimension_numbers = #tpu.dot_dimension_numbers<[1], [0], [0], [1], [0, 0, 1, 1], [], []>} : vector<12x8xbf16>, vector<8x324xbf16>, vector<12x324xf32> -> vector<12x324xf32>
    %277 = arith.addf %273, %276 : vector<12x324xf32>
    %c0_304 = arith.constant 0 : index
    %c0_305 = arith.constant 0 : index
    %278 = vector.load %arg11[%c0_304, %c0_305] : memref<12x324xf32, #tpu.memory_space<vmem>>, vector<12x324xf32>
    tpu.vector_store %arg11[%c0_304, %c0_305], %277 {strides = array<i32>} : memref<12x324xf32, #tpu.memory_space<vmem>>, vector<12x324xf32>,
    %cst_306 = arith.constant 0.000000e+00 : f32
    %279 = vector.broadcast %cst_306 : f32 to vector<3x324xf32>
    %c0_307 = arith.constant 0 : index
    %c0_308 = arith.constant 0 : index
    %c0_309 = arith.constant 0 : index
    %280 = vector.load %arg1[%c0_307, %c0_308, %c0_309] : memref<1x3x362xf32, #tpu.memory_space<vmem>>, vector<1x3x324xf32>
    %281 = vector.shape_cast %280 : vector<1x3x324xf32> to vector<3x324xf32>
    %cst_310 = arith.constant 6.250000e-02 : f32
    %282 = vector.broadcast %cst_310 : f32 to vector<3x324xf32>
    %283 = arith.mulf %282, %281 : vector<3x324xf32>
    %284 = arith.addf %279, %283 : vector<3x324xf32>
    %c0_311 = arith.constant 0 : index
    %c0_312 = arith.constant 0 : index
    %c1_313 = arith.constant 1 : index
    %285 = vector.load %arg1[%c0_311, %c0_312, %c1_313] : memref<1x3x362xf32, #tpu.memory_space<vmem>>, vector<1x3x324xf32>
    %286 = vector.shape_cast %285 : vector<1x3x324xf32> to vector<3x324xf32>
    %cst_314 = arith.constant 1.875000e-01 : f32
    %287 = vector.broadcast %cst_314 : f32 to vector<3x324xf32>
    %288 = arith.mulf %287, %286 : vector<3x324xf32>
    %289 = arith.addf %284, %288 : vector<3x324xf32>
    %c0_315 = arith.constant 0 : index
    %c0_316 = arith.constant 0 : index
    %c18_317 = arith.constant 18 : index
    %290 = vector.load %arg1[%c0_315, %c0_316, %c18_317] : memref<1x3x362xf32, #tpu.memory_space<vmem>>, vector<1x3x324xf32>
    %291 = vector.shape_cast %290 : vector<1x3x324xf32> to vector<3x324xf32>
    %cst_318 = arith.constant 1.875000e-01 : f32
    %292 = vector.broadcast %cst_318 : f32 to vector<3x324xf32>
    %293 = arith.mulf %292, %291 : vector<3x324xf32>
    %294 = arith.addf %289, %293 : vector<3x324xf32>
    %cst_319 = arith.constant 5.625000e-01 : f32
    %295 = vector.broadcast %cst_319 : f32 to vector<3x324xf32>
    %296 = arith.mulf %295, %4 : vector<3x324xf32>
    %297 = arith.addf %294, %296 : vector<3x324xf32>
    %cst_320 = arith.constant 0.000000e+00 : f32
    %298 = vector.broadcast %cst_320 : f32 to vector<3x324xf32>
    %cst_321 = arith.constant 1.875000e-01 : f32
    %299 = vector.broadcast %cst_321 : f32 to vector<3x324xf32>
    %300 = arith.mulf %299, %286 : vector<3x324xf32>
    %301 = arith.addf %298, %300 : vector<3x324xf32>
    %c0_322 = arith.constant 0 : index
    %c0_323 = arith.constant 0 : index
    %c2_324 = arith.constant 2 : index
    %302 = vector.load %arg1[%c0_322, %c0_323, %c2_324] : memref<1x3x362xf32, #tpu.memory_space<vmem>>, vector<1x3x324xf32>
    %303 = vector.shape_cast %302 : vector<1x3x324xf32> to vector<3x324xf32>
    %cst_325 = arith.constant 6.250000e-02 : f32
    %304 = vector.broadcast %cst_325 : f32 to vector<3x324xf32>
    %305 = arith.mulf %304, %303 : vector<3x324xf32>
    %306 = arith.addf %301, %305 : vector<3x324xf32>
    %cst_326 = arith.constant 5.625000e-01 : f32
    %307 = vector.broadcast %cst_326 : f32 to vector<3x324xf32>
    %308 = arith.mulf %307, %4 : vector<3x324xf32>
    %309 = arith.addf %306, %308 : vector<3x324xf32>
    %c0_327 = arith.constant 0 : index
    %c0_328 = arith.constant 0 : index
    %c20_329 = arith.constant 20 : index
    %310 = vector.load %arg1[%c0_327, %c0_328, %c20_329] : memref<1x3x362xf32, #tpu.memory_space<vmem>>, vector<1x3x324xf32>
    %311 = vector.shape_cast %310 : vector<1x3x324xf32> to vector<3x324xf32>
    %cst_330 = arith.constant 1.875000e-01 : f32
    %312 = vector.broadcast %cst_330 : f32 to vector<3x324xf32>
    %313 = arith.mulf %312, %311 : vector<3x324xf32>
    %314 = arith.addf %309, %313 : vector<3x324xf32>
    %cst_331 = arith.constant 0.000000e+00 : f32
    %315 = vector.broadcast %cst_331 : f32 to vector<3x324xf32>
    %cst_332 = arith.constant 1.875000e-01 : f32
    %316 = vector.broadcast %cst_332 : f32 to vector<3x324xf32>
    %317 = arith.mulf %316, %291 : vector<3x324xf32>
    %318 = arith.addf %315, %317 : vector<3x324xf32>
    %cst_333 = arith.constant 5.625000e-01 : f32
    %319 = vector.broadcast %cst_333 : f32 to vector<3x324xf32>
    %320 = arith.mulf %319, %4 : vector<3x324xf32>
    %321 = arith.addf %318, %320 : vector<3x324xf32>
    %c0_334 = arith.constant 0 : index
    %c0_335 = arith.constant 0 : index
    %c36_336 = arith.constant 36 : index
    %322 = vector.load %arg1[%c0_334, %c0_335, %c36_336] : memref<1x3x362xf32, #tpu.memory_space<vmem>>, vector<1x3x324xf32>
    %323 = vector.shape_cast %322 : vector<1x3x324xf32> to vector<3x324xf32>
    %cst_337 = arith.constant 6.250000e-02 : f32
    %324 = vector.broadcast %cst_337 : f32 to vector<3x324xf32>
    %325 = arith.mulf %324, %323 : vector<3x324xf32>
    %326 = arith.addf %321, %325 : vector<3x324xf32>
    %c0_338 = arith.constant 0 : index
    %c0_339 = arith.constant 0 : index
    %c37_340 = arith.constant 37 : index
    %327 = vector.load %arg1[%c0_338, %c0_339, %c37_340] : memref<1x3x362xf32, #tpu.memory_space<vmem>>, vector<1x3x324xf32>
    %328 = vector.shape_cast %327 : vector<1x3x324xf32> to vector<3x324xf32>
    %cst_341 = arith.constant 1.875000e-01 : f32
    %329 = vector.broadcast %cst_341 : f32 to vector<3x324xf32>
    %330 = arith.mulf %329, %328 : vector<3x324xf32>
    %331 = arith.addf %326, %330 : vector<3x324xf32>
    %cst_342 = arith.constant 0.000000e+00 : f32
    %332 = vector.broadcast %cst_342 : f32 to vector<3x324xf32>
    %cst_343 = arith.constant 5.625000e-01 : f32
    %333 = vector.broadcast %cst_343 : f32 to vector<3x324xf32>
    %334 = arith.mulf %333, %4 : vector<3x324xf32>
    %335 = arith.addf %332, %334 : vector<3x324xf32>
    %cst_344 = arith.constant 1.875000e-01 : f32
    %336 = vector.broadcast %cst_344 : f32 to vector<3x324xf32>
    %337 = arith.mulf %336, %311 : vector<3x324xf32>
    %338 = arith.addf %335, %337 : vector<3x324xf32>
    %cst_345 = arith.constant 1.875000e-01 : f32
    %339 = vector.broadcast %cst_345 : f32 to vector<3x324xf32>
    %340 = arith.mulf %339, %328 : vector<3x324xf32>
    %341 = arith.addf %338, %340 : vector<3x324xf32>
    %c0_346 = arith.constant 0 : index
    %c0_347 = arith.constant 0 : index
    %c38_348 = arith.constant 38 : index
    %342 = vector.load %arg1[%c0_346, %c0_347, %c38_348] : memref<1x3x362xf32, #tpu.memory_space<vmem>>, vector<1x3x324xf32>
    %343 = vector.shape_cast %342 : vector<1x3x324xf32> to vector<3x324xf32>
    %cst_349 = arith.constant 6.250000e-02 : f32
    %344 = vector.broadcast %cst_349 : f32 to vector<3x324xf32>
    %345 = arith.mulf %344, %343 : vector<3x324xf32>
    %346 = arith.addf %341, %345 : vector<3x324xf32>
    %347 = tpu.concatenate %297, %314, %331, %346 in 0 : vector<3x324xf32>, vector<3x324xf32>, vector<3x324xf32>, vector<3x324xf32> -> vector<12x324xf32>
    %c0_350 = arith.constant 0 : index
    %c0_351 = arith.constant 0 : index
    %348 = vector.load %arg11[%c0_350, %c0_351] : memref<12x324xf32, #tpu.memory_space<vmem>>, vector<12x324xf32>
    %349 = arith.addf %347, %348 : vector<12x324xf32>
    %c0_352 = arith.constant 0 : index
    %c0_353 = arith.constant 0 : index
    %c0_354 = arith.constant 0 : index
    %350 = vector.load %arg9[%c0_352, %c0_353, %c0_354] : memref<1x12x324xf32, #tpu.memory_space<vmem>>, vector<1x12x324xf32>
    %351 = vector.shape_cast %350 : vector<1x12x324xf32> to vector<12x324xf32>
    %352 = vector.shape_cast %349 : vector<12x324xf32> to vector<1x12x324xf32>
    tpu.vector_store %arg9[%c0_352, %c0_353, %c0_354], %352 {strides = array<i32>} : memref<1x12x324xf32, #tpu.memory_space<vmem>>, vector<1x12x324xf32>,
    return
  }
  func.func @transform_0(%arg0: i32) -> (i32, i32, i32) {
    %c0_i32 = arith.constant 0 : i32
    %c0_i32_0 = arith.constant 0 : i32
    %c0_i32_1 = arith.constant 0 : i32
    return %arg0, %c0_i32, %c0_i32_0 : i32, i32, i32
  }
  func.func @transform_1(%arg0: i32) -> (i32, i32) {
    %c0_i32 = arith.constant 0 : i32
    %c0_i32_0 = arith.constant 0 : i32
    %c0_i32_1 = arith.constant 0 : i32
    return %c0_i32, %c0_i32_0 : i32, i32
  }
  func.func @transform_2(%arg0: i32) -> (i32, i32, i32) {
    %c0_i32 = arith.constant 0 : i32
    %c0_i32_0 = arith.constant 0 : i32
    %c0_i32_1 = arith.constant 0 : i32
    %c0_i32_2 = arith.constant 0 : i32
    return %c0_i32, %c0_i32_0, %c0_i32_1 : i32, i32, i32
  }
  func.func @transform_3(%arg0: i32) -> (i32, i32) {
    %c0_i32 = arith.constant 0 : i32
    %c0_i32_0 = arith.constant 0 : i32
    %c0_i32_1 = arith.constant 0 : i32
    return %c0_i32, %c0_i32_0 : i32, i32
  }
  func.func @transform_4(%arg0: i32) -> (i32, i32, i32, i32) {
    %c0_i32 = arith.constant 0 : i32
    %c0_i32_0 = arith.constant 0 : i32
    %c0_i32_1 = arith.constant 0 : i32
    %c0_i32_2 = arith.constant 0 : i32
    %c0_i32_3 = arith.constant 0 : i32
    return %c0_i32, %c0_i32_0, %c0_i32_1, %c0_i32_2 : i32, i32, i32, i32
  }
  func.func @transform_5(%arg0: i32) -> (i32, i32, i32) {
    %c0_i32 = arith.constant 0 : i32
    %c0_i32_0 = arith.constant 0 : i32
    %c0_i32_1 = arith.constant 0 : i32
    %c0_i32_2 = arith.constant 0 : i32
    return %c0_i32, %c0_i32_0, %c0_i32_1 : i32, i32, i32
  }
  func.func @transform_6(%arg0: i32) -> (i32, i32, i32) {
    %c0_i32 = arith.constant 0 : i32
    %c0_i32_0 = arith.constant 0 : i32
    %c0_i32_1 = arith.constant 0 : i32
    %c0_i32_2 = arith.constant 0 : i32
    return %c0_i32, %c0_i32_0, %c0_i32_1 : i32, i32, i32
  }
  func.func @transform_7(%arg0: i32) -> (i32, i32) {
    %c0_i32 = arith.constant 0 : i32
    %c0_i32_0 = arith.constant 0 : i32
    %c0_i32_1 = arith.constant 0 : i32
    return %c0_i32, %c0_i32_0 : i32, i32
  }
  func.func @transform_8(%arg0: i32) -> (i32, i32, i32) {
    %c0_i32 = arith.constant 0 : i32
    %c0_i32_0 = arith.constant 0 : i32
    %c0_i32_1 = arith.constant 0 : i32
    return %arg0, %c0_i32, %c0_i32_0 : i32, i32, i32
  }
}

</mosaic_0001>

<llo_original>
// kernel: anime4k_forward.1
$region0: #{anime4k_forward.1}
  #allocation0 [shape = 'u32[]', space=smem, size = 0x4, offset = 0x4, fixed_abs, tag = 'smem constant byte address 0x4 - core index']
  #allocation1 [shape = 'u32[144,128]{1,0:T(1,128)}', space=vmem, size = 0x12000, scoped, tag = 'internal scratch']
  #allocation2 [shape = 'bf16[8,362]{1,0:T(8,128)(2,1)}', space=vmem, size = 0x1800, scoped, tag = 'scratch operand']
  #allocation3 [shape = 'f32[12,324]{1,0:T(8,128)}', space=vmem, size = 0x6000, scoped, tag = 'scratch operand']
  %s0 = inlined_call_operand.vmem [shape: f32[2,3,362], index: 0, kind: input, shape index: {}]
  %s1 = inlined_call_operand.vmem [shape: f32[1,324], index: 1, kind: input, shape index: {}]
  %s2 = inlined_call_operand.vmem [shape: bf16[9,4,8], index: 2, kind: input, shape index: {}]
  %s3 = inlined_call_operand.vmem [shape: f32[4,1], index: 3, kind: input, shape index: {}]
  %s4 = inlined_call_operand.vmem [shape: bf16[3,9,4,8], index: 4, kind: input, shape index: {}]
  %s5 = inlined_call_operand.vmem [shape: f32[3,4,1], index: 5, kind: input, shape index: {}]
  %s6 = inlined_call_operand.vmem [shape: bf16[4,12,8], index: 6, kind: input, shape index: {}]
  %s7 = inlined_call_operand.vmem [shape: f32[12,1], index: 7, kind: input, shape index: {}]
  %s8 = inlined_call_operand.vmem [shape: f32[2,12,324], index: 8, kind: output, shape index: {}]
  %s9 = sld [smem:[#allocation0]]
  $region65: #{anime4k_forward.1} parent=0
    _
  %s11 = ssub.s32 1, %s9
  %s12 = scalar_select 0, %s11, %s9
  loop: start=0, step=1, limit=4
  $region2: #{anime4k_forward.1} parent=0 // loop_pre_header
    _
  $region3: #{anime4k_forward.1} parent=0 // loop_header
    %s14 = sphi 0, %s18
    %p15 = scmp.ge.s32.totalorder %s14, 4
    %s24 = sphi 0, %s26
    %s27 = sphi 0, %s24
    %s28 = sphi 0, %s27
    %s44 = sphi 0, %s28
    %s48 = sphi 0, %s48
    %s50 = sphi 0, %s48
    %s51 = sphi 0, %s50
    %s65 = sphi 0, %s51
    %s69 = sphi 0, %s69
    %s71 = sphi 0, %s69
    %s72 = sphi 0, %s71
    %s86 = sphi 0, %s72
    %s90 = sphi 0, %s90
    %s92 = sphi 0, %s90
    %s93 = sphi 0, %s92
    %s107 = sphi 0, %s93
    %s111 = sphi 0, %s111
    %s113 = sphi 0, %s111
    %s114 = sphi 0, %s113
    %s128 = sphi 0, %s114
    %s132 = sphi 0, %s132
    %s134 = sphi 0, %s132
    %s135 = sphi 0, %s134
    %s149 = sphi 0, %s135
    %s153 = sphi 0, %s153
    %s155 = sphi 0, %s153
    %s156 = sphi 0, %s155
    %s170 = sphi 0, %s156
    %s174 = sphi 0, %s174
    %s176 = sphi 0, %s174
    %s177 = sphi 0, %s176
    %s191 = sphi 0, %s177
    %s197 = sphi 0, %s199
    %s200 = sphi 0, %s197
    %s201 = sphi 0, %s200
    %s217 = sphi 0, %s201
  $region4: #{anime4k_forward.1} parent=0 // loop_header_branch
    %17 = sbr.rel (%p15) target = $region8
  $region5: #{anime4k_forward.1} parent=0 // loop_body
    %s19 = ssub.s32 %s14, 1
    %s20 = ssub.s32 %s14, 2
    %s21 = sadd.s32 %s14, 1
    %s22 = ssub.s32 %s14, %s21
    %p23 = scmp.eq.s32.totalorder %s22, 0
    %s25 = sadd.s32 %s24, 1
    %s26 = scalar_select %p23, %s24, %s25
    %p29 = pneg %p23
    %p30 = scmp.eq.s32.totalorder %s14, 1
    %p31 = por %p29, %p30
    %p32 = scmp.ne.s32.totalorder %s24, %s27
    %p33 = scmp.eq.s32.totalorder %s14, 0
    %p34 = por %p32, %p33
    %p35 = scmp.ne.s32.totalorder %s24, %s27
    %p36 = scmp.eq.s32.totalorder %s19, 1
    %p37 = por %p35, %p36
    %p38 = scmp.ne.s32.totalorder %s27, %s28
    %p39 = scmp.eq.s32.totalorder %s19, 0
    %p40 = por %p38, %p39
    %p41 = scmp.ne.s32.totalorder %s27, %s28
    %p42 = scmp.eq.s32.totalorder %s20, 1
    %p43 = por %p41, %p42
    %p45 = scmp.ne.s32.totalorder %s28, %s44
    %p46 = scmp.eq.s32.totalorder %s20, 0
    %p47 = por %p45, %p46
    %s49 = sadd.s32 %s48, 1
    %p52 = scmp.eq.s32.totalorder %s14, 1
    %p53 = scmp.ne.s32.totalorder %s48, %s50
    %p54 = scmp.eq.s32.totalorder %s14, 0
    %p55 = por %p53, %p54
    %p56 = scmp.ne.s32.totalorder %s48, %s50
    %p57 = scmp.eq.s32.totalorder %s19, 1
    %p58 = por %p56, %p57
    %p59 = scmp.ne.s32.totalorder %s50, %s51
    %p60 = scmp.eq.s32.totalorder %s19, 0
    %p61 = por %p59, %p60
    %p62 = scmp.ne.s32.totalorder %s50, %s51
    %p63 = scmp.eq.s32.totalorder %s20, 1
    %p64 = por %p62, %p63
    %p66 = scmp.ne.s32.totalorder %s51, %s65
    %p67 = scmp.eq.s32.totalorder %s20, 0
    %p68 = por %p66, %p67
    %s70 = sadd.s32 %s69, 1
    %p73 = scmp.eq.s32.totalorder %s14, 1
    %p74 = scmp.ne.s32.totalorder %s69, %s71
    %p75 = scmp.eq.s32.totalorder %s14, 0
    %p76 = por %p74, %p75
    %p77 = scmp.ne.s32.totalorder %s69, %s71
    %p78 = scmp.eq.s32.totalorder %s19, 1
    %p79 = por %p77, %p78
    %p80 = scmp.ne.s32.totalorder %s71, %s72
    %p81 = scmp.eq.s32.totalorder %s19, 0
    %p82 = por %p80, %p81
    %p83 = scmp.ne.s32.totalorder %s71, %s72
    %p84 = scmp.eq.s32.totalorder %s20, 1
    %p85 = por %p83, %p84
    %p87 = scmp.ne.s32.totalorder %s72, %s86
    %p88 = scmp.eq.s32.totalorder %s20, 0
    %p89 = por %p87, %p88
    %s91 = sadd.s32 %s90, 1
    %p94 = scmp.eq.s32.totalorder %s14, 1
    %p95 = scmp.ne.s32.totalorder %s90, %s92
    %p96 = scmp.eq.s32.totalorder %s14, 0
    %p97 = por %p95, %p96
    %p98 = scmp.ne.s32.totalorder %s90, %s92
    %p99 = scmp.eq.s32.totalorder %s19, 1
    %p100 = por %p98, %p99
    %p101 = scmp.ne.s32.totalorder %s92, %s93
    %p102 = scmp.eq.s32.totalorder %s19, 0
    %p103 = por %p101, %p102
    %p104 = scmp.ne.s32.totalorder %s92, %s93
    %p105 = scmp.eq.s32.totalorder %s20, 1
    %p106 = por %p104, %p105
    %p108 = scmp.ne.s32.totalorder %s93, %s107
    %p109 = scmp.eq.s32.totalorder %s20, 0
    %p110 = por %p108, %p109
    %s112 = sadd.s32 %s111, 1
    %p115 = scmp.eq.s32.totalorder %s14, 1
    %p116 = scmp.ne.s32.totalorder %s111, %s113
    %p117 = scmp.eq.s32.totalorder %s14, 0
    %p118 = por %p116, %p117
    %p119 = scmp.ne.s32.totalorder %s111, %s113
    %p120 = scmp.eq.s32.totalorder %s19, 1
    %p121 = por %p119, %p120
    %p122 = scmp.ne.s32.totalorder %s113, %s114
    %p123 = scmp.eq.s32.totalorder %s19, 0
    %p124 = por %p122, %p123
    %p125 = scmp.ne.s32.totalorder %s113, %s114
    %p126 = scmp.eq.s32.totalorder %s20, 1
    %p127 = por %p125, %p126
    %p129 = scmp.ne.s32.totalorder %s114, %s128
    %p130 = scmp.eq.s32.totalorder %s20, 0
    %p131 = por %p129, %p130
    %s133 = sadd.s32 %s132, 1
    %p136 = scmp.eq.s32.totalorder %s14, 1
    %p137 = scmp.ne.s32.totalorder %s132, %s134
    %p138 = scmp.eq.s32.totalorder %s14, 0
    %p139 = por %p137, %p138
    %p140 = scmp.ne.s32.totalorder %s132, %s134
    %p141 = scmp.eq.s32.totalorder %s19, 1
    %p142 = por %p140, %p141
    %p143 = scmp.ne.s32.totalorder %s134, %s135
    %p144 = scmp.eq.s32.totalorder %s19, 0
    %p145 = por %p143, %p144
    %p146 = scmp.ne.s32.totalorder %s134, %s135
    %p147 = scmp.eq.s32.totalorder %s20, 1
    %p148 = por %p146, %p147
    %p150 = scmp.ne.s32.totalorder %s135, %s149
    %p151 = scmp.eq.s32.totalorder %s20, 0
    %p152 = por %p150, %p151
    %s154 = sadd.s32 %s153, 1
    %p157 = scmp.eq.s32.totalorder %s14, 1
    %p158 = scmp.ne.s32.totalorder %s153, %s155
    %p159 = scmp.eq.s32.totalorder %s14, 0
    %p160 = por %p158, %p159
    %p161 = scmp.ne.s32.totalorder %s153, %s155
    %p162 = scmp.eq.s32.totalorder %s19, 1
    %p163 = por %p161, %p162
    %p164 = scmp.ne.s32.totalorder %s155, %s156
    %p165 = scmp.eq.s32.totalorder %s19, 0
    %p166 = por %p164, %p165
    %p167 = scmp.ne.s32.totalorder %s155, %s156
    %p168 = scmp.eq.s32.totalorder %s20, 1
    %p169 = por %p167, %p168
    %p171 = scmp.ne.s32.totalorder %s156, %s170
    %p172 = scmp.eq.s32.totalorder %s20, 0
    %p173 = por %p171, %p172
    %s175 = sadd.s32 %s174, 1
    %p178 = scmp.eq.s32.totalorder %s14, 1
    %p179 = scmp.ne.s32.totalorder %s174, %s176
    %p180 = scmp.eq.s32.totalorder %s14, 0
    %p181 = por %p179, %p180
    %p182 = scmp.ne.s32.totalorder %s174, %s176
    %p183 = scmp.eq.s32.totalorder %s19, 1
    %p184 = por %p182, %p183
    %p185 = scmp.ne.s32.totalorder %s176, %s177
    %p186 = scmp.eq.s32.totalorder %s19, 0
    %p187 = por %p185, %p186
    %p188 = scmp.ne.s32.totalorder %s176, %s177
    %p189 = scmp.eq.s32.totalorder %s20, 1
    %p190 = por %p188, %p189
    %p192 = scmp.ne.s32.totalorder %s177, %s191
    %p193 = scmp.eq.s32.totalorder %s20, 0
    %p194 = por %p192, %p193
    %s195 = ssub.s32 %s14, %s21
    %p196 = scmp.eq.s32.totalorder %s195, 0
    %s198 = sadd.s32 %s197, 1
    %s199 = scalar_select %p196, %s197, %s198
    %p202 = pneg %p196
    %p203 = scmp.eq.s32.totalorder %s14, 1
    %p204 = por %p202, %p203
    %p205 = scmp.ne.s32.totalorder %s197, %s200
    %p206 = scmp.eq.s32.totalorder %s14, 0
    %p207 = por %p205, %p206
    %p208 = scmp.ne.s32.totalorder %s197, %s200
    %p209 = scmp.eq.s32.totalorder %s19, 1
    %p210 = por %p208, %p209
    %p211 = scmp.ne.s32.totalorder %s200, %s201
    %p212 = scmp.eq.s32.totalorder %s19, 0
    %p213 = por %p211, %p212
    %p214 = scmp.ne.s32.totalorder %s200, %s201
    %p215 = scmp.eq.s32.totalorder %s20, 1
    %p216 = por %p214, %p215
    %p218 = scmp.ne.s32.totalorder %s201, %s217
    %p219 = scmp.eq.s32.totalorder %s20, 0
    %p220 = por %p218, %p219
    %p221 = scmp.le.s32.totalorder 1, %s14
    %p222 = scmp.lt.s32.totalorder %s14, 3
    %p223 = pnand %p221, %p222
    %p224 = pneg %p223
    // Predicated region
    $region9: #{anime4k_forward.1} parent=5 // pred_check
      _
    $region10: #{anime4k_forward.1} parent=5 // pred_check_branch
      %226 = sbr.rel (%p223) target = $region12
    $region11: #{anime4k_forward.1} parent=5 // pred_region
      %s227 = ssub.s32 %s14, 1
      // Predicated region
      $region13: #{anime4k_forward.1} parent=11 // pred_check
        %p228 = pneg %p61
      $region14: #{anime4k_forward.1} parent=11 // pred_check_branch
        %230 = sbr.rel (%p228) target = $region16
      $region15: #{anime4k_forward.1} parent=11 // pred_region
        _
      $region16: #{anime4k_forward.1} parent=11 // pred_fallthru
        _
      // Predicated region
      $region17: #{anime4k_forward.1} parent=11 // pred_check
        %p231 = pneg %p82
      $region18: #{anime4k_forward.1} parent=11 // pred_check_branch
        %233 = sbr.rel (%p231) target = $region20
      $region19: #{anime4k_forward.1} parent=11 // pred_region
        _
      $region20: #{anime4k_forward.1} parent=11 // pred_fallthru
        _
      // Predicated region
      $region21: #{anime4k_forward.1} parent=11 // pred_check
        %p234 = pneg %p103
      $region22: #{anime4k_forward.1} parent=11 // pred_check_branch
        %236 = sbr.rel (%p234) target = $region24
      $region23: #{anime4k_forward.1} parent=11 // pred_region
        _
      $region24: #{anime4k_forward.1} parent=11 // pred_fallthru
        _
      // Predicated region
      $region25: #{anime4k_forward.1} parent=11 // pred_check
        %p237 = pneg %p124
      $region26: #{anime4k_forward.1} parent=11 // pred_check_branch
        %239 = sbr.rel (%p237) target = $region28
      $region27: #{anime4k_forward.1} parent=11 // pred_region
        _
      $region28: #{anime4k_forward.1} parent=11 // pred_fallthru
        _
      // Predicated region
      $region29: #{anime4k_forward.1} parent=11 // pred_check
        %p240 = pneg %p145
      $region30: #{anime4k_forward.1} parent=11 // pred_check_branch
        %242 = sbr.rel (%p240) target = $region32
      $region31: #{anime4k_forward.1} parent=11 // pred_region
        _
      $region32: #{anime4k_forward.1} parent=11 // pred_fallthru
        _
      // Predicated region
      $region33: #{anime4k_forward.1} parent=11 // pred_check
        %p243 = pneg %p166
      $region34: #{anime4k_forward.1} parent=11 // pred_check_branch
        %245 = sbr.rel (%p243) target = $region36
      $region35: #{anime4k_forward.1} parent=11 // pred_region
        _
      $region36: #{anime4k_forward.1} parent=11 // pred_fallthru
        _
      // Predicated region
      $region37: #{anime4k_forward.1} parent=11 // pred_check
        %p246 = pneg %p187
      $region38: #{anime4k_forward.1} parent=11 // pred_check_branch
        %248 = sbr.rel (%p246) target = $region40
      $region39: #{anime4k_forward.1} parent=11 // pred_region
        _
      $region40: #{anime4k_forward.1} parent=11 // pred_fallthru
        _
    $region12: #{anime4k_forward.1} parent=5 // pred_fallthru
      _
    %p249 = scmp.lt.s32.totalorder %s14, 2
    // Predicated region
    $region41: #{anime4k_forward.1} parent=5 // pred_check
      %p250 = pneg %p249
    $region42: #{anime4k_forward.1} parent=5 // pred_check_branch
      %252 = sbr.rel (%p250) target = $region44
    $region43: #{anime4k_forward.1} parent=5 // pred_region
      // Predicated region
      $region45: #{anime4k_forward.1} parent=43 // pred_check
        %p253 = pneg %p34
      $region46: #{anime4k_forward.1} parent=43 // pred_check_branch
        %255 = sbr.rel (%p253) target = $region48
      $region47: #{anime4k_forward.1} parent=43 // pred_region
        %p256 = scmp.lt.s32.totalorder %s14, 1
        %s257 = scalar_select %p256, %s14, 1
        %s258 = smul.addr %s257, 3
        %s259 = smul.addr %s258, 4
        %s260 = scalar_lea.vmem %s0, %s259
      $region48: #{anime4k_forward.1} parent=43 // pred_fallthru
        _
    $region44: #{anime4k_forward.1} parent=5 // pred_fallthru
      _
    %p261 = scmp.le.s32.totalorder 1, %s14
    %p262 = scmp.lt.s32.totalorder %s14, 3
    %p263 = pnand %p261, %p262
    %p264 = pneg %p263
    // Predicated region
    $region49: #{anime4k_forward.1} parent=5 // pred_check
      _
    $region50: #{anime4k_forward.1} parent=5 // pred_check_branch
      %266 = sbr.rel (%p263) target = $region52
    $region51: #{anime4k_forward.1} parent=5 // pred_region
      %s267 = ssub.s32 %s14, 1
      %p268 = scmp.lt.s32.totalorder %s19, 1
      %s269 = scalar_select %p268, %s19, 1
      %s270 = smul.addr %s269, 3
      %s271 = smul.addr %s270, 4
      %s272 = scalar_lea.vmem %s0, %s271
      %p273 = pneg %p40
      %p274 = pneg %p37
      %p275 = pneg %p61
      %p276 = pneg %p58
      %p277 = pneg %p82
      %p278 = pneg %p79
      %p279 = pneg %p103
      %p280 = pneg %p100
      %p281 = pneg %p124
      %p282 = pneg %p121
      %p283 = pneg %p145
      %p284 = pneg %p142
      %p285 = pneg %p166
      %p286 = pneg %p163
      %p287 = pneg %p187
      %p288 = pneg %p184
      %p289 = pneg %p213
      %p290 = pneg %p210
      %p291 = scmp.lt.s32.totalorder %s19, 1
      %s292 = scalar_select %p291, %s19, 1
      %s293 = smul.addr %s292, 6
      %s294 = smul.addr %s293, 8
      %s295 = scalar_lea.vmem %s8, %s294
      %p296 = scmp.lt.s32.totalorder %s19, 1
      %s297 = scalar_select %p296, %s19, 1
      %s298 = smul.addr %s297, 3
      %s299 = smul.addr %s298, 4
      %s300 = scalar_lea.vmem %s0, %s299
      %p301 = scmp.lt.s32.totalorder %s19, 1
      %s302 = scalar_select %p301, %s19, 1
      %s303 = smul.addr %s302, 6
      %s304 = smul.addr %s303, 8
      %s305 = scalar_lea.vmem %s8, %s304
      %307 = vst [vmem:[#allocation2] sm:$0xff] 0
      %vm308 = vcmask 863232
      %309 = vst.msk [vmem:[#allocation2 + $0x8] sm:$0xf] %vm308, 0
      %v310 = vld [vmem:[%s1] sm:$0x7]
      %v311 = vld [vmem:[%s300] sm:$0x77]
      %v312 = vld [vmem:[%s300 + $0x8] sm:$0x7]
      %v314 = vlaneseq
      %v315 = vshrl.u32 %v314, 7
      %v316 = vsub.s32 0, %v315
      %v317 = vrot.slane %v310, %v316
      %v318 = vlaneseq
      %v319 = vshrl.u32 %v318, 7
      %v320 = vsub.s32 1, %v319
      %v321 = vrot.slane %v310, %v320
      %v322 = vlaneseq
      %v323 = vshrl.u32 %v322, 7
      %v324 = vsub.s32 2, %v323
      %v325 = vrot.slane %v310, %v324
      %v326 = vcombine.low %v317, %v321
      %327 = vrot.lane.b32.xlu0 %v326, 19
      %v328 = vpop.permute.xlu0 %327
      %329 = vrot.lane.b32.xlu0 %v325, 19
      %v330 = vpop.permute.xlu0 %329
      %v331 = vrot.slane %v328, 4
      %vm332 = vcmask 154624
      %v333 = vsel %vm332, %v331, %v328
      %v334 = vsel %vm332, %v331, %v330
      %v337 = vmul.f32 %v311, %v333
      %v338 = vmul.f32 %v312, %v334
      %v340 = vcombine.high %v337, %v337
      %v342 = vpack.c.bf16 %v337, %v337
      %v343 = vpack.c.bf16 %v340, %v340
      %v344 = vpack.c.bf16 %v338, %v338
      %v348 = vunpack.c.l.b16 %v342
      %v349 = vunpack.c.l.b16 %v343
      %v350 = vunpack.c.l.b16 %v344
      %v351 = vpack.c.b16 %v349, %v348
      %v352 = vpack.c.b16 %v350, %v350
      %vm355 = vcmask 1041560
      %vm356 = vsmask.f32 1280
      %vm357 = vmand %vm355, %vm356
      %vm358 = vcmask 1045508
      %vm359 = vsmask.f32 5376
      %vm360 = vmand %vm358, %vm359
      %vm361 = vmor %vm360, %vm357
      %v362 = vld [vmem:[#allocation2] sm:$0x33]
      %v363 = vsel %vm361, %v351, %v362
      %364 = vst [vmem:[#allocation2] sm:$0x33] %v363
      %vm365 = vcmask 705536
      %vm366 = vmand %vm365, %vm356
      %v367 = vld [vmem:[#allocation2 + $0x8] sm:$0x3]
      %v368 = vsel %vm366, %v352, %v367
      %369 = vst [vmem:[#allocation2 + $0x8] sm:$0x3] %v368
      %v370 = vld [vmem:[%s3] sm:$0xf]
      %v371 = vld [vmem:[%s2] sm:$0x3]
      %v372 = vld [vmem:[#allocation2] sm:$0xff]
      %v373 = vld [vmem:[#allocation2 + $0x8] sm:$0xf]
      %s374 = scalar_lea.vmem %s2, 2
      %v375 = vld [vmem:[%s374] sm:$0x3]
      %v378 = vunpack.c.l.b16 %v372
      %v379 = vunpack.c.h.b16 %v372
      %v380 = vunpack.c.l.b16 %v373
      %v381 = vpack.c.b16 %v378, %v378
      %v382 = vpack.c.b16 %v379, %v379
      %v383 = vpack.c.b16 %v380, %v380
      %384 = vrot.lane.b32.xlu0 %v381, 127
      %v385 = vpop.permute.xlu0 %384
      %386 = vrot.lane.b32.xlu0 %v382, 127
      %v387 = vpop.permute.xlu0 %386
      %388 = vrot.lane.b32.xlu0 %v383, 127
      %v389 = vpop.permute.xlu0 %388
      %vm390 = vcmask 1039360
      %v391 = vsel %vm390, %v385, %v387
      %v392 = vsel %vm390, %v387, %v389
      %vm393 = vcmask 64512
      %v395 = vsel %vm393, %v375, 0
      %vm397 = vcmask 1043456
      %v399 = vsel %vm397, %v391, 0
      %v402 = vsel %vm397, %v392, 0
      %v405 = vsel %vm397, %v389, 0
      %407 = vmatprep.subr.bf16.mxu0 %v402
      %408 = vmatpush1.bf16.msra.mxu0 %v399
      %409 = vmatprep.subr.bf16.mxu0 0
      %410 = vmatpush1.bf16.msra.mxu0 0
      %411 = vmatprep.subr.bf16.mxu0 0
      %412 = vmatpush1.bf16.msra.mxu0 0
      %413 = vmatprep.subr.bf16.mxu0 0
      %414 = vmatpush1.bf16.msra.mxu0 0
      %415 = vmatprep.subr.bf16.mxu0 0
      %416 = vmatpush1.bf16.msra.mxu0 0
      %417 = vmatprep.subr.bf16.mxu0 0
      %418 = vmatpush1.bf16.msra.mxu0 0
      %419 = vmatprep.subr.bf16.mxu0 0
      %420 = vmatpush1.bf16.msra.mxu0 0
      %421 = vmatprep.subr.bf16.mxu0 0
      %422 = vmatpush1.bf16.msra.mxu0 0
      %423 = vmatprep.subr.bf16.mxu0 0
      %424 = vmatpush1.bf16.msra.mxu0 0
      %425 = vmatprep.subr.bf16.mxu0 0
      %426 = vmatpush1.bf16.msra.mxu0 0
      %427 = vmatprep.subr.bf16.mxu0 0
      %428 = vmatpush1.bf16.msra.mxu0 0
      %429 = vmatprep.subr.bf16.mxu0 0
      %430 = vmatpush1.bf16.msra.mxu0 0
      %431 = vmatprep.subr.bf16.mxu0 0
      %432 = vmatpush1.bf16.msra.mxu0 0
      %433 = vmatprep.subr.bf16.mxu0 0
      %434 = vmatpush1.bf16.msra.mxu0 0
      %435 = vmatprep.subr.bf16.mxu0 0
      %436 = vmatpush1.bf16.msra.mxu0 0
      %437 = vmatprep.subr.bf16.mxu0 0
      %438 = vmatpush1.bf16.msra.mxu0 0
      %439 = vmatprep.mubr.bf16.mxu0 0
      %440 = vmatmul.mubr.bf16.gmra.mrb[0].mxu0 %v395
      %v441 = vpop.f32.mrb[0].mxu0
      %v442 = vadd.f32 0.0, %v441
      %v443 = vpop.f32.mrb[0].mxu0
      %v444 = vadd.f32 0.0, %v443
      %v445 = vpop.f32.mrb[0].mxu0
      %v446 = vpop.f32.mrb[0].mxu0
      %447 = vdwg.mxu0
      %448 = vmatprep.subr.bf16.mxu0 0
      %449 = vmatpush1.bf16.msra.mxu0 %v405
      %450 = vmatprep.subr.bf16.mxu0 0
      %451 = vmatpush1.bf16.msra.mxu0 0
      %452 = vmatprep.subr.bf16.mxu0 0
      %453 = vmatpush1.bf16.msra.mxu0 0
      %454 = vmatprep.subr.bf16.mxu0 0
      %455 = vmatpush1.bf16.msra.mxu0 0
      %456 = vmatprep.subr.bf16.mxu0 0
      %457 = vmatpush1.bf16.msra.mxu0 0
      %458 = vmatprep.subr.bf16.mxu0 0
      %459 = vmatpush1.bf16.msra.mxu0 0
      %460 = vmatprep.subr.bf16.mxu0 0
      %461 = vmatpush1.bf16.msra.mxu0 0
      %462 = vmatprep.subr.bf16.mxu0 0
      %463 = vmatpush1.bf16.msra.mxu0 0
      %464 = vmatprep.subr.bf16.mxu0 0
      %465 = vmatpush1.bf16.msra.mxu0 0
      %466 = vmatprep.subr.bf16.mxu0 0
      %467 = vmatpush1.bf16.msra.mxu0 0
      %468 = vmatprep.subr.bf16.mxu0 0
      %469 = vmatpush1.bf16.msra.mxu0 0
      %470 = vmatprep.subr.bf16.mxu0 0
      %471 = vmatpush1.bf16.msra.mxu0 0
      %472 = vmatprep.subr.bf16.mxu0 0
      %473 = vmatpush1.bf16.msra.mxu0 0
      %474 = vmatprep.subr.bf16.mxu0 0
      %475 = vmatpush1.bf16.msra.mxu0 0
      %476 = vmatprep.subr.bf16.mxu0 0
      %477 = vmatpush1.bf16.msra.mxu0 0
      %478 = vmatprep.subr.bf16.mxu0 0
      %479 = vmatpush1.bf16.msra.mxu0 0
      %480 = vmatprep.mubr.bf16.mxu0 0
      %481 = vmatmul.mubr.bf16.gmra.mrb[0].mxu0 %v395
      %v482 = vpop.f32.mrb[0].mxu0
      %v483 = vadd.f32 0.0, %v482
      %v484 = vpop.f32.mrb[0].mxu0
      %v485 = vpop.f32.mrb[0].mxu0
      %v486 = vpop.f32.mrb[0].mxu0
      %487 = vdwg.mxu0
      %v489 = vsel %vm393, %v371, 0
      %v492 = vsel %vm397, %v381, 0
      %v495 = vsel %vm397, %v382, 0
      %v498 = vsel %vm397, %v383, 0
      %500 = vmatprep.subr.bf16.mxu0 %v495
      %501 = vmatpush1.bf16.msra.mxu0 %v492
      %502 = vmatprep.subr.bf16.mxu0 0
      %503 = vmatpush1.bf16.msra.mxu0 0
      %504 = vmatprep.subr.bf16.mxu0 0
      %505 = vmatpush1.bf16.msra.mxu0 0
      %506 = vmatprep.subr.bf16.mxu0 0
      %507 = vmatpush1.bf16.msra.mxu0 0
      %508 = vmatprep.subr.bf16.mxu0 0
      %509 = vmatpush1.bf16.msra.mxu0 0
      %510 = vmatprep.subr.bf16.mxu0 0
      %511 = vmatpush1.bf16.msra.mxu0 0
      %512 = vmatprep.subr.bf16.mxu0 0
      %513 = vmatpush1.bf16.msra.mxu0 0
      %514 = vmatprep.subr.bf16.mxu0 0
      %515 = vmatpush1.bf16.msra.mxu0 0
      %516 = vmatprep.subr.bf16.mxu0 0
      %517 = vmatpush1.bf16.msra.mxu0 0
      %518 = vmatprep.subr.bf16.mxu0 0
      %519 = vmatpush1.bf16.msra.mxu0 0
      %520 = vmatprep.subr.bf16.mxu0 0
      %521 = vmatpush1.bf16.msra.mxu0 0
      %522 = vmatprep.subr.bf16.mxu0 0
      %523 = vmatpush1.bf16.msra.mxu0 0
      %524 = vmatprep.subr.bf16.mxu0 0
      %525 = vmatpush1.bf16.msra.mxu0 0
      %526 = vmatprep.subr.bf16.mxu0 0
      %527 = vmatpush1.bf16.msra.mxu0 0
      %528 = vmatprep.subr.bf16.mxu0 0
      %529 = vmatpush1.bf16.msra.mxu0 0
      %530 = vmatprep.subr.bf16.mxu0 0
      %531 = vmatpush1.bf16.msra.mxu0 0
      %532 = vmatprep.mubr.bf16.mxu0 0
      %533 = vmatmul.mubr.bf16.gmra.mrb[0].mxu0 %v489
      %v534 = vpop.f32.mrb[0].mxu0
      %v535 = vadd.f32 %v442, %v534
      %v536 = vpop.f32.mrb[0].mxu0
      %v537 = vadd.f32 %v444, %v536
      %v538 = vpop.f32.mrb[0].mxu0
      %v539 = vpop.f32.mrb[0].mxu0
      %540 = vdwg.mxu0
      %541 = vmatprep.subr.bf16.mxu0 0
      %542 = vmatpush1.bf16.msra.mxu0 %v498
      %543 = vmatprep.subr.bf16.mxu0 0
      %544 = vmatpush1.bf16.msra.mxu0 0
      %545 = vmatprep.subr.bf16.mxu0 0
      %546 = vmatpush1.bf16.msra.mxu0 0
      %547 = vmatprep.subr.bf16.mxu0 0
      %548 = vmatpush1.bf16.msra.mxu0 0
      %549 = vmatprep.subr.bf16.mxu0 0
      %550 = vmatpush1.bf16.msra.mxu0 0
      %551 = vmatprep.subr.bf16.mxu0 0
      %552 = vmatpush1.bf16.msra.mxu0 0
      %553 = vmatprep.subr.bf16.mxu0 0
      %554 = vmatpush1.bf16.msra.mxu0 0
      %555 = vmatprep.subr.bf16.mxu0 0
      %556 = vmatpush1.bf16.msra.mxu0 0
      %557 = vmatprep.subr.bf16.mxu0 0
      %558 = vmatpush1.bf16.msra.mxu0 0
      %559 = vmatprep.subr.bf16.mxu0 0
      %560 = vmatpush1.bf16.msra.mxu0 0
      %561 = vmatprep.subr.bf16.mxu0 0
      %562 = vmatpush1.bf16.msra.mxu0 0
      %563 = vmatprep.subr.bf16.mxu0 0
      %564 = vmatpush1.bf16.msra.mxu0 0
      %565 = vmatprep.subr.bf16.mxu0 0
      %566 = vmatpush1.bf16.msra.mxu0 0
      %567 = vmatprep.subr.bf16.mxu0 0
      %568 = vmatpush1.bf16.msra.mxu0 0
      %569 = vmatprep.subr.bf16.mxu0 0
      %570 = vmatpush1.bf16.msra.mxu0 0
      %571 = vmatprep.subr.bf16.mxu0 0
      %572 = vmatpush1.bf16.msra.mxu0 0
      %573 = vmatprep.mubr.bf16.mxu0 0
      %574 = vmatmul.mubr.bf16.gmra.mrb[0].mxu0 %v489
      %v575 = vpop.f32.mrb[0].mxu0
      %v576 = vadd.f32 %v483, %v575
      %v577 = vpop.f32.mrb[0].mxu0
      %v578 = vpop.f32.mrb[0].mxu0
      %v579 = vpop.f32.mrb[0].mxu0
      %580 = vdwg.mxu0
      %s581 = scalar_lea.vmem %s2, 4
      %v582 = vld [vmem:[%s581] sm:$0x3]
      %583 = vrot.lane.b32.xlu0 %v381, 126
      %v584 = vpop.permute.xlu0 %583
      %585 = vrot.lane.b32.xlu0 %v382, 126
      %v586 = vpop.permute.xlu0 %585
      %587 = vrot.lane.b32.xlu0 %v383, 126
      %v588 = vpop.permute.xlu0 %587
      %vm589 = vcmask 1031168
      %v590 = vsel %vm589, %v584, %v586
      %v591 = vsel %vm589, %v586, %v588
      %v593 = vsel %vm393, %v582, 0
      %v596 = vsel %vm397, %v590, 0
      %v599 = vsel %vm397, %v591, 0
      %v602 = vsel %vm397, %v588, 0
      %604 = vmatprep.subr.bf16.mxu0 %v599
      %605 = vmatpush1.bf16.msra.mxu0 %v596
      %606 = vmatprep.subr.bf16.mxu0 0
      %607 = vmatpush1.bf16.msra.mxu0 0
      %608 = vmatprep.subr.bf16.mxu0 0
      %609 = vmatpush1.bf16.msra.mxu0 0
      %610 = vmatprep.subr.bf16.mxu0 0
      %611 = vmatpush1.bf16.msra.mxu0 0
      %612 = vmatprep.subr.bf16.mxu0 0
      %613 = vmatpush1.bf16.msra.mxu0 0
      %614 = vmatprep.subr.bf16.mxu0 0
      %615 = vmatpush1.bf16.msra.mxu0 0
      %616 = vmatprep.subr.bf16.mxu0 0
      %617 = vmatpush1.bf16.msra.mxu0 0
      %618 = vmatprep.subr.bf16.mxu0 0
      %619 = vmatpush1.bf16.msra.mxu0 0
      %620 = vmatprep.subr.bf16.mxu0 0
      %621 = vmatpush1.bf16.msra.mxu0 0
      %622 = vmatprep.subr.bf16.mxu0 0
      %623 = vmatpush1.bf16.msra.mxu0 0
      %624 = vmatprep.subr.bf16.mxu0 0
      %625 = vmatpush1.bf16.msra.mxu0 0
      %626 = vmatprep.subr.bf16.mxu0 0
      %627 = vmatpush1.bf16.msra.mxu0 0
      %628 = vmatprep.subr.bf16.mxu0 0
      %629 = vmatpush1.bf16.msra.mxu0 0
      %630 = vmatprep.subr.bf16.mxu0 0
      %631 = vmatpush1.bf16.msra.mxu0 0
      %632 = vmatprep.subr.bf16.mxu0 0
      %633 = vmatpush1.bf16.msra.mxu0 0
      %634 = vmatprep.subr.bf16.mxu0 0
      %635 = vmatpush1.bf16.msra.mxu0 0
      %636 = vmatprep.mubr.bf16.mxu0 0
      %637 = vmatmul.mubr.bf16.gmra.mrb[0].mxu0 %v593
      %v638 = vpop.f32.mrb[0].mxu0
      %v639 = vadd.f32 0.0, %v638
      %v640 = vpop.f32.mrb[0].mxu0
      %v641 = vadd.f32 0.0, %v640
      %v642 = vpop.f32.mrb[0].mxu0
      %v643 = vpop.f32.mrb[0].mxu0
      %644 = vdwg.mxu0
      %645 = vmatprep.subr.bf16.mxu0 0
      %646 = vmatpush1.bf16.msra.mxu0 %v602
      %647 = vmatprep.subr.bf16.mxu0 0
      %648 = vmatpush1.bf16.msra.mxu0 0
      %649 = vmatprep.subr.bf16.mxu0 0
      %650 = vmatpush1.bf16.msra.mxu0 0
      %651 = vmatprep.subr.bf16.mxu0 0
      %652 = vmatpush1.bf16.msra.mxu0 0
      %653 = vmatprep.subr.bf16.mxu0 0
      %654 = vmatpush1.bf16.msra.mxu0 0
      %655 = vmatprep.subr.bf16.mxu0 0
      %656 = vmatpush1.bf16.msra.mxu0 0
      %657 = vmatprep.subr.bf16.mxu0 0
      %658 = vmatpush1.bf16.msra.mxu0 0
      %659 = vmatprep.subr.bf16.mxu0 0
      %660 = vmatpush1.bf16.msra.mxu0 0
      %661 = vmatprep.subr.bf16.mxu0 0
      %662 = vmatpush1.bf16.msra.mxu0 0
      %663 = vmatprep.subr.bf16.mxu0 0
      %664 = vmatpush1.bf16.msra.mxu0 0
      %665 = vmatprep.subr.bf16.mxu0 0
      %666 = vmatpush1.bf16.msra.mxu0 0
      %667 = vmatprep.subr.bf16.mxu0 0
      %668 = vmatpush1.bf16.msra.mxu0 0
      %669 = vmatprep.subr.bf16.mxu0 0
      %670 = vmatpush1.bf16.msra.mxu0 0
      %671 = vmatprep.subr.bf16.mxu0 0
      %672 = vmatpush1.bf16.msra.mxu0 0
      %673 = vmatprep.subr.bf16.mxu0 0
      %674 = vmatpush1.bf16.msra.mxu0 0
      %675 = vmatprep.subr.bf16.mxu0 0
      %676 = vmatpush1.bf16.msra.mxu0 0
      %677 = vmatprep.mubr.bf16.mxu0 0
      %678 = vmatmul.mubr.bf16.gmra.mrb[0].mxu0 %v593
      %v679 = vpop.f32.mrb[0].mxu0
      %v680 = vadd.f32 0.0, %v679
      %v681 = vpop.f32.mrb[0].mxu0
      %v682 = vpop.f32.mrb[0].mxu0
      %v683 = vpop.f32.mrb[0].mxu0
      %684 = vdwg.mxu0
      %v685 = vadd.f32 %v535, %v639
      %v686 = vadd.f32 %v537, %v641
      %v687 = vadd.f32 %v576, %v680
      %s688 = scalar_lea.vmem %s2, 6
      %v689 = vld [vmem:[%s688] sm:$0x3]
      %690 = vrot.lane.b32.xlu0 %v381, 110
      %v691 = vpop.permute.xlu0 %690
      %692 = vrot.lane.b32.xlu0 %v382, 110
      %v693 = vpop.permute.xlu0 %692
      %694 = vrot.lane.b32.xlu0 %v383, 110
      %v695 = vpop.permute.xlu0 %694
      %vm696 = vcmask 900096
      %v697 = vsel %vm696, %v691, %v693
      %v698 = vsel %vm696, %v693, %v695
      %v700 = vsel %vm393, %v689, 0
      %v703 = vsel %vm397, %v697, 0
      %v706 = vsel %vm397, %v698, 0
      %v709 = vsel %vm397, %v695, 0
      %711 = vmatprep.subr.bf16.mxu0 %v706
      %712 = vmatpush1.bf16.msra.mxu0 %v703
      %713 = vmatprep.subr.bf16.mxu0 0
      %714 = vmatpush1.bf16.msra.mxu0 0
      %715 = vmatprep.subr.bf16.mxu0 0
      %716 = vmatpush1.bf16.msra.mxu0 0
      %717 = vmatprep.subr.bf16.mxu0 0
      %718 = vmatpush1.bf16.msra.mxu0 0
      %719 = vmatprep.subr.bf16.mxu0 0
      %720 = vmatpush1.bf16.msra.mxu0 0
      %721 = vmatprep.subr.bf16.mxu0 0
      %722 = vmatpush1.bf16.msra.mxu0 0
      %723 = vmatprep.subr.bf16.mxu0 0
      %724 = vmatpush1.bf16.msra.mxu0 0
      %725 = vmatprep.subr.bf16.mxu0 0
      %726 = vmatpush1.bf16.msra.mxu0 0
      %727 = vmatprep.subr.bf16.mxu0 0
      %728 = vmatpush1.bf16.msra.mxu0 0
      %729 = vmatprep.subr.bf16.mxu0 0
      %730 = vmatpush1.bf16.msra.mxu0 0
      %731 = vmatprep.subr.bf16.mxu0 0
      %732 = vmatpush1.bf16.msra.mxu0 0
      %733 = vmatprep.subr.bf16.mxu0 0
      %734 = vmatpush1.bf16.msra.mxu0 0
      %735 = vmatprep.subr.bf16.mxu0 0
      %736 = vmatpush1.bf16.msra.mxu0 0
      %737 = vmatprep.subr.bf16.mxu0 0
      %738 = vmatpush1.bf16.msra.mxu0 0
      %739 = vmatprep.subr.bf16.mxu0 0
      %740 = vmatpush1.bf16.msra.mxu0 0
      %741 = vmatprep.subr.bf16.mxu0 0
      %742 = vmatpush1.bf16.msra.mxu0 0
      %743 = vmatprep.mubr.bf16.mxu0 0
      %744 = vmatmul.mubr.bf16.gmra.mrb[0].mxu0 %v700
      %v745 = vpop.f32.mrb[0].mxu0
      %v746 = vadd.f32 0.0, %v745
      %v747 = vpop.f32.mrb[0].mxu0
      %v748 = vadd.f32 0.0, %v747
      %v749 = vpop.f32.mrb[0].mxu0
      %v750 = vpop.f32.mrb[0].mxu0
      %751 = vdwg.mxu0
      %752 = vmatprep.subr.bf16.mxu0 0
      %753 = vmatpush1.bf16.msra.mxu0 %v709
      %754 = vmatprep.subr.bf16.mxu0 0
      %755 = vmatpush1.bf16.msra.mxu0 0
      %756 = vmatprep.subr.bf16.mxu0 0
      %757 = vmatpush1.bf16.msra.mxu0 0
      %758 = vmatprep.subr.bf16.mxu0 0
      %759 = vmatpush1.bf16.msra.mxu0 0
      %760 = vmatprep.subr.bf16.mxu0 0
      %761 = vmatpush1.bf16.msra.mxu0 0
      %762 = vmatprep.subr.bf16.mxu0 0
      %763 = vmatpush1.bf16.msra.mxu0 0
      %764 = vmatprep.subr.bf16.mxu0 0
      %765 = vmatpush1.bf16.msra.mxu0 0
      %766 = vmatprep.subr.bf16.mxu0 0
      %767 = vmatpush1.bf16.msra.mxu0 0
      %768 = vmatprep.subr.bf16.mxu0 0
      %769 = vmatpush1.bf16.msra.mxu0 0
      %770 = vmatprep.subr.bf16.mxu0 0
      %771 = vmatpush1.bf16.msra.mxu0 0
      %772 = vmatprep.subr.bf16.mxu0 0
      %773 = vmatpush1.bf16.msra.mxu0 0
      %774 = vmatprep.subr.bf16.mxu0 0
      %775 = vmatpush1.bf16.msra.mxu0 0
      %776 = vmatprep.subr.bf16.mxu0 0
      %777 = vmatpush1.bf16.msra.mxu0 0
      %778 = vmatprep.subr.bf16.mxu0 0
      %779 = vmatpush1.bf16.msra.mxu0 0
      %780 = vmatprep.subr.bf16.mxu0 0
      %781 = vmatpush1.bf16.msra.mxu0 0
      %782 = vmatprep.subr.bf16.mxu0 0
      %783 = vmatpush1.bf16.msra.mxu0 0
      %784 = vmatprep.mubr.bf16.mxu0 0
      %785 = vmatmul.mubr.bf16.gmra.mrb[0].mxu0 %v700
      %v786 = vpop.f32.mrb[0].mxu0
      %v787 = vadd.f32 0.0, %v786
      %v788 = vpop.f32.mrb[0].mxu0
      %v789 = vpop.f32.mrb[0].mxu0
      %v790 = vpop.f32.mrb[0].mxu0
      %791 = vdwg.mxu0
      %v792 = vadd.f32 %v685, %v746
      %v793 = vadd.f32 %v686, %v748
      %v794 = vadd.f32 %v687, %v787
      %s795 = scalar_lea.vmem %s2, 8
      %v796 = vld [vmem:[%s795] sm:$0x3]
      %797 = vrot.lane.b32.xlu0 %v381, 109
      %v798 = vpop.permute.xlu0 %797
      %799 = vrot.lane.b32.xlu0 %v382, 109
      %v800 = vpop.permute.xlu0 %799
      %801 = vrot.lane.b32.xlu0 %v383, 109
      %v802 = vpop.permute.xlu0 %801
      %vm803 = vcmask 891904
      %v804 = vsel %vm803, %v798, %v800
      %v805 = vsel %vm803, %v800, %v802
      %v807 = vsel %vm393, %v796, 0
      %v810 = vsel %vm397, %v804, 0
      %v813 = vsel %vm397, %v805, 0
      %v816 = vsel %vm397, %v802, 0
      %818 = vmatprep.subr.bf16.mxu0 %v813
      %819 = vmatpush1.bf16.msra.mxu0 %v810
      %820 = vmatprep.subr.bf16.mxu0 0
      %821 = vmatpush1.bf16.msra.mxu0 0
      %822 = vmatprep.subr.bf16.mxu0 0
      %823 = vmatpush1.bf16.msra.mxu0 0
      %824 = vmatprep.subr.bf16.mxu0 0
      %825 = vmatpush1.bf16.msra.mxu0 0
      %826 = vmatprep.subr.bf16.mxu0 0
      %827 = vmatpush1.bf16.msra.mxu0 0
      %828 = vmatprep.subr.bf16.mxu0 0
      %829 = vmatpush1.bf16.msra.mxu0 0
      %830 = vmatprep.subr.bf16.mxu0 0
      %831 = vmatpush1.bf16.msra.mxu0 0
      %832 = vmatprep.subr.bf16.mxu0 0
      %833 = vmatpush1.bf16.msra.mxu0 0
      %834 = vmatprep.subr.bf16.mxu0 0
      %835 = vmatpush1.bf16.msra.mxu0 0
      %836 = vmatprep.subr.bf16.mxu0 0
      %837 = vmatpush1.bf16.msra.mxu0 0
      %838 = vmatprep.subr.bf16.mxu0 0
      %839 = vmatpush1.bf16.msra.mxu0 0
      %840 = vmatprep.subr.bf16.mxu0 0
      %841 = vmatpush1.bf16.msra.mxu0 0
      %842 = vmatprep.subr.bf16.mxu0 0
      %843 = vmatpush1.bf16.msra.mxu0 0
      %844 = vmatprep.subr.bf16.mxu0 0
      %845 = vmatpush1.bf16.msra.mxu0 0
      %846 = vmatprep.subr.bf16.mxu0 0
      %847 = vmatpush1.bf16.msra.mxu0 0
      %848 = vmatprep.subr.bf16.mxu0 0
      %849 = vmatpush1.bf16.msra.mxu0 0
      %850 = vmatprep.mubr.bf16.mxu0 0
      %851 = vmatmul.mubr.bf16.gmra.mrb[0].mxu0 %v807
      %v852 = vpop.f32.mrb[0].mxu0
      %v853 = vadd.f32 0.0, %v852
      %v854 = vpop.f32.mrb[0].mxu0
      %v855 = vadd.f32 0.0, %v854
      %v856 = vpop.f32.mrb[0].mxu0
      %v857 = vpop.f32.mrb[0].mxu0
      %858 = vdwg.mxu0
      %859 = vmatprep.subr.bf16.mxu0 0
      %860 = vmatpush1.bf16.msra.mxu0 %v816
      %861 = vmatprep.subr.bf16.mxu0 0
      %862 = vmatpush1.bf16.msra.mxu0 0
      %863 = vmatprep.subr.bf16.mxu0 0
      %864 = vmatpush1.bf16.msra.mxu0 0
      %865 = vmatprep.subr.bf16.mxu0 0
      %866 = vmatpush1.bf16.msra.mxu0 0
      %867 = vmatprep.subr.bf16.mxu0 0
      %868 = vmatpush1.bf16.msra.mxu0 0
      %869 = vmatprep.subr.bf16.mxu0 0
      %870 = vmatpush1.bf16.msra.mxu0 0
      %871 = vmatprep.subr.bf16.mxu0 0
      %872 = vmatpush1.bf16.msra.mxu0 0
      %873 = vmatprep.subr.bf16.mxu0 0
      %874 = vmatpush1.bf16.msra.mxu0 0
      %875 = vmatprep.subr.bf16.mxu0 0
      %876 = vmatpush1.bf16.msra.mxu0 0
      %877 = vmatprep.subr.bf16.mxu0 0
      %878 = vmatpush1.bf16.msra.mxu0 0
      %879 = vmatprep.subr.bf16.mxu0 0
      %880 = vmatpush1.bf16.msra.mxu0 0
      %881 = vmatprep.subr.bf16.mxu0 0
      %882 = vmatpush1.bf16.msra.mxu0 0
      %883 = vmatprep.subr.bf16.mxu0 0
      %884 = vmatpush1.bf16.msra.mxu0 0
      %885 = vmatprep.subr.bf16.mxu0 0
      %886 = vmatpush1.bf16.msra.mxu0 0
      %887 = vmatprep.subr.bf16.mxu0 0
      %888 = vmatpush1.bf16.msra.mxu0 0
      %889 = vmatprep.subr.bf16.mxu0 0
      %890 = vmatpush1.bf16.msra.mxu0 0
      %891 = vmatprep.mubr.bf16.mxu0 0
      %892 = vmatmul.mubr.bf16.gmra.mrb[0].mxu0 %v807
      %v893 = vpop.f32.mrb[0].mxu0
      %v894 = vadd.f32 0.0, %v893
      %v895 = vpop.f32.mrb[0].mxu0
      %v896 = vpop.f32.mrb[0].mxu0
      %v897 = vpop.f32.mrb[0].mxu0
      %898 = vdwg.mxu0
      %v899 = vadd.f32 %v792, %v853
      %v900 = vadd.f32 %v793, %v855
      %v901 = vadd.f32 %v794, %v894
      %s902 = scalar_lea.vmem %s2, 10
      %v903 = vld [vmem:[%s902] sm:$0x3]
      %904 = vrot.lane.b32.xlu0 %v381, 108
      %v905 = vpop.permute.xlu0 %904
      %906 = vrot.lane.b32.xlu0 %v382, 108
      %v907 = vpop.permute.xlu0 %906
      %908 = vrot.lane.b32.xlu0 %v383, 108
      %v909 = vpop.permute.xlu0 %908
      %vm910 = vcmask 883712
      %v911 = vsel %vm910, %v905, %v907
      %v912 = vsel %vm910, %v907, %v909
      %v914 = vsel %vm393, %v903, 0
      %v917 = vsel %vm397, %v911, 0
      %v920 = vsel %vm397, %v912, 0
      %v923 = vsel %vm397, %v909, 0
      %925 = vmatprep.subr.bf16.mxu0 %v920
      %926 = vmatpush1.bf16.msra.mxu0 %v917
      %927 = vmatprep.subr.bf16.mxu0 0
      %928 = vmatpush1.bf16.msra.mxu0 0
      %929 = vmatprep.subr.bf16.mxu0 0
      %930 = vmatpush1.bf16.msra.mxu0 0
      %931 = vmatprep.subr.bf16.mxu0 0
      %932 = vmatpush1.bf16.msra.mxu0 0
      %933 = vmatprep.subr.bf16.mxu0 0
      %934 = vmatpush1.bf16.msra.mxu0 0
      %935 = vmatprep.subr.bf16.mxu0 0
      %936 = vmatpush1.bf16.msra.mxu0 0
      %937 = vmatprep.subr.bf16.mxu0 0
      %938 = vmatpush1.bf16.msra.mxu0 0
      %939 = vmatprep.subr.bf16.mxu0 0
      %940 = vmatpush1.bf16.msra.mxu0 0
      %941 = vmatprep.subr.bf16.mxu0 0
      %942 = vmatpush1.bf16.msra.mxu0 0
      %943 = vmatprep.subr.bf16.mxu0 0
      %944 = vmatpush1.bf16.msra.mxu0 0
      %945 = vmatprep.subr.bf16.mxu0 0
      %946 = vmatpush1.bf16.msra.mxu0 0
      %947 = vmatprep.subr.bf16.mxu0 0
      %948 = vmatpush1.bf16.msra.mxu0 0
      %949 = vmatprep.subr.bf16.mxu0 0
      %950 = vmatpush1.bf16.msra.mxu0 0
      %951 = vmatprep.subr.bf16.mxu0 0
      %952 = vmatpush1.bf16.msra.mxu0 0
      %953 = vmatprep.subr.bf16.mxu0 0
      %954 = vmatpush1.bf16.msra.mxu0 0
      %955 = vmatprep.subr.bf16.mxu0 0
      %956 = vmatpush1.bf16.msra.mxu0 0
      %957 = vmatprep.mubr.bf16.mxu0 0
      %958 = vmatmul.mubr.bf16.gmra.mrb[0].mxu0 %v914
      %v959 = vpop.f32.mrb[0].mxu0
      %v960 = vadd.f32 0.0, %v959
      %v961 = vpop.f32.mrb[0].mxu0
      %v962 = vadd.f32 0.0, %v961
      %v963 = vpop.f32.mrb[0].mxu0
      %v964 = vpop.f32.mrb[0].mxu0
      %965 = vdwg.mxu0
      %966 = vmatprep.subr.bf16.mxu0 0
      %967 = vmatpush1.bf16.msra.mxu0 %v923
      %968 = vmatprep.subr.bf16.mxu0 0
      %969 = vmatpush1.bf16.msra.mxu0 0
      %970 = vmatprep.subr.bf16.mxu0 0
      %971 = vmatpush1.bf16.msra.mxu0 0
      %972 = vmatprep.subr.bf16.mxu0 0
      %973 = vmatpush1.bf16.msra.mxu0 0
      %974 = vmatprep.subr.bf16.mxu0 0
      %975 = vmatpush1.bf16.msra.mxu0 0
      %976 = vmatprep.subr.bf16.mxu0 0
      %977 = vmatpush1.bf16.msra.mxu0 0
      %978 = vmatprep.subr.bf16.mxu0 0
      %979 = vmatpush1.bf16.msra.mxu0 0
      %980 = vmatprep.subr.bf16.mxu0 0
      %981 = vmatpush1.bf16.msra.mxu0 0
      %982 = vmatprep.subr.bf16.mxu0 0
      %983 = vmatpush1.bf16.msra.mxu0 0
      %984 = vmatprep.subr.bf16.mxu0 0
      %985 = vmatpush1.bf16.msra.mxu0 0
      %986 = vmatprep.subr.bf16.mxu0 0
      %987 = vmatpush1.bf16.msra.mxu0 0
      %988 = vmatprep.subr.bf16.mxu0 0
      %989 = vmatpush1.bf16.msra.mxu0 0
      %990 = vmatprep.subr.bf16.mxu0 0
      %991 = vmatpush1.bf16.msra.mxu0 0
      %992 = vmatprep.subr.bf16.mxu0 0
      %993 = vmatpush1.bf16.msra.mxu0 0
      %994 = vmatprep.subr.bf16.mxu0 0
      %995 = vmatpush1.bf16.msra.mxu0 0
      %996 = vmatprep.subr.bf16.mxu0 0
      %997 = vmatpush1.bf16.msra.mxu0 0
      %998 = vmatprep.mubr.bf16.mxu0 0
      %999 = vmatmul.mubr.bf16.gmra.mrb[0].mxu0 %v914
      %v1000 = vpop.f32.mrb[0].mxu0
      %v1001 = vadd.f32 0.0, %v1000
      %v1002 = vpop.f32.mrb[0].mxu0
      %v1003 = vpop.f32.mrb[0].mxu0
      %v1004 = vpop.f32.mrb[0].mxu0
      %1005 = vdwg.mxu0
      %v1006 = vadd.f32 %v899, %v960
      %v1007 = vadd.f32 %v900, %v962
      %v1008 = vadd.f32 %v901, %v1001
      %s1009 = scalar_lea.vmem %s2, 12
      %v1010 = vld [vmem:[%s1009] sm:$0x3]
      %1011 = vrot.lane.b32.xlu0 %v381, 92
      %v1012 = vpop.permute.xlu0 %1011
      %1013 = vrot.lane.b32.xlu0 %v382, 92
      %v1014 = vpop.permute.xlu0 %1013
      %1015 = vrot.lane.b32.xlu0 %v383, 92
      %v1016 = vpop.permute.xlu0 %1015
      %vm1017 = vcmask 752640
      %v1018 = vsel %vm1017, %v1012, %v1014
      %v1019 = vsel %vm1017, %v1014, %v1016
      %v1021 = vsel %vm393, %v1010, 0
      %v1024 = vsel %vm397, %v1018, 0
      %v1027 = vsel %vm397, %v1019, 0
      %v1030 = vsel %vm397, %v1016, 0
      %1032 = vmatprep.subr.bf16.mxu0 %v1027
      %1033 = vmatpush1.bf16.msra.mxu0 %v1024
      %1034 = vmatprep.subr.bf16.mxu0 0
      %1035 = vmatpush1.bf16.msra.mxu0 0
      %1036 = vmatprep.subr.bf16.mxu0 0
      %1037 = vmatpush1.bf16.msra.mxu0 0
      %1038 = vmatprep.subr.bf16.mxu0 0
      %1039 = vmatpush1.bf16.msra.mxu0 0
      %1040 = vmatprep.subr.bf16.mxu0 0
      %1041 = vmatpush1.bf16.msra.mxu0 0
      %1042 = vmatprep.subr.bf16.mxu0 0
      %1043 = vmatpush1.bf16.msra.mxu0 0
      %1044 = vmatprep.subr.bf16.mxu0 0
      %1045 = vmatpush1.bf16.msra.mxu0 0
      %1046 = vmatprep.subr.bf16.mxu0 0
      %1047 = vmatpush1.bf16.msra.mxu0 0
      %1048 = vmatprep.subr.bf16.mxu0 0
      %1049 = vmatpush1.bf16.msra.mxu0 0
      %1050 = vmatprep.subr.bf16.mxu0 0
      %1051 = vmatpush1.bf16.msra.mxu0 0
      %1052 = vmatprep.subr.bf16.mxu0 0
      %1053 = vmatpush1.bf16.msra.mxu0 0
      %1054 = vmatprep.subr.bf16.mxu0 0
      %1055 = vmatpush1.bf16.msra.mxu0 0
      %1056 = vmatprep.subr.bf16.mxu0 0
      %1057 = vmatpush1.bf16.msra.mxu0 0
      %1058 = vmatprep.subr.bf16.mxu0 0
      %1059 = vmatpush1.bf16.msra.mxu0 0
      %1060 = vmatprep.subr.bf16.mxu0 0
      %1061 = vmatpush1.bf16.msra.mxu0 0
      %1062 = vmatprep.subr.bf16.mxu0 0
      %1063 = vmatpush1.bf16.msra.mxu0 0
      %1064 = vmatprep.mubr.bf16.mxu0 0
      %1065 = vmatmul.mubr.bf16.gmra.mrb[0].mxu0 %v1021
      %v1066 = vpop.f32.mrb[0].mxu0
      %v1067 = vadd.f32 0.0, %v1066
      %v1068 = vpop.f32.mrb[0].mxu0
      %v1069 = vadd.f32 0.0, %v1068
      %v1070 = vpop.f32.mrb[0].mxu0
      %v1071 = vpop.f32.mrb[0].mxu0
      %1072 = vdwg.mxu0
      %1073 = vmatprep.subr.bf16.mxu0 0
      %1074 = vmatpush1.bf16.msra.mxu0 %v1030
      %1075 = vmatprep.subr.bf16.mxu0 0
      %1076 = vmatpush1.bf16.msra.mxu0 0
      %1077 = vmatprep.subr.bf16.mxu0 0
      %1078 = vmatpush1.bf16.msra.mxu0 0
      %1079 = vmatprep.subr.bf16.mxu0 0
      %1080 = vmatpush1.bf16.msra.mxu0 0
      %1081 = vmatprep.subr.bf16.mxu0 0
      %1082 = vmatpush1.bf16.msra.mxu0 0
      %1083 = vmatprep.subr.bf16.mxu0 0
      %1084 = vmatpush1.bf16.msra.mxu0 0
      %1085 = vmatprep.subr.bf16.mxu0 0
      %1086 = vmatpush1.bf16.msra.mxu0 0
      %1087 = vmatprep.subr.bf16.mxu0 0
      %1088 = vmatpush1.bf16.msra.mxu0 0
      %1089 = vmatprep.subr.bf16.mxu0 0
      %1090 = vmatpush1.bf16.msra.mxu0 0
      %1091 = vmatprep.subr.bf16.mxu0 0
      %1092 = vmatpush1.bf16.msra.mxu0 0
      %1093 = vmatprep.subr.bf16.mxu0 0
      %1094 = vmatpush1.bf16.msra.mxu0 0
      %1095 = vmatprep.subr.bf16.mxu0 0
      %1096 = vmatpush1.bf16.msra.mxu0 0
      %1097 = vmatprep.subr.bf16.mxu0 0
      %1098 = vmatpush1.bf16.msra.mxu0 0
      %1099 = vmatprep.subr.bf16.mxu0 0
      %1100 = vmatpush1.bf16.msra.mxu0 0
      %1101 = vmatprep.subr.bf16.mxu0 0
      %1102 = vmatpush1.bf16.msra.mxu0 0
      %1103 = vmatprep.subr.bf16.mxu0 0
      %1104 = vmatpush1.bf16.msra.mxu0 0
      %1105 = vmatprep.mubr.bf16.mxu0 0
      %1106 = vmatmul.mubr.bf16.gmra.mrb[0].mxu0 %v1021
      %v1107 = vpop.f32.mrb[0].mxu0
      %v1108 = vadd.f32 0.0, %v1107
      %v1109 = vpop.f32.mrb[0].mxu0
      %v1110 = vpop.f32.mrb[0].mxu0
      %v1111 = vpop.f32.mrb[0].mxu0
      %1112 = vdwg.mxu0
      %v1113 = vadd.f32 %v1006, %v1067
      %v1114 = vadd.f32 %v1007, %v1069
      %v1115 = vadd.f32 %v1008, %v1108
      %s1116 = scalar_lea.vmem %s2, 14
      %v1117 = vld [vmem:[%s1116] sm:$0x3]
      %1118 = vrot.lane.b32.xlu0 %v381, 91
      %v1119 = vpop.permute.xlu0 %1118
      %1120 = vrot.lane.b32.xlu0 %v382, 91
      %v1121 = vpop.permute.xlu0 %1120
      %1122 = vrot.lane.b32.xlu0 %v383, 91
      %v1123 = vpop.permute.xlu0 %1122
      %vm1124 = vcmask 744448
      %v1125 = vsel %vm1124, %v1119, %v1121
      %v1126 = vsel %vm1124, %v1121, %v1123
      %v1128 = vsel %vm393, %v1117, 0
      %v1131 = vsel %vm397, %v1125, 0
      %v1134 = vsel %vm397, %v1126, 0
      %v1137 = vsel %vm397, %v1123, 0
      %1139 = vmatprep.subr.bf16.mxu0 %v1134
      %1140 = vmatpush1.bf16.msra.mxu0 %v1131
      %1141 = vmatprep.subr.bf16.mxu0 0
      %1142 = vmatpush1.bf16.msra.mxu0 0
      %1143 = vmatprep.subr.bf16.mxu0 0
      %1144 = vmatpush1.bf16.msra.mxu0 0
      %1145 = vmatprep.subr.bf16.mxu0 0
      %1146 = vmatpush1.bf16.msra.mxu0 0
      %1147 = vmatprep.subr.bf16.mxu0 0
      %1148 = vmatpush1.bf16.msra.mxu0 0
      %1149 = vmatprep.subr.bf16.mxu0 0
      %1150 = vmatpush1.bf16.msra.mxu0 0
      %1151 = vmatprep.subr.bf16.mxu0 0
      %1152 = vmatpush1.bf16.msra.mxu0 0
      %1153 = vmatprep.subr.bf16.mxu0 0
      %1154 = vmatpush1.bf16.msra.mxu0 0
      %1155 = vmatprep.subr.bf16.mxu0 0
      %1156 = vmatpush1.bf16.msra.mxu0 0
      %1157 = vmatprep.subr.bf16.mxu0 0
      %1158 = vmatpush1.bf16.msra.mxu0 0
      %1159 = vmatprep.subr.bf16.mxu0 0
      %1160 = vmatpush1.bf16.msra.mxu0 0
      %1161 = vmatprep.subr.bf16.mxu0 0
      %1162 = vmatpush1.bf16.msra.mxu0 0
      %1163 = vmatprep.subr.bf16.mxu0 0
      %1164 = vmatpush1.bf16.msra.mxu0 0
      %1165 = vmatprep.subr.bf16.mxu0 0
      %1166 = vmatpush1.bf16.msra.mxu0 0
      %1167 = vmatprep.subr.bf16.mxu0 0
      %1168 = vmatpush1.bf16.msra.mxu0 0
      %1169 = vmatprep.subr.bf16.mxu0 0
      %1170 = vmatpush1.bf16.msra.mxu0 0
      %1171 = vmatprep.mubr.bf16.mxu0 0
      %1172 = vmatmul.mubr.bf16.gmra.mrb[0].mxu0 %v1128
      %v1173 = vpop.f32.mrb[0].mxu0
      %v1174 = vadd.f32 0.0, %v1173
      %v1175 = vpop.f32.mrb[0].mxu0
      %v1176 = vadd.f32 0.0, %v1175
      %v1177 = vpop.f32.mrb[0].mxu0
      %v1178 = vpop.f32.mrb[0].mxu0
      %1179 = vdwg.mxu0
      %1180 = vmatprep.subr.bf16.mxu0 0
      %1181 = vmatpush1.bf16.msra.mxu0 %v1137
      %1182 = vmatprep.subr.bf16.mxu0 0
      %1183 = vmatpush1.bf16.msra.mxu0 0
      %1184 = vmatprep.subr.bf16.mxu0 0
      %1185 = vmatpush1.bf16.msra.mxu0 0
      %1186 = vmatprep.subr.bf16.mxu0 0
      %1187 = vmatpush1.bf16.msra.mxu0 0
      %1188 = vmatprep.subr.bf16.mxu0 0
      %1189 = vmatpush1.bf16.msra.mxu0 0
      %1190 = vmatprep.subr.bf16.mxu0 0
      %1191 = vmatpush1.bf16.msra.mxu0 0
      %1192 = vmatprep.subr.bf16.mxu0 0
      %1193 = vmatpush1.bf16.msra.mxu0 0
      %1194 = vmatprep.subr.bf16.mxu0 0
      %1195 = vmatpush1.bf16.msra.mxu0 0
      %1196 = vmatprep.subr.bf16.mxu0 0
      %1197 = vmatpush1.bf16.msra.mxu0 0
      %1198 = vmatprep.subr.bf16.mxu0 0
      %1199 = vmatpush1.bf16.msra.mxu0 0
      %1200 = vmatprep.subr.bf16.mxu0 0
      %1201 = vmatpush1.bf16.msra.mxu0 0
      %1202 = vmatprep.subr.bf16.mxu0 0
      %1203 = vmatpush1.bf16.msra.mxu0 0
      %1204 = vmatprep.subr.bf16.mxu0 0
      %1205 = vmatpush1.bf16.msra.mxu0 0
      %1206 = vmatprep.subr.bf16.mxu0 0
      %1207 = vmatpush1.bf16.msra.mxu0 0
      %1208 = vmatprep.subr.bf16.mxu0 0
      %1209 = vmatpush1.bf16.msra.mxu0 0
      %1210 = vmatprep.subr.bf16.mxu0 0
      %1211 = vmatpush1.bf16.msra.mxu0 0
      %1212 = vmatprep.mubr.bf16.mxu0 0
      %1213 = vmatmul.mubr.bf16.gmra.mrb[0].mxu0 %v1128
      %v1214 = vpop.f32.mrb[0].mxu0
      %v1215 = vadd.f32 0.0, %v1214
      %v1216 = vpop.f32.mrb[0].mxu0
      %v1217 = vpop.f32.mrb[0].mxu0
      %v1218 = vpop.f32.mrb[0].mxu0
      %1219 = vdwg.mxu0
      %v1220 = vadd.f32 %v1113, %v1174
      %v1221 = vadd.f32 %v1114, %v1176
      %v1222 = vadd.f32 %v1115, %v1215
      %s1223 = scalar_lea.vmem %s2, 16
      %v1224 = vld [vmem:[%s1223] sm:$0x3]
      %1225 = vrot.lane.b32.xlu0 %v381, 90
      %v1226 = vpop.permute.xlu0 %1225
      %1227 = vrot.lane.b32.xlu0 %v382, 90
      %v1228 = vpop.permute.xlu0 %1227
      %1229 = vrot.lane.b32.xlu0 %v383, 90
      %v1230 = vpop.permute.xlu0 %1229
      %vm1231 = vcmask 736256
      %v1232 = vsel %vm1231, %v1226, %v1228
      %v1233 = vsel %vm1231, %v1228, %v1230
      %v1235 = vsel %vm393, %v1224, 0
      %v1238 = vsel %vm397, %v1232, 0
      %v1241 = vsel %vm397, %v1233, 0
      %v1244 = vsel %vm397, %v1230, 0
      %1246 = vmatprep.subr.bf16.mxu0 %v1241
      %1247 = vmatpush1.bf16.msra.mxu0 %v1238
      %1248 = vmatprep.subr.bf16.mxu0 0
      %1249 = vmatpush1.bf16.msra.mxu0 0
      %1250 = vmatprep.subr.bf16.mxu0 0
      %1251 = vmatpush1.bf16.msra.mxu0 0
      %1252 = vmatprep.subr.bf16.mxu0 0
      %1253 = vmatpush1.bf16.msra.mxu0 0
      %1254 = vmatprep.subr.bf16.mxu0 0
      %1255 = vmatpush1.bf16.msra.mxu0 0
      %1256 = vmatprep.subr.bf16.mxu0 0
      %1257 = vmatpush1.bf16.msra.mxu0 0
      %1258 = vmatprep.subr.bf16.mxu0 0
      %1259 = vmatpush1.bf16.msra.mxu0 0
      %1260 = vmatprep.subr.bf16.mxu0 0
      %1261 = vmatpush1.bf16.msra.mxu0 0
      %1262 = vmatprep.subr.bf16.mxu0 0
      %1263 = vmatpush1.bf16.msra.mxu0 0
      %1264 = vmatprep.subr.bf16.mxu0 0
      %1265 = vmatpush1.bf16.msra.mxu0 0
      %1266 = vmatprep.subr.bf16.mxu0 0
      %1267 = vmatpush1.bf16.msra.mxu0 0
      %1268 = vmatprep.subr.bf16.mxu0 0
      %1269 = vmatpush1.bf16.msra.mxu0 0
      %1270 = vmatprep.subr.bf16.mxu0 0
      %1271 = vmatpush1.bf16.msra.mxu0 0
      %1272 = vmatprep.subr.bf16.mxu0 0
      %1273 = vmatpush1.bf16.msra.mxu0 0
      %1274 = vmatprep.subr.bf16.mxu0 0
      %1275 = vmatpush1.bf16.msra.mxu0 0
      %1276 = vmatprep.subr.bf16.mxu0 0
      %1277 = vmatpush1.bf16.msra.mxu0 0
      %1278 = vmatprep.mubr.bf16.mxu0 0
      %1279 = vmatmul.mubr.bf16.gmra.mrb[0].mxu0 %v1235
      %v1280 = vpop.f32.mrb[0].mxu0
      %v1281 = vadd.f32 0.0, %v1280
      %v1282 = vpop.f32.mrb[0].mxu0
      %v1283 = vadd.f32 0.0, %v1282
      %v1284 = vpop.f32.mrb[0].mxu0
      %v1285 = vpop.f32.mrb[0].mxu0
      %1286 = vdwg.mxu0
      %1287 = vmatprep.subr.bf16.mxu0 0
      %1288 = vmatpush1.bf16.msra.mxu0 %v1244
      %1289 = vmatprep.subr.bf16.mxu0 0
      %1290 = vmatpush1.bf16.msra.mxu0 0
      %1291 = vmatprep.subr.bf16.mxu0 0
      %1292 = vmatpush1.bf16.msra.mxu0 0
      %1293 = vmatprep.subr.bf16.mxu0 0
      %1294 = vmatpush1.bf16.msra.mxu0 0
      %1295 = vmatprep.subr.bf16.mxu0 0
      %1296 = vmatpush1.bf16.msra.mxu0 0
      %1297 = vmatprep.subr.bf16.mxu0 0
      %1298 = vmatpush1.bf16.msra.mxu0 0
      %1299 = vmatprep.subr.bf16.mxu0 0
      %1300 = vmatpush1.bf16.msra.mxu0 0
      %1301 = vmatprep.subr.bf16.mxu0 0
      %1302 = vmatpush1.bf16.msra.mxu0 0
      %1303 = vmatprep.subr.bf16.mxu0 0
      %1304 = vmatpush1.bf16.msra.mxu0 0
      %1305 = vmatprep.subr.bf16.mxu0 0
      %1306 = vmatpush1.bf16.msra.mxu0 0
      %1307 = vmatprep.subr.bf16.mxu0 0
      %1308 = vmatpush1.bf16.msra.mxu0 0
      %1309 = vmatprep.subr.bf16.mxu0 0
      %1310 = vmatpush1.bf16.msra.mxu0 0
      %1311 = vmatprep.subr.bf16.mxu0 0
      %1312 = vmatpush1.bf16.msra.mxu0 0
      %1313 = vmatprep.subr.bf16.mxu0 0
      %1314 = vmatpush1.bf16.msra.mxu0 0
      %1315 = vmatprep.subr.bf16.mxu0 0
      %1316 = vmatpush1.bf16.msra.mxu0 0
      %1317 = vmatprep.subr.bf16.mxu0 0
      %1318 = vmatpush1.bf16.msra.mxu0 0
      %1319 = vmatprep.mubr.bf16.mxu0 0
      %1320 = vmatmul.mubr.bf16.gmra.mrb[0].mxu0 %v1235
      %v1321 = vpop.f32.mrb[0].mxu0
      %v1322 = vadd.f32 0.0, %v1321
      %v1323 = vpop.f32.mrb[0].mxu0
      %v1324 = vpop.f32.mrb[0].mxu0
      %v1325 = vpop.f32.mrb[0].mxu0
      %1326 = vdwg.mxu0
      %v1327 = vadd.f32 %v1220, %v1281
      %v1328 = vadd.f32 %v1221, %v1283
      %v1329 = vadd.f32 %v1222, %v1322
      %1331 = vset.pattern.permute.xlu0 0
      %1332 = vperm.xlu0 %1331, %v370
      %v1333 = vpop.permute.xlu0 %1332
      %v1335 = vadd.f32 %v1327, %v1333
      %v1336 = vadd.f32 %v1328, %v1333
      %v1337 = vadd.f32 %v1329, %v1333
      %v1338 = vmax.f32 %v1335, 0.0
      %v1339 = vmax.f32 %v1336, 0.0
      %v1340 = vmax.f32 %v1337, 0.0
      %v1341 = vsub.f32 0.0, %v1335
      %v1342 = vsub.f32 0.0, %v1336
      %v1343 = vsub.f32 0.0, %v1337
      %v1344 = vmax.f32 %v1341, 0.0
      %v1345 = vmax.f32 %v1342, 0.0
      %v1346 = vmax.f32 %v1343, 0.0
      %v1350 = vrot.slane %v1344, 4
      %v1351 = vrot.slane %v1345, 4
      %v1352 = vrot.slane %v1346, 4
      %v1356 = vsel %vm397, %v1338, %v1350
      %v1357 = vsel %vm397, %v1339, %v1351
      %v1358 = vsel %vm397, %v1340, %v1352
      %v1362 = vmul.f32 %v1356, %v317
      %v1363 = vmul.f32 %v1357, %v321
      %v1364 = vmul.f32 %v1358, %v325
      %v1365 = vpack.c.bf16 %v1362, %v1362
      %v1366 = vpack.c.bf16 %v1363, %v1363
      %v1367 = vpack.c.bf16 %v1364, %v1364
      %v1368 = vld [vmem:[%s7] sm:$0xff]
      %v1369 = vld [vmem:[%s7 + $0x8] sm:$0xf]
      %1371 = vset.pattern.permute.xlu0 0
      %1372 = vperm.xlu0 %1371, %v1368
      %v1373 = vpop.permute.xlu0 %1372
      %1376 = vset.pattern.permute.xlu0 0
      %1377 = vperm.xlu0 %1376, %v1369
      %v1378 = vpop.permute.xlu0 %1377
      %1380 = vst [vmem:[#allocation3] sm:$0xff] %v1373
      %1381 = vst [vmem:[#allocation3 + $0x8] sm:$0xff] %v1373
      %vm1382 = vcmask 556032
      %1383 = vst.msk [vmem:[#allocation3 + $0x10] sm:$0xff] %vm1382, %v1373
      %1384 = vst [vmem:[#allocation3 + $0x18] sm:$0xf] %v1378
      %1385 = vst [vmem:[#allocation3 + $0x20] sm:$0xf] %v1378
      %vm1386 = vcmask 551936
      %1387 = vst.msk [vmem:[#allocation3 + $0x28] sm:$0xf] %vm1386, %v1378
      %v1388 = vld [vmem:[#allocation3] sm:$0xff]
      %v1389 = vld [vmem:[#allocation3 + $0x8] sm:$0xff]
      %v1390 = vld [vmem:[#allocation3 + $0x10] sm:$0xff]
      %v1391 = vld [vmem:[#allocation3 + $0x18] sm:$0xf]
      %v1392 = vld [vmem:[#allocation3 + $0x20] sm:$0xf]
      %v1393 = vld [vmem:[#allocation3 + $0x28] sm:$0xf]
      %v1394 = vld [vmem:[%s6] sm:$0xf]
      %v1395 = vld [vmem:[%s6 + $0x4] sm:$0x3]
      %v1398 = vunpack.c.l.b16 %v1394
      %v1399 = vunpack.c.l.b16 %v1395
      %v1400 = vpack.c.b16 %v1399, %v1398
      %v1402 = vsel %vm393, %v1400, 0
      %v1405 = vsel %vm397, %v1365, 0
      %v1408 = vsel %vm397, %v1366, 0
      %v1411 = vsel %vm397, %v1367, 0
      %1413 = vmatprep.subr.bf16.mxu0 %v1408
      %1414 = vmatpush1.bf16.msra.mxu0 %v1405
      %1415 = vmatprep.subr.bf16.mxu0 0
      %1416 = vmatpush1.bf16.msra.mxu0 0
      %1417 = vmatprep.subr.bf16.mxu0 0
      %1418 = vmatpush1.bf16.msra.mxu0 0
      %1419 = vmatprep.subr.bf16.mxu0 0
      %1420 = vmatpush1.bf16.msra.mxu0 0
      %1421 = vmatprep.subr.bf16.mxu0 0
      %1422 = vmatpush1.bf16.msra.mxu0 0
      %1423 = vmatprep.subr.bf16.mxu0 0
      %1424 = vmatpush1.bf16.msra.mxu0 0
      %1425 = vmatprep.subr.bf16.mxu0 0
      %1426 = vmatpush1.bf16.msra.mxu0 0
      %1427 = vmatprep.subr.bf16.mxu0 0
      %1428 = vmatpush1.bf16.msra.mxu0 0
      %1429 = vmatprep.subr.bf16.mxu0 0
      %1430 = vmatpush1.bf16.msra.mxu0 0
      %1431 = vmatprep.subr.bf16.mxu0 0
      %1432 = vmatpush1.bf16.msra.mxu0 0
      %1433 = vmatprep.subr.bf16.mxu0 0
      %1434 = vmatpush1.bf16.msra.mxu0 0
      %1435 = vmatprep.subr.bf16.mxu0 0
      %1436 = vmatpush1.bf16.msra.mxu0 0
      %1437 = vmatprep.subr.bf16.mxu0 0
      %1438 = vmatpush1.bf16.msra.mxu0 0
      %1439 = vmatprep.subr.bf16.mxu0 0
      %1440 = vmatpush1.bf16.msra.mxu0 0
      %1441 = vmatprep.subr.bf16.mxu0 0
      %1442 = vmatpush1.bf16.msra.mxu0 0
      %1443 = vmatprep.subr.bf16.mxu0 0
      %1444 = vmatpush1.bf16.msra.mxu0 0
      %1445 = vmatprep.mubr.bf16.mxu0 0
      %1446 = vmatmul.mubr.bf16.gmra.mrb[0].mxu0 %v1402
      %v1447 = vpop.f32.mrb[0].mxu0
      %v1448 = vadd.f32 0.0, %v1447
      %v1449 = vpop.f32.mrb[0].mxu0
      %v1450 = vadd.f32 0.0, %v1449
      %v1451 = vpop.f32.mrb[0].mxu0
      %v1452 = vadd.f32 0.0, %v1451
      %v1453 = vpop.f32.mrb[0].mxu0
      %v1454 = vadd.f32 0.0, %v1453
      %1455 = vdwg.mxu0
      %1456 = vmatprep.subr.bf16.mxu0 0
      %1457 = vmatpush1.bf16.msra.mxu0 %v1411
      %1458 = vmatprep.subr.bf16.mxu0 0
      %1459 = vmatpush1.bf16.msra.mxu0 0
      %1460 = vmatprep.subr.bf16.mxu0 0
      %1461 = vmatpush1.bf16.msra.mxu0 0
      %1462 = vmatprep.subr.bf16.mxu0 0
      %1463 = vmatpush1.bf16.msra.mxu0 0
      %1464 = vmatprep.subr.bf16.mxu0 0
      %1465 = vmatpush1.bf16.msra.mxu0 0
      %1466 = vmatprep.subr.bf16.mxu0 0
      %1467 = vmatpush1.bf16.msra.mxu0 0
      %1468 = vmatprep.subr.bf16.mxu0 0
      %1469 = vmatpush1.bf16.msra.mxu0 0
      %1470 = vmatprep.subr.bf16.mxu0 0
      %1471 = vmatpush1.bf16.msra.mxu0 0
      %1472 = vmatprep.subr.bf16.mxu0 0
      %1473 = vmatpush1.bf16.msra.mxu0 0
      %1474 = vmatprep.subr.bf16.mxu0 0
      %1475 = vmatpush1.bf16.msra.mxu0 0
      %1476 = vmatprep.subr.bf16.mxu0 0
      %1477 = vmatpush1.bf16.msra.mxu0 0
      %1478 = vmatprep.subr.bf16.mxu0 0
      %1479 = vmatpush1.bf16.msra.mxu0 0
      %1480 = vmatprep.subr.bf16.mxu0 0
      %1481 = vmatpush1.bf16.msra.mxu0 0
      %1482 = vmatprep.subr.bf16.mxu0 0
      %1483 = vmatpush1.bf16.msra.mxu0 0
      %1484 = vmatprep.subr.bf16.mxu0 0
      %1485 = vmatpush1.bf16.msra.mxu0 0
      %1486 = vmatprep.subr.bf16.mxu0 0
      %1487 = vmatpush1.bf16.msra.mxu0 0
      %1488 = vmatprep.mubr.bf16.mxu0 0
      %1489 = vmatmul.mubr.bf16.gmra.mrb[0].mxu0 %v1402
      %v1490 = vpop.f32.mrb[0].mxu0
      %v1491 = vadd.f32 0.0, %v1490
      %v1492 = vpop.f32.mrb[0].mxu0
      %v1493 = vpop.f32.mrb[0].mxu0
      %v1494 = vadd.f32 0.0, %v1493
      %v1495 = vpop.f32.mrb[0].mxu0
      %1496 = vdwg.mxu0
      %v1497 = vadd.f32 %v1388, %v1448
      %v1498 = vadd.f32 %v1389, %v1450
      %v1499 = vadd.f32 %v1390, %v1491
      %v1500 = vadd.f32 %v1391, %v1452
      %v1501 = vadd.f32 %v1392, %v1454
      %v1502 = vadd.f32 %v1393, %v1494
      %1503 = vst [vmem:[#allocation3] sm:$0xff] %v1497
      %1504 = vst [vmem:[#allocation3 + $0x8] sm:$0xff] %v1498
      %1505 = vst.msk [vmem:[#allocation3 + $0x10] sm:$0xff] %vm1382, %v1499
      %1506 = vst [vmem:[#allocation3 + $0x18] sm:$0xf] %v1500
      %1507 = vst [vmem:[#allocation3 + $0x20] sm:$0xf] %v1501
      %1508 = vst.msk [vmem:[#allocation3 + $0x28] sm:$0xf] %vm1386, %v1502
      %v1512 = vunpack.c.l.b16 %v1365
      %v1513 = vunpack.c.l.b16 %v1366
      %v1514 = vunpack.c.l.b16 %v1367
      %v1515 = vpack.c.b16 %v1513, %v1512
      %v1516 = vpack.c.b16 %v1514, %v1514
      %1517 = vrot.lane.b32.xlu0 %v1515, 19
      %v1518 = vpop.permute.xlu0 %1517
      %1519 = vrot.lane.b32.xlu0 %v1516, 19
      %v1520 = vpop.permute.xlu0 %1519
      %v1521 = vrot.slane %v1518, 4
      %vm1522 = vcmask 154624
      %v1523 = vsel %vm1522, %v1521, %v1518
      %v1524 = vsel %vm1522, %v1521, %v1520
      %vm1527 = vcmask 1043608
      %vm1528 = vcmask 1047556
      %vm1529 = vmor %vm1528, %vm1527
      %1530 = vst.msk [vmem:[#allocation2] sm:$0xff] %vm1529, %v1523
      %vm1531 = vcmask 707584
      %1532 = vst.msk [vmem:[#allocation2 + $0x8] sm:$0xf] %vm1531, %v1524
      %v1533 = vld [vmem:[%s5] sm:$0xf]
      %v1534 = vld [vmem:[%s4] sm:$0x3]
      %v1535 = vld [vmem:[#allocation2] sm:$0xff]
      %v1536 = vld [vmem:[#allocation2 + $0x8] sm:$0xf]
      %s1537 = scalar_lea.vmem %s4, 2
      %v1538 = vld [vmem:[%s1537] sm:$0x3]
      %v1541 = vunpack.c.l.b16 %v1535
      %v1542 = vunpack.c.h.b16 %v1535
      %v1543 = vunpack.c.l.b16 %v1536
      %v1544 = vpack.c.b16 %v1541, %v1541
      %v1545 = vpack.c.b16 %v1542, %v1542
      %v1546 = vpack.c.b16 %v1543, %v1543
      %1547 = vrot.lane.b32.xlu0 %v1544, 127
      %v1548 = vpop.permute.xlu0 %1547
      %1549 = vrot.lane.b32.xlu0 %v1545, 127
      %v1550 = vpop.permute.xlu0 %1549
      %1551 = vrot.lane.b32.xlu0 %v1546, 127
      %v1552 = vpop.permute.xlu0 %1551
      %v1553 = vsel %vm390, %v1548, %v1550
      %v1554 = vsel %vm390, %v1550, %v1552
      %v1556 = vsel %vm393, %v1538, 0
      %v1559 = vsel %vm397, %v1553, 0
      %v1562 = vsel %vm397, %v1554, 0
      %v1565 = vsel %vm397, %v1552, 0
      %1567 = vmatprep.subr.bf16.mxu0 %v1562
      %1568 = vmatpush1.bf16.msra.mxu0 %v1559
      %1569 = vmatprep.subr.bf16.mxu0 0
      %1570 = vmatpush1.bf16.msra.mxu0 0
      %1571 = vmatprep.subr.bf16.mxu0 0
      %1572 = vmatpush1.bf16.msra.mxu0 0
      %1573 = vmatprep.subr.bf16.mxu0 0
      %1574 = vmatpush1.bf16.msra.mxu0 0
      %1575 = vmatprep.subr.bf16.mxu0 0
      %1576 = vmatpush1.bf16.msra.mxu0 0
      %1577 = vmatprep.subr.bf16.mxu0 0
      %1578 = vmatpush1.bf16.msra.mxu0 0
      %1579 = vmatprep.subr.bf16.mxu0 0
      %1580 = vmatpush1.bf16.msra.mxu0 0
      %1581 = vmatprep.subr.bf16.mxu0 0
      %1582 = vmatpush1.bf16.msra.mxu0 0
      %1583 = vmatprep.subr.bf16.mxu0 0
      %1584 = vmatpush1.bf16.msra.mxu0 0
      %1585 = vmatprep.subr.bf16.mxu0 0
      %1586 = vmatpush1.bf16.msra.mxu0 0
      %1587 = vmatprep.subr.bf16.mxu0 0
      %1588 = vmatpush1.bf16.msra.mxu0 0
      %1589 = vmatprep.subr.bf16.mxu0 0
      %1590 = vmatpush1.bf16.msra.mxu0 0
      %1591 = vmatprep.subr.bf16.mxu0 0
      %1592 = vmatpush1.bf16.msra.mxu0 0
      %1593 = vmatprep.subr.bf16.mxu0 0
      %1594 = vmatpush1.bf16.msra.mxu0 0
      %1595 = vmatprep.subr.bf16.mxu0 0
      %1596 = vmatpush1.bf16.msra.mxu0 0
      %1597 = vmatprep.subr.bf16.mxu0 0
      %1598 = vmatpush1.bf16.msra.mxu0 0
      %1599 = vmatprep.mubr.bf16.mxu0 0
      %1600 = vmatmul.mubr.bf16.gmra.mrb[0].mxu0 %v1556
      %v1601 = vpop.f32.mrb[0].mxu0
      %v1602 = vadd.f32 0.0, %v1601
      %v1603 = vpop.f32.mrb[0].mxu0
      %v1604 = vadd.f32 0.0, %v1603
      %v1605 = vpop.f32.mrb[0].mxu0
      %v1606 = vpop.f32.mrb[0].mxu0
      %1607 = vdwg.mxu0
      %1608 = vmatprep.subr.bf16.mxu0 0
      %1609 = vmatpush1.bf16.msra.mxu0 %v1565
      %1610 = vmatprep.subr.bf16.mxu0 0
      %1611 = vmatpush1.bf16.msra.mxu0 0
      %1612 = vmatprep.subr.bf16.mxu0 0
      %1613 = vmatpush1.bf16.msra.mxu0 0
      %1614 = vmatprep.subr.bf16.mxu0 0
      %1615 = vmatpush1.bf16.msra.mxu0 0
      %1616 = vmatprep.subr.bf16.mxu0 0
      %1617 = vmatpush1.bf16.msra.mxu0 0
      %1618 = vmatprep.subr.bf16.mxu0 0
      %1619 = vmatpush1.bf16.msra.mxu0 0
      %1620 = vmatprep.subr.bf16.mxu0 0
      %1621 = vmatpush1.bf16.msra.mxu0 0
      %1622 = vmatprep.subr.bf16.mxu0 0
      %1623 = vmatpush1.bf16.msra.mxu0 0
      %1624 = vmatprep.subr.bf16.mxu0 0
      %1625 = vmatpush1.bf16.msra.mxu0 0
      %1626 = vmatprep.subr.bf16.mxu0 0
      %1627 = vmatpush1.bf16.msra.mxu0 0
      %1628 = vmatprep.subr.bf16.mxu0 0
      %1629 = vmatpush1.bf16.msra.mxu0 0
      %1630 = vmatprep.subr.bf16.mxu0 0
      %1631 = vmatpush1.bf16.msra.mxu0 0
      %1632 = vmatprep.subr.bf16.mxu0 0
      %1633 = vmatpush1.bf16.msra.mxu0 0
      %1634 = vmatprep.subr.bf16.mxu0 0
      %1635 = vmatpush1.bf16.msra.mxu0 0
      %1636 = vmatprep.subr.bf16.mxu0 0
      %1637 = vmatpush1.bf16.msra.mxu0 0
      %1638 = vmatprep.subr.bf16.mxu0 0
      %1639 = vmatpush1.bf16.msra.mxu0 0
      %1640 = vmatprep.mubr.bf16.mxu0 0
      %1641 = vmatmul.mubr.bf16.gmra.mrb[0].mxu0 %v1556
      %v1642 = vpop.f32.mrb[0].mxu0
      %v1643 = vadd.f32 0.0, %v1642
      %v1644 = vpop.f32.mrb[0].mxu0
      %v1645 = vpop.f32.mrb[0].mxu0
      %v1646 = vpop.f32.mrb[0].mxu0
      %1647 = vdwg.mxu0
      %v1649 = vsel %vm393, %v1534, 0
      %v1652 = vsel %vm397, %v1544, 0
      %v1655 = vsel %vm397, %v1545, 0
      %v1658 = vsel %vm397, %v1546, 0
      %1660 = vmatprep.subr.bf16.mxu0 %v1655
      %1661 = vmatpush1.bf16.msra.mxu0 %v1652
      %1662 = vmatprep.subr.bf16.mxu0 0
      %1663 = vmatpush1.bf16.msra.mxu0 0
      %1664 = vmatprep.subr.bf16.mxu0 0
      %1665 = vmatpush1.bf16.msra.mxu0 0
      %1666 = vmatprep.subr.bf16.mxu0 0
      %1667 = vmatpush1.bf16.msra.mxu0 0
      %1668 = vmatprep.subr.bf16.mxu0 0
      %1669 = vmatpush1.bf16.msra.mxu0 0
      %1670 = vmatprep.subr.bf16.mxu0 0
      %1671 = vmatpush1.bf16.msra.mxu0 0
      %1672 = vmatprep.subr.bf16.mxu0 0
      %1673 = vmatpush1.bf16.msra.mxu0 0
      %1674 = vmatprep.subr.bf16.mxu0 0
      %1675 = vmatpush1.bf16.msra.mxu0 0
      %1676 = vmatprep.subr.bf16.mxu0 0
      %1677 = vmatpush1.bf16.msra.mxu0 0
      %1678 = vmatprep.subr.bf16.mxu0 0
      %1679 = vmatpush1.bf16.msra.mxu0 0
      %1680 = vmatprep.subr.bf16.mxu0 0
      %1681 = vmatpush1.bf16.msra.mxu0 0
      %1682 = vmatprep.subr.bf16.mxu0 0
      %1683 = vmatpush1.bf16.msra.mxu0 0
      %1684 = vmatprep.subr.bf16.mxu0 0
      %1685 = vmatpush1.bf16.msra.mxu0 0
      %1686 = vmatprep.subr.bf16.mxu0 0
      %1687 = vmatpush1.bf16.msra.mxu0 0
      %1688 = vmatprep.subr.bf16.mxu0 0
      %1689 = vmatpush1.bf16.msra.mxu0 0
      %1690 = vmatprep.subr.bf16.mxu0 0
      %1691 = vmatpush1.bf16.msra.mxu0 0
      %1692 = vmatprep.mubr.bf16.mxu0 0
      %1693 = vmatmul.mubr.bf16.gmra.mrb[0].mxu0 %v1649
      %v1694 = vpop.f32.mrb[0].mxu0
      %v1695 = vadd.f32 %v1602, %v1694
      %v1696 = vpop.f32.mrb[0].mxu0
      %v1697 = vadd.f32 %v1604, %v1696
      %v1698 = vpop.f32.mrb[0].mxu0
      %v1699 = vpop.f32.mrb[0].mxu0
      %1700 = vdwg.mxu0
      %1701 = vmatprep.subr.bf16.mxu0 0
      %1702 = vmatpush1.bf16.msra.mxu0 %v1658
      %1703 = vmatprep.subr.bf16.mxu0 0
      %1704 = vmatpush1.bf16.msra.mxu0 0
      %1705 = vmatprep.subr.bf16.mxu0 0
      %1706 = vmatpush1.bf16.msra.mxu0 0
      %1707 = vmatprep.subr.bf16.mxu0 0
      %1708 = vmatpush1.bf16.msra.mxu0 0
      %1709 = vmatprep.subr.bf16.mxu0 0
      %1710 = vmatpush1.bf16.msra.mxu0 0
      %1711 = vmatprep.subr.bf16.mxu0 0
      %1712 = vmatpush1.bf16.msra.mxu0 0
      %1713 = vmatprep.subr.bf16.mxu0 0
      %1714 = vmatpush1.bf16.msra.mxu0 0
      %1715 = vmatprep.subr.bf16.mxu0 0
      %1716 = vmatpush1.bf16.msra.mxu0 0
      %1717 = vmatprep.subr.bf16.mxu0 0
      %1718 = vmatpush1.bf16.msra.mxu0 0
      %1719 = vmatprep.subr.bf16.mxu0 0
      %1720 = vmatpush1.bf16.msra.mxu0 0
      %1721 = vmatprep.subr.bf16.mxu0 0
      %1722 = vmatpush1.bf16.msra.mxu0 0
      %1723 = vmatprep.subr.bf16.mxu0 0
      %1724 = vmatpush1.bf16.msra.mxu0 0
      %1725 = vmatprep.subr.bf16.mxu0 0
      %1726 = vmatpush1.bf16.msra.mxu0 0
      %1727 = vmatprep.subr.bf16.mxu0 0
      %1728 = vmatpush1.bf16.msra.mxu0 0
      %1729 = vmatprep.subr.bf16.mxu0 0
      %1730 = vmatpush1.bf16.msra.mxu0 0
      %1731 = vmatprep.subr.bf16.mxu0 0
      %1732 = vmatpush1.bf16.msra.mxu0 0
      %1733 = vmatprep.mubr.bf16.mxu0 0
      %1734 = vmatmul.mubr.bf16.gmra.mrb[0].mxu0 %v1649
      %v1735 = vpop.f32.mrb[0].mxu0
      %v1736 = vadd.f32 %v1643, %v1735
      %v1737 = vpop.f32.mrb[0].mxu0
      %v1738 = vpop.f32.mrb[0].mxu0
      %v1739 = vpop.f32.mrb[0].mxu0
      %1740 = vdwg.mxu0
      %s1741 = scalar_lea.vmem %s4, 4
      %v1742 = vld [vmem:[%s1741] sm:$0x3]
      %1743 = vrot.lane.b32.xlu0 %v1544, 126
      %v1744 = vpop.permute.xlu0 %1743
      %1745 = vrot.lane.b32.xlu0 %v1545, 126
      %v1746 = vpop.permute.xlu0 %1745
      %1747 = vrot.lane.b32.xlu0 %v1546, 126
      %v1748 = vpop.permute.xlu0 %1747
      %v1749 = vsel %vm589, %v1744, %v1746
      %v1750 = vsel %vm589, %v1746, %v1748
      %v1752 = vsel %vm393, %v1742, 0
      %v1755 = vsel %vm397, %v1749, 0
      %v1758 = vsel %vm397, %v1750, 0
      %v1761 = vsel %vm397, %v1748, 0
      %1763 = vmatprep.subr.bf16.mxu0 %v1758
      %1764 = vmatpush1.bf16.msra.mxu0 %v1755
      %1765 = vmatprep.subr.bf16.mxu0 0
      %1766 = vmatpush1.bf16.msra.mxu0 0
      %1767 = vmatprep.subr.bf16.mxu0 0
      %1768 = vmatpush1.bf16.msra.mxu0 0
      %1769 = vmatprep.subr.bf16.mxu0 0
      %1770 = vmatpush1.bf16.msra.mxu0 0
      %1771 = vmatprep.subr.bf16.mxu0 0
      %1772 = vmatpush1.bf16.msra.mxu0 0
      %1773 = vmatprep.subr.bf16.mxu0 0
      %1774 = vmatpush1.bf16.msra.mxu0 0
      %1775 = vmatprep.subr.bf16.mxu0 0
      %1776 = vmatpush1.bf16.msra.mxu0 0
      %1777 = vmatprep.subr.bf16.mxu0 0
      %1778 = vmatpush1.bf16.msra.mxu0 0
      %1779 = vmatprep.subr.bf16.mxu0 0
      %1780 = vmatpush1.bf16.msra.mxu0 0
      %1781 = vmatprep.subr.bf16.mxu0 0
      %1782 = vmatpush1.bf16.msra.mxu0 0
      %1783 = vmatprep.subr.bf16.mxu0 0
      %1784 = vmatpush1.bf16.msra.mxu0 0
      %1785 = vmatprep.subr.bf16.mxu0 0
      %1786 = vmatpush1.bf16.msra.mxu0 0
      %1787 = vmatprep.subr.bf16.mxu0 0
      %1788 = vmatpush1.bf16.msra.mxu0 0
      %1789 = vmatprep.subr.bf16.mxu0 0
      %1790 = vmatpush1.bf16.msra.mxu0 0
      %1791 = vmatprep.subr.bf16.mxu0 0
      %1792 = vmatpush1.bf16.msra.mxu0 0
      %1793 = vmatprep.subr.bf16.mxu0 0
      %1794 = vmatpush1.bf16.msra.mxu0 0
      %1795 = vmatprep.mubr.bf16.mxu0 0
      %1796 = vmatmul.mubr.bf16.gmra.mrb[0].mxu0 %v1752
      %v1797 = vpop.f32.mrb[0].mxu0
      %v1798 = vadd.f32 0.0, %v1797
      %v1799 = vpop.f32.mrb[0].mxu0
      %v1800 = vadd.f32 0.0, %v1799
      %v1801 = vpop.f32.mrb[0].mxu0
      %v1802 = vpop.f32.mrb[0].mxu0
      %1803 = vdwg.mxu0
      %1804 = vmatprep.subr.bf16.mxu0 0
      %1805 = vmatpush1.bf16.msra.mxu0 %v1761
      %1806 = vmatprep.subr.bf16.mxu0 0
      %1807 = vmatpush1.bf16.msra.mxu0 0
      %1808 = vmatprep.subr.bf16.mxu0 0
      %1809 = vmatpush1.bf16.msra.mxu0 0
      %1810 = vmatprep.subr.bf16.mxu0 0
      %1811 = vmatpush1.bf16.msra.mxu0 0
      %1812 = vmatprep.subr.bf16.mxu0 0
      %1813 = vmatpush1.bf16.msra.mxu0 0
      %1814 = vmatprep.subr.bf16.mxu0 0
      %1815 = vmatpush1.bf16.msra.mxu0 0
      %1816 = vmatprep.subr.bf16.mxu0 0
      %1817 = vmatpush1.bf16.msra.mxu0 0
      %1818 = vmatprep.subr.bf16.mxu0 0
      %1819 = vmatpush1.bf16.msra.mxu0 0
      %1820 = vmatprep.subr.bf16.mxu0 0
      %1821 = vmatpush1.bf16.msra.mxu0 0
      %1822 = vmatprep.subr.bf16.mxu0 0
      %1823 = vmatpush1.bf16.msra.mxu0 0
      %1824 = vmatprep.subr.bf16.mxu0 0
      %1825 = vmatpush1.bf16.msra.mxu0 0
      %1826 = vmatprep.subr.bf16.mxu0 0
      %1827 = vmatpush1.bf16.msra.mxu0 0
      %1828 = vmatprep.subr.bf16.mxu0 0
      %1829 = vmatpush1.bf16.msra.mxu0 0
      %1830 = vmatprep.subr.bf16.mxu0 0
      %1831 = vmatpush1.bf16.msra.mxu0 0
      %1832 = vmatprep.subr.bf16.mxu0 0
      %1833 = vmatpush1.bf16.msra.mxu0 0
      %1834 = vmatprep.subr.bf16.mxu0 0
      %1835 = vmatpush1.bf16.msra.mxu0 0
      %1836 = vmatprep.mubr.bf16.mxu0 0
      %1837 = vmatmul.mubr.bf16.gmra.mrb[0].mxu0 %v1752
      %v1838 = vpop.f32.mrb[0].mxu0
      %v1839 = vadd.f32 0.0, %v1838
      %v1840 = vpop.f32.mrb[0].mxu0
      %v1841 = vpop.f32.mrb[0].mxu0
      %v1842 = vpop.f32.mrb[0].mxu0
      %1843 = vdwg.mxu0
      %v1844 = vadd.f32 %v1695, %v1798
      %v1845 = vadd.f32 %v1697, %v1800
      %v1846 = vadd.f32 %v1736, %v1839
      %s1847 = scalar_lea.vmem %s4, 6
      %v1848 = vld [vmem:[%s1847] sm:$0x3]
      %1849 = vrot.lane.b32.xlu0 %v1544, 110
      %v1850 = vpop.permute.xlu0 %1849
      %1851 = vrot.lane.b32.xlu0 %v1545, 110
      %v1852 = vpop.permute.xlu0 %1851
      %1853 = vrot.lane.b32.xlu0 %v1546, 110
      %v1854 = vpop.permute.xlu0 %1853
      %v1855 = vsel %vm696, %v1850, %v1852
      %v1856 = vsel %vm696, %v1852, %v1854
      %v1858 = vsel %vm393, %v1848, 0
      %v1861 = vsel %vm397, %v1855, 0
      %v1864 = vsel %vm397, %v1856, 0
      %v1867 = vsel %vm397, %v1854, 0
      %1869 = vmatprep.subr.bf16.mxu0 %v1864
      %1870 = vmatpush1.bf16.msra.mxu0 %v1861
      %1871 = vmatprep.subr.bf16.mxu0 0
      %1872 = vmatpush1.bf16.msra.mxu0 0
      %1873 = vmatprep.subr.bf16.mxu0 0
      %1874 = vmatpush1.bf16.msra.mxu0 0
      %1875 = vmatprep.subr.bf16.mxu0 0
      %1876 = vmatpush1.bf16.msra.mxu0 0
      %1877 = vmatprep.subr.bf16.mxu0 0
      %1878 = vmatpush1.bf16.msra.mxu0 0
      %1879 = vmatprep.subr.bf16.mxu0 0
      %1880 = vmatpush1.bf16.msra.mxu0 0
      %1881 = vmatprep.subr.bf16.mxu0 0
      %1882 = vmatpush1.bf16.msra.mxu0 0
      %1883 = vmatprep.subr.bf16.mxu0 0
      %1884 = vmatpush1.bf16.msra.mxu0 0
      %1885 = vmatprep.subr.bf16.mxu0 0
      %1886 = vmatpush1.bf16.msra.mxu0 0
      %1887 = vmatprep.subr.bf16.mxu0 0
      %1888 = vmatpush1.bf16.msra.mxu0 0
      %1889 = vmatprep.subr.bf16.mxu0 0
      %1890 = vmatpush1.bf16.msra.mxu0 0
      %1891 = vmatprep.subr.bf16.mxu0 0
      %1892 = vmatpush1.bf16.msra.mxu0 0
      %1893 = vmatprep.subr.bf16.mxu0 0
      %1894 = vmatpush1.bf16.msra.mxu0 0
      %1895 = vmatprep.subr.bf16.mxu0 0
      %1896 = vmatpush1.bf16.msra.mxu0 0
      %1897 = vmatprep.subr.bf16.mxu0 0
      %1898 = vmatpush1.bf16.msra.mxu0 0
      %1899 = vmatprep.subr.bf16.mxu0 0
      %1900 = vmatpush1.bf16.msra.mxu0 0
      %1901 = vmatprep.mubr.bf16.mxu0 0
      %1902 = vmatmul.mubr.bf16.gmra.mrb[0].mxu0 %v1858
      %v1903 = vpop.f32.mrb[0].mxu0
      %v1904 = vadd.f32 0.0, %v1903
      %v1905 = vpop.f32.mrb[0].mxu0
      %v1906 = vadd.f32 0.0, %v1905
      %v1907 = vpop.f32.mrb[0].mxu0
      %v1908 = vpop.f32.mrb[0].mxu0
      %1909 = vdwg.mxu0
      %1910 = vmatprep.subr.bf16.mxu0 0
      %1911 = vmatpush1.bf16.msra.mxu0 %v1867
      %1912 = vmatprep.subr.bf16.mxu0 0
      %1913 = vmatpush1.bf16.msra.mxu0 0
      %1914 = vmatprep.subr.bf16.mxu0 0
      %1915 = vmatpush1.bf16.msra.mxu0 0
      %1916 = vmatprep.subr.bf16.mxu0 0
      %1917 = vmatpush1.bf16.msra.mxu0 0
      %1918 = vmatprep.subr.bf16.mxu0 0
      %1919 = vmatpush1.bf16.msra.mxu0 0
      %1920 = vmatprep.subr.bf16.mxu0 0
      %1921 = vmatpush1.bf16.msra.mxu0 0
      %1922 = vmatprep.subr.bf16.mxu0 0
      %1923 = vmatpush1.bf16.msra.mxu0 0
      %1924 = vmatprep.subr.bf16.mxu0 0
      %1925 = vmatpush1.bf16.msra.mxu0 0
      %1926 = vmatprep.subr.bf16.mxu0 0
      %1927 = vmatpush1.bf16.msra.mxu0 0
      %1928 = vmatprep.subr.bf16.mxu0 0
      %1929 = vmatpush1.bf16.msra.mxu0 0
      %1930 = vmatprep.subr.bf16.mxu0 0
      %1931 = vmatpush1.bf16.msra.mxu0 0
      %1932 = vmatprep.subr.bf16.mxu0 0
      %1933 = vmatpush1.bf16.msra.mxu0 0
      %1934 = vmatprep.subr.bf16.mxu0 0
      %1935 = vmatpush1.bf16.msra.mxu0 0
      %1936 = vmatprep.subr.bf16.mxu0 0
      %1937 = vmatpush1.bf16.msra.mxu0 0
      %1938 = vmatprep.subr.bf16.mxu0 0
      %1939 = vmatpush1.bf16.msra.mxu0 0
      %1940 = vmatprep.subr.bf16.mxu0 0
      %1941 = vmatpush1.bf16.msra.mxu0 0
      %1942 = vmatprep.mubr.bf16.mxu0 0
      %1943 = vmatmul.mubr.bf16.gmra.mrb[0].mxu0 %v1858
      %v1944 = vpop.f32.mrb[0].mxu0
      %v1945 = vadd.f32 0.0, %v1944
      %v1946 = vpop.f32.mrb[0].mxu0
      %v1947 = vpop.f32.mrb[0].mxu0
      %v1948 = vpop.f32.mrb[0].mxu0
      %1949 = vdwg.mxu0
      %v1950 = vadd.f32 %v1844, %v1904
      %v1951 = vadd.f32 %v1845, %v1906
      %v1952 = vadd.f32 %v1846, %v1945
      %s1953 = scalar_lea.vmem %s4, 8
      %v1954 = vld [vmem:[%s1953] sm:$0x3]
      %1955 = vrot.lane.b32.xlu0 %v1544, 109
      %v1956 = vpop.permute.xlu0 %1955
      %1957 = vrot.lane.b32.xlu0 %v1545, 109
      %v1958 = vpop.permute.xlu0 %1957
      %1959 = vrot.lane.b32.xlu0 %v1546, 109
      %v1960 = vpop.permute.xlu0 %1959
      %v1961 = vsel %vm803, %v1956, %v1958
      %v1962 = vsel %vm803, %v1958, %v1960
      %v1964 = vsel %vm393, %v1954, 0
      %v1967 = vsel %vm397, %v1961, 0
      %v1970 = vsel %vm397, %v1962, 0
      %v1973 = vsel %vm397, %v1960, 0
      %1975 = vmatprep.subr.bf16.mxu0 %v1970
      %1976 = vmatpush1.bf16.msra.mxu0 %v1967
      %1977 = vmatprep.subr.bf16.mxu0 0
      %1978 = vmatpush1.bf16.msra.mxu0 0
      %1979 = vmatprep.subr.bf16.mxu0 0
      %1980 = vmatpush1.bf16.msra.mxu0 0
      %1981 = vmatprep.subr.bf16.mxu0 0
      %1982 = vmatpush1.bf16.msra.mxu0 0
      %1983 = vmatprep.subr.bf16.mxu0 0
      %1984 = vmatpush1.bf16.msra.mxu0 0
      %1985 = vmatprep.subr.bf16.mxu0 0
      %1986 = vmatpush1.bf16.msra.mxu0 0
      %1987 = vmatprep.subr.bf16.mxu0 0
      %1988 = vmatpush1.bf16.msra.mxu0 0
      %1989 = vmatprep.subr.bf16.mxu0 0
      %1990 = vmatpush1.bf16.msra.mxu0 0
      %1991 = vmatprep.subr.bf16.mxu0 0
      %1992 = vmatpush1.bf16.msra.mxu0 0
      %1993 = vmatprep.subr.bf16.mxu0 0
      %1994 = vmatpush1.bf16.msra.mxu0 0
      %1995 = vmatprep.subr.bf16.mxu0 0
      %1996 = vmatpush1.bf16.msra.mxu0 0
      %1997 = vmatprep.subr.bf16.mxu0 0
      %1998 = vmatpush1.bf16.msra.mxu0 0
      %1999 = vmatprep.subr.bf16.mxu0 0
      %2000 = vmatpush1.bf16.msra.mxu0 0
      %2001 = vmatprep.subr.bf16.mxu0 0
      %2002 = vmatpush1.bf16.msra.mxu0 0
      %2003 = vmatprep.subr.bf16.mxu0 0
      %2004 = vmatpush1.bf16.msra.mxu0 0
      %2005 = vmatprep.subr.bf16.mxu0 0
      %2006 = vmatpush1.bf16.msra.mxu0 0
      %2007 = vmatprep.mubr.bf16.mxu0 0
      %2008 = vmatmul.mubr.bf16.gmra.mrb[0].mxu0 %v1964
      %v2009 = vpop.f32.mrb[0].mxu0
      %v2010 = vadd.f32 0.0, %v2009
      %v2011 = vpop.f32.mrb[0].mxu0
      %v2012 = vadd.f32 0.0, %v2011
      %v2013 = vpop.f32.mrb[0].mxu0
      %v2014 = vpop.f32.mrb[0].mxu0
      %2015 = vdwg.mxu0
      %2016 = vmatprep.subr.bf16.mxu0 0
      %2017 = vmatpush1.bf16.msra.mxu0 %v1973
      %2018 = vmatprep.subr.bf16.mxu0 0
      %2019 = vmatpush1.bf16.msra.mxu0 0
      %2020 = vmatprep.subr.bf16.mxu0 0
      %2021 = vmatpush1.bf16.msra.mxu0 0
      %2022 = vmatprep.subr.bf16.mxu0 0
      %2023 = vmatpush1.bf16.msra.mxu0 0
      %2024 = vmatprep.subr.bf16.mxu0 0
      %2025 = vmatpush1.bf16.msra.mxu0 0
      %2026 = vmatprep.subr.bf16.mxu0 0
      %2027 = vmatpush1.bf16.msra.mxu0 0
      %2028 = vmatprep.subr.bf16.mxu0 0
      %2029 = vmatpush1.bf16.msra.mxu0 0
      %2030 = vmatprep.subr.bf16.mxu0 0
      %2031 = vmatpush1.bf16.msra.mxu0 0
      %2032 = vmatprep.subr.bf16.mxu0 0
      %2033 = vmatpush1.bf16.msra.mxu0 0
      %2034 = vmatprep.subr.bf16.mxu0 0
      %2035 = vmatpush1.bf16.msra.mxu0 0
      %2036 = vmatprep.subr.bf16.mxu0 0
      %2037 = vmatpush1.bf16.msra.mxu0 0
      %2038 = vmatprep.subr.bf16.mxu0 0
      %2039 = vmatpush1.bf16.msra.mxu0 0
      %2040 = vmatprep.subr.bf16.mxu0 0
      %2041 = vmatpush1.bf16.msra.mxu0 0
      %2042 = vmatprep.subr.bf16.mxu0 0
      %2043 = vmatpush1.bf16.msra.mxu0 0
      %2044 = vmatprep.subr.bf16.mxu0 0
      %2045 = vmatpush1.bf16.msra.mxu0 0
      %2046 = vmatprep.subr.bf16.mxu0 0
      %2047 = vmatpush1.bf16.msra.mxu0 0
      %2048 = vmatprep.mubr.bf16.mxu0 0
      %2049 = vmatmul.mubr.bf16.gmra.mrb[0].mxu0 %v1964
      %v2050 = vpop.f32.mrb[0].mxu0
      %v2051 = vadd.f32 0.0, %v2050
      %v2052 = vpop.f32.mrb[0].mxu0
      %v2053 = vpop.f32.mrb[0].mxu0
      %v2054 = vpop.f32.mrb[0].mxu0
      %2055 = vdwg.mxu0
      %v2056 = vadd.f32 %v1950, %v2010
      %v2057 = vadd.f32 %v1951, %v2012
      %v2058 = vadd.f32 %v1952, %v2051
      %s2059 = scalar_lea.vmem %s4, 10
      %v2060 = vld [vmem:[%s2059] sm:$0x3]
      %2061 = vrot.lane.b32.xlu0 %v1544, 108
      %v2062 = vpop.permute.xlu0 %2061
      %2063 = vrot.lane.b32.xlu0 %v1545, 108
      %v2064 = vpop.permute.xlu0 %2063
      %2065 = vrot.lane.b32.xlu0 %v1546, 108
      %v2066 = vpop.permute.xlu0 %2065
      %v2067 = vsel %vm910, %v2062, %v2064
      %v2068 = vsel %vm910, %v2064, %v2066
      %v2070 = vsel %vm393, %v2060, 0
      %v2073 = vsel %vm397, %v2067, 0
      %v2076 = vsel %vm397, %v2068, 0
      %v2079 = vsel %vm397, %v2066, 0
      %2081 = vmatprep.subr.bf16.mxu0 %v2076
      %2082 = vmatpush1.bf16.msra.mxu0 %v2073
      %2083 = vmatprep.subr.bf16.mxu0 0
      %2084 = vmatpush1.bf16.msra.mxu0 0
      %2085 = vmatprep.subr.bf16.mxu0 0
      %2086 = vmatpush1.bf16.msra.mxu0 0
      %2087 = vmatprep.subr.bf16.mxu0 0
      %2088 = vmatpush1.bf16.msra.mxu0 0
      %2089 = vmatprep.subr.bf16.mxu0 0
      %2090 = vmatpush1.bf16.msra.mxu0 0
      %2091 = vmatprep.subr.bf16.mxu0 0
      %2092 = vmatpush1.bf16.msra.mxu0 0
      %2093 = vmatprep.subr.bf16.mxu0 0
      %2094 = vmatpush1.bf16.msra.mxu0 0
      %2095 = vmatprep.subr.bf16.mxu0 0
      %2096 = vmatpush1.bf16.msra.mxu0 0
      %2097 = vmatprep.subr.bf16.mxu0 0
      %2098 = vmatpush1.bf16.msra.mxu0 0
      %2099 = vmatprep.subr.bf16.mxu0 0
      %2100 = vmatpush1.bf16.msra.mxu0 0
      %2101 = vmatprep.subr.bf16.mxu0 0
      %2102 = vmatpush1.bf16.msra.mxu0 0
      %2103 = vmatprep.subr.bf16.mxu0 0
      %2104 = vmatpush1.bf16.msra.mxu0 0
      %2105 = vmatprep.subr.bf16.mxu0 0
      %2106 = vmatpush1.bf16.msra.mxu0 0
      %2107 = vmatprep.subr.bf16.mxu0 0
      %2108 = vmatpush1.bf16.msra.mxu0 0
      %2109 = vmatprep.subr.bf16.mxu0 0
      %2110 = vmatpush1.bf16.msra.mxu0 0
      %2111 = vmatprep.subr.bf16.mxu0 0
      %2112 = vmatpush1.bf16.msra.mxu0 0
      %2113 = vmatprep.mubr.bf16.mxu0 0
      %2114 = vmatmul.mubr.bf16.gmra.mrb[0].mxu0 %v2070
      %v2115 = vpop.f32.mrb[0].mxu0
      %v2116 = vadd.f32 0.0, %v2115
      %v2117 = vpop.f32.mrb[0].mxu0
      %v2118 = vadd.f32 0.0, %v2117
      %v2119 = vpop.f32.mrb[0].mxu0
      %v2120 = vpop.f32.mrb[0].mxu0
      %2121 = vdwg.mxu0
      %2122 = vmatprep.subr.bf16.mxu0 0
      %2123 = vmatpush1.bf16.msra.mxu0 %v2079
      %2124 = vmatprep.subr.bf16.mxu0 0
      %2125 = vmatpush1.bf16.msra.mxu0 0
      %2126 = vmatprep.subr.bf16.mxu0 0
      %2127 = vmatpush1.bf16.msra.mxu0 0
      %2128 = vmatprep.subr.bf16.mxu0 0
      %2129 = vmatpush1.bf16.msra.mxu0 0
      %2130 = vmatprep.subr.bf16.mxu0 0
      %2131 = vmatpush1.bf16.msra.mxu0 0
      %2132 = vmatprep.subr.bf16.mxu0 0
      %2133 = vmatpush1.bf16.msra.mxu0 0
      %2134 = vmatprep.subr.bf16.mxu0 0
      %2135 = vmatpush1.bf16.msra.mxu0 0
      %2136 = vmatprep.subr.bf16.mxu0 0
      %2137 = vmatpush1.bf16.msra.mxu0 0
      %2138 = vmatprep.subr.bf16.mxu0 0
      %2139 = vmatpush1.bf16.msra.mxu0 0
      %2140 = vmatprep.subr.bf16.mxu0 0
      %2141 = vmatpush1.bf16.msra.mxu0 0
      %2142 = vmatprep.subr.bf16.mxu0 0
      %2143 = vmatpush1.bf16.msra.mxu0 0
      %2144 = vmatprep.subr.bf16.mxu0 0
      %2145 = vmatpush1.bf16.msra.mxu0 0
      %2146 = vmatprep.subr.bf16.mxu0 0
      %2147 = vmatpush1.bf16.msra.mxu0 0
      %2148 = vmatprep.subr.bf16.mxu0 0
      %2149 = vmatpush1.bf16.msra.mxu0 0
      %2150 = vmatprep.subr.bf16.mxu0 0
      %2151 = vmatpush1.bf16.msra.mxu0 0
      %2152 = vmatprep.subr.bf16.mxu0 0
      %2153 = vmatpush1.bf16.msra.mxu0 0
      %2154 = vmatprep.mubr.bf16.mxu0 0
      %2155 = vmatmul.mubr.bf16.gmra.mrb[0].mxu0 %v2070
      %v2156 = vpop.f32.mrb[0].mxu0
      %v2157 = vadd.f32 0.0, %v2156
      %v2158 = vpop.f32.mrb[0].mxu0
      %v2159 = vpop.f32.mrb[0].mxu0
      %v2160 = vpop.f32.mrb[0].mxu0
      %2161 = vdwg.mxu0
      %v2162 = vadd.f32 %v2056, %v2116
      %v2163 = vadd.f32 %v2057, %v2118
      %v2164 = vadd.f32 %v2058, %v2157
      %s2165 = scalar_lea.vmem %s4, 12
      %v2166 = vld [vmem:[%s2165] sm:$0x3]
      %2167 = vrot.lane.b32.xlu0 %v1544, 92
      %v2168 = vpop.permute.xlu0 %2167
      %2169 = vrot.lane.b32.xlu0 %v1545, 92
      %v2170 = vpop.permute.xlu0 %2169
      %2171 = vrot.lane.b32.xlu0 %v1546, 92
      %v2172 = vpop.permute.xlu0 %2171
      %v2173 = vsel %vm1017, %v2168, %v2170
      %v2174 = vsel %vm1017, %v2170, %v2172
      %v2176 = vsel %vm393, %v2166, 0
      %v2179 = vsel %vm397, %v2173, 0
      %v2182 = vsel %vm397, %v2174, 0
      %v2185 = vsel %vm397, %v2172, 0
      %2187 = vmatprep.subr.bf16.mxu0 %v2182
      %2188 = vmatpush1.bf16.msra.mxu0 %v2179
      %2189 = vmatprep.subr.bf16.mxu0 0
      %2190 = vmatpush1.bf16.msra.mxu0 0
      %2191 = vmatprep.subr.bf16.mxu0 0
      %2192 = vmatpush1.bf16.msra.mxu0 0
      %2193 = vmatprep.subr.bf16.mxu0 0
      %2194 = vmatpush1.bf16.msra.mxu0 0
      %2195 = vmatprep.subr.bf16.mxu0 0
      %2196 = vmatpush1.bf16.msra.mxu0 0
      %2197 = vmatprep.subr.bf16.mxu0 0
      %2198 = vmatpush1.bf16.msra.mxu0 0
      %2199 = vmatprep.subr.bf16.mxu0 0
      %2200 = vmatpush1.bf16.msra.mxu0 0
      %2201 = vmatprep.subr.bf16.mxu0 0
      %2202 = vmatpush1.bf16.msra.mxu0 0
      %2203 = vmatprep.subr.bf16.mxu0 0
      %2204 = vmatpush1.bf16.msra.mxu0 0
      %2205 = vmatprep.subr.bf16.mxu0 0
      %2206 = vmatpush1.bf16.msra.mxu0 0
      %2207 = vmatprep.subr.bf16.mxu0 0
      %2208 = vmatpush1.bf16.msra.mxu0 0
      %2209 = vmatprep.subr.bf16.mxu0 0
      %2210 = vmatpush1.bf16.msra.mxu0 0
      %2211 = vmatprep.subr.bf16.mxu0 0
      %2212 = vmatpush1.bf16.msra.mxu0 0
      %2213 = vmatprep.subr.bf16.mxu0 0
      %2214 = vmatpush1.bf16.msra.mxu0 0
      %2215 = vmatprep.subr.bf16.mxu0 0
      %2216 = vmatpush1.bf16.msra.mxu0 0
      %2217 = vmatprep.subr.bf16.mxu0 0
      %2218 = vmatpush1.bf16.msra.mxu0 0
      %2219 = vmatprep.mubr.bf16.mxu0 0
      %2220 = vmatmul.mubr.bf16.gmra.mrb[0].mxu0 %v2176
      %v2221 = vpop.f32.mrb[0].mxu0
      %v2222 = vadd.f32 0.0, %v2221
      %v2223 = vpop.f32.mrb[0].mxu0
      %v2224 = vadd.f32 0.0, %v2223
      %v2225 = vpop.f32.mrb[0].mxu0
      %v2226 = vpop.f32.mrb[0].mxu0
      %2227 = vdwg.mxu0
      %2228 = vmatprep.subr.bf16.mxu0 0
      %2229 = vmatpush1.bf16.msra.mxu0 %v2185
      %2230 = vmatprep.subr.bf16.mxu0 0
      %2231 = vmatpush1.bf16.msra.mxu0 0
      %2232 = vmatprep.subr.bf16.mxu0 0
      %2233 = vmatpush1.bf16.msra.mxu0 0
      %2234 = vmatprep.subr.bf16.mxu0 0
      %2235 = vmatpush1.bf16.msra.mxu0 0
      %2236 = vmatprep.subr.bf16.mxu0 0
      %2237 = vmatpush1.bf16.msra.mxu0 0
      %2238 = vmatprep.subr.bf16.mxu0 0
      %2239 = vmatpush1.bf16.msra.mxu0 0
      %2240 = vmatprep.subr.bf16.mxu0 0
      %2241 = vmatpush1.bf16.msra.mxu0 0
      %2242 = vmatprep.subr.bf16.mxu0 0
      %2243 = vmatpush1.bf16.msra.mxu0 0
      %2244 = vmatprep.subr.bf16.mxu0 0
      %2245 = vmatpush1.bf16.msra.mxu0 0
      %2246 = vmatprep.subr.bf16.mxu0 0
      %2247 = vmatpush1.bf16.msra.mxu0 0
      %2248 = vmatprep.subr.bf16.mxu0 0
      %2249 = vmatpush1.bf16.msra.mxu0 0
      %2250 = vmatprep.subr.bf16.mxu0 0
      %2251 = vmatpush1.bf16.msra.mxu0 0
      %2252 = vmatprep.subr.bf16.mxu0 0
      %2253 = vmatpush1.bf16.msra.mxu0 0
      %2254 = vmatprep.subr.bf16.mxu0 0
      %2255 = vmatpush1.bf16.msra.mxu0 0
      %2256 = vmatprep.subr.bf16.mxu0 0
      %2257 = vmatpush1.bf16.msra.mxu0 0
      %2258 = vmatprep.subr.bf16.mxu0 0
      %2259 = vmatpush1.bf16.msra.mxu0 0
      %2260 = vmatprep.mubr.bf16.mxu0 0
      %2261 = vmatmul.mubr.bf16.gmra.mrb[0].mxu0 %v2176
      %v2262 = vpop.f32.mrb[0].mxu0
      %v2263 = vadd.f32 0.0, %v2262
      %v2264 = vpop.f32.mrb[0].mxu0
      %v2265 = vpop.f32.mrb[0].mxu0
      %v2266 = vpop.f32.mrb[0].mxu0
      %2267 = vdwg.mxu0
      %v2268 = vadd.f32 %v2162, %v2222
      %v2269 = vadd.f32 %v2163, %v2224
      %v2270 = vadd.f32 %v2164, %v2263
      %s2271 = scalar_lea.vmem %s4, 14
      %v2272 = vld [vmem:[%s2271] sm:$0x3]
      %2273 = vrot.lane.b32.xlu0 %v1544, 91
      %v2274 = vpop.permute.xlu0 %2273
      %2275 = vrot.lane.b32.xlu0 %v1545, 91
      %v2276 = vpop.permute.xlu0 %2275
      %2277 = vrot.lane.b32.xlu0 %v1546, 91
      %v2278 = vpop.permute.xlu0 %2277
      %v2279 = vsel %vm1124, %v2274, %v2276
      %v2280 = vsel %vm1124, %v2276, %v2278
      %v2282 = vsel %vm393, %v2272, 0
      %v2285 = vsel %vm397, %v2279, 0
      %v2288 = vsel %vm397, %v2280, 0
      %v2291 = vsel %vm397, %v2278, 0
      %2293 = vmatprep.subr.bf16.mxu0 %v2288
      %2294 = vmatpush1.bf16.msra.mxu0 %v2285
      %2295 = vmatprep.subr.bf16.mxu0 0
      %2296 = vmatpush1.bf16.msra.mxu0 0
      %2297 = vmatprep.subr.bf16.mxu0 0
      %2298 = vmatpush1.bf16.msra.mxu0 0
      %2299 = vmatprep.subr.bf16.mxu0 0
      %2300 = vmatpush1.bf16.msra.mxu0 0
      %2301 = vmatprep.subr.bf16.mxu0 0
      %2302 = vmatpush1.bf16.msra.mxu0 0
      %2303 = vmatprep.subr.bf16.mxu0 0
      %2304 = vmatpush1.bf16.msra.mxu0 0
      %2305 = vmatprep.subr.bf16.mxu0 0
      %2306 = vmatpush1.bf16.msra.mxu0 0
      %2307 = vmatprep.subr.bf16.mxu0 0
      %2308 = vmatpush1.bf16.msra.mxu0 0
      %2309 = vmatprep.subr.bf16.mxu0 0
      %2310 = vmatpush1.bf16.msra.mxu0 0
      %2311 = vmatprep.subr.bf16.mxu0 0
      %2312 = vmatpush1.bf16.msra.mxu0 0
      %2313 = vmatprep.subr.bf16.mxu0 0
      %2314 = vmatpush1.bf16.msra.mxu0 0
      %2315 = vmatprep.subr.bf16.mxu0 0
      %2316 = vmatpush1.bf16.msra.mxu0 0
      %2317 = vmatprep.subr.bf16.mxu0 0
      %2318 = vmatpush1.bf16.msra.mxu0 0
      %2319 = vmatprep.subr.bf16.mxu0 0
      %2320 = vmatpush1.bf16.msra.mxu0 0
      %2321 = vmatprep.subr.bf16.mxu0 0
      %2322 = vmatpush1.bf16.msra.mxu0 0
      %2323 = vmatprep.subr.bf16.mxu0 0
      %2324 = vmatpush1.bf16.msra.mxu0 0
      %2325 = vmatprep.mubr.bf16.mxu0 0
      %2326 = vmatmul.mubr.bf16.gmra.mrb[0].mxu0 %v2282
      %v2327 = vpop.f32.mrb[0].mxu0
      %v2328 = vadd.f32 0.0, %v2327
      %v2329 = vpop.f32.mrb[0].mxu0
      %v2330 = vadd.f32 0.0, %v2329
      %v2331 = vpop.f32.mrb[0].mxu0
      %v2332 = vpop.f32.mrb[0].mxu0
      %2333 = vdwg.mxu0
      %2334 = vmatprep.subr.bf16.mxu0 0
      %2335 = vmatpush1.bf16.msra.mxu0 %v2291
      %2336 = vmatprep.subr.bf16.mxu0 0
      %2337 = vmatpush1.bf16.msra.mxu0 0
      %2338 = vmatprep.subr.bf16.mxu0 0
      %2339 = vmatpush1.bf16.msra.mxu0 0
      %2340 = vmatprep.subr.bf16.mxu0 0
      %2341 = vmatpush1.bf16.msra.mxu0 0
      %2342 = vmatprep.subr.bf16.mxu0 0
      %2343 = vmatpush1.bf16.msra.mxu0 0
      %2344 = vmatprep.subr.bf16.mxu0 0
      %2345 = vmatpush1.bf16.msra.mxu0 0
      %2346 = vmatprep.subr.bf16.mxu0 0
      %2347 = vmatpush1.bf16.msra.mxu0 0
      %2348 = vmatprep.subr.bf16.mxu0 0
      %2349 = vmatpush1.bf16.msra.mxu0 0
      %2350 = vmatprep.subr.bf16.mxu0 0
      %2351 = vmatpush1.bf16.msra.mxu0 0
      %2352 = vmatprep.subr.bf16.mxu0 0
      %2353 = vmatpush1.bf16.msra.mxu0 0
      %2354 = vmatprep.subr.bf16.mxu0 0
      %2355 = vmatpush1.bf16.msra.mxu0 0
      %2356 = vmatprep.subr.bf16.mxu0 0
      %2357 = vmatpush1.bf16.msra.mxu0 0
      %2358 = vmatprep.subr.bf16.mxu0 0
      %2359 = vmatpush1.bf16.msra.mxu0 0
      %2360 = vmatprep.subr.bf16.mxu0 0
      %2361 = vmatpush1.bf16.msra.mxu0 0
      %2362 = vmatprep.subr.bf16.mxu0 0
      %2363 = vmatpush1.bf16.msra.mxu0 0
      %2364 = vmatprep.subr.bf16.mxu0 0
      %2365 = vmatpush1.bf16.msra.mxu0 0
      %2366 = vmatprep.mubr.bf16.mxu0 0
      %2367 = vmatmul.mubr.bf16.gmra.mrb[0].mxu0 %v2282
      %v2368 = vpop.f32.mrb[0].mxu0
      %v2369 = vadd.f32 0.0, %v2368
      %v2370 = vpop.f32.mrb[0].mxu0
      %v2371 = vpop.f32.mrb[0].mxu0
      %v2372 = vpop.f32.mrb[0].mxu0
      %2373 = vdwg.mxu0
      %v2374 = vadd.f32 %v2268, %v2328
      %v2375 = vadd.f32 %v2269, %v2330
      %v2376 = vadd.f32 %v2270, %v2369
      %s2377 = scalar_lea.vmem %s4, 16
      %v2378 = vld [vmem:[%s2377] sm:$0x3]
      %2379 = vrot.lane.b32.xlu0 %v1544, 90
      %v2380 = vpop.permute.xlu0 %2379
      %2381 = vrot.lane.b32.xlu0 %v1545, 90
      %v2382 = vpop.permute.xlu0 %2381
      %2383 = vrot.lane.b32.xlu0 %v1546, 90
      %v2384 = vpop.permute.xlu0 %2383
      %v2385 = vsel %vm1231, %v2380, %v2382
      %v2386 = vsel %vm1231, %v2382, %v2384
      %v2388 = vsel %vm393, %v2378, 0
      %v2391 = vsel %vm397, %v2385, 0
      %v2394 = vsel %vm397, %v2386, 0
      %v2397 = vsel %vm397, %v2384, 0
      %2399 = vmatprep.subr.bf16.mxu0 %v2394
      %2400 = vmatpush1.bf16.msra.mxu0 %v2391
      %2401 = vmatprep.subr.bf16.mxu0 0
      %2402 = vmatpush1.bf16.msra.mxu0 0
      %2403 = vmatprep.subr.bf16.mxu0 0
      %2404 = vmatpush1.bf16.msra.mxu0 0
      %2405 = vmatprep.subr.bf16.mxu0 0
      %2406 = vmatpush1.bf16.msra.mxu0 0
      %2407 = vmatprep.subr.bf16.mxu0 0
      %2408 = vmatpush1.bf16.msra.mxu0 0
      %2409 = vmatprep.subr.bf16.mxu0 0
      %2410 = vmatpush1.bf16.msra.mxu0 0
      %2411 = vmatprep.subr.bf16.mxu0 0
      %2412 = vmatpush1.bf16.msra.mxu0 0
      %2413 = vmatprep.subr.bf16.mxu0 0
      %2414 = vmatpush1.bf16.msra.mxu0 0
      %2415 = vmatprep.subr.bf16.mxu0 0
      %2416 = vmatpush1.bf16.msra.mxu0 0
      %2417 = vmatprep.subr.bf16.mxu0 0
      %2418 = vmatpush1.bf16.msra.mxu0 0
      %2419 = vmatprep.subr.bf16.mxu0 0
      %2420 = vmatpush1.bf16.msra.mxu0 0
      %2421 = vmatprep.subr.bf16.mxu0 0
      %2422 = vmatpush1.bf16.msra.mxu0 0
      %2423 = vmatprep.subr.bf16.mxu0 0
      %2424 = vmatpush1.bf16.msra.mxu0 0
      %2425 = vmatprep.subr.bf16.mxu0 0
      %2426 = vmatpush1.bf16.msra.mxu0 0
      %2427 = vmatprep.subr.bf16.mxu0 0
      %2428 = vmatpush1.bf16.msra.mxu0 0
      %2429 = vmatprep.subr.bf16.mxu0 0
      %2430 = vmatpush1.bf16.msra.mxu0 0
      %2431 = vmatprep.mubr.bf16.mxu0 0
      %2432 = vmatmul.mubr.bf16.gmra.mrb[0].mxu0 %v2388
      %v2433 = vpop.f32.mrb[0].mxu0
      %v2434 = vadd.f32 0.0, %v2433
      %v2435 = vpop.f32.mrb[0].mxu0
      %v2436 = vadd.f32 0.0, %v2435
      %v2437 = vpop.f32.mrb[0].mxu0
      %v2438 = vpop.f32.mrb[0].mxu0
      %2439 = vdwg.mxu0
      %2440 = vmatprep.subr.bf16.mxu0 0
      %2441 = vmatpush1.bf16.msra.mxu0 %v2397
      %2442 = vmatprep.subr.bf16.mxu0 0
      %2443 = vmatpush1.bf16.msra.mxu0 0
      %2444 = vmatprep.subr.bf16.mxu0 0
      %2445 = vmatpush1.bf16.msra.mxu0 0
      %2446 = vmatprep.subr.bf16.mxu0 0
      %2447 = vmatpush1.bf16.msra.mxu0 0
      %2448 = vmatprep.subr.bf16.mxu0 0
      %2449 = vmatpush1.bf16.msra.mxu0 0
      %2450 = vmatprep.subr.bf16.mxu0 0
      %2451 = vmatpush1.bf16.msra.mxu0 0
      %2452 = vmatprep.subr.bf16.mxu0 0
      %2453 = vmatpush1.bf16.msra.mxu0 0
      %2454 = vmatprep.subr.bf16.mxu0 0
      %2455 = vmatpush1.bf16.msra.mxu0 0
      %2456 = vmatprep.subr.bf16.mxu0 0
      %2457 = vmatpush1.bf16.msra.mxu0 0
      %2458 = vmatprep.subr.bf16.mxu0 0
      %2459 = vmatpush1.bf16.msra.mxu0 0
      %2460 = vmatprep.subr.bf16.mxu0 0
      %2461 = vmatpush1.bf16.msra.mxu0 0
      %2462 = vmatprep.subr.bf16.mxu0 0
      %2463 = vmatpush1.bf16.msra.mxu0 0
      %2464 = vmatprep.subr.bf16.mxu0 0
      %2465 = vmatpush1.bf16.msra.mxu0 0
      %2466 = vmatprep.subr.bf16.mxu0 0
      %2467 = vmatpush1.bf16.msra.mxu0 0
      %2468 = vmatprep.subr.bf16.mxu0 0
      %2469 = vmatpush1.bf16.msra.mxu0 0
      %2470 = vmatprep.subr.bf16.mxu0 0
      %2471 = vmatpush1.bf16.msra.mxu0 0
      %2472 = vmatprep.mubr.bf16.mxu0 0
      %2473 = vmatmul.mubr.bf16.gmra.mrb[0].mxu0 %v2388
      %v2474 = vpop.f32.mrb[0].mxu0
      %v2475 = vadd.f32 0.0, %v2474
      %v2476 = vpop.f32.mrb[0].mxu0
      %v2477 = vpop.f32.mrb[0].mxu0
      %v2478 = vpop.f32.mrb[0].mxu0
      %2479 = vdwg.mxu0
      %v2480 = vadd.f32 %v2374, %v2434
      %v2481 = vadd.f32 %v2375, %v2436
      %v2482 = vadd.f32 %v2376, %v2475
      %2484 = vset.pattern.permute.xlu0 0
      %2485 = vperm.xlu0 %2484, %v1533
      %v2486 = vpop.permute.xlu0 %2485
      %v2488 = vadd.f32 %v2480, %v2486
      %v2489 = vadd.f32 %v2481, %v2486
      %v2490 = vadd.f32 %v2482, %v2486
      %v2491 = vmax.f32 %v2488, 0.0
      %v2492 = vmax.f32 %v2489, 0.0
      %v2493 = vmax.f32 %v2490, 0.0
      %v2494 = vsub.f32 0.0, %v2488
      %v2495 = vsub.f32 0.0, %v2489
      %v2496 = vsub.f32 0.0, %v2490
      %v2497 = vmax.f32 %v2494, 0.0
      %v2498 = vmax.f32 %v2495, 0.0
      %v2499 = vmax.f32 %v2496, 0.0
      %v2503 = vrot.slane %v2497, 4
      %v2504 = vrot.slane %v2498, 4
      %v2505 = vrot.slane %v2499, 4
      %v2509 = vsel %vm397, %v2491, %v2503
      %v2510 = vsel %vm397, %v2492, %v2504
      %v2511 = vsel %vm397, %v2493, %v2505
      %v2512 = vmul.f32 %v2509, %v317
      %v2513 = vmul.f32 %v2510, %v321
      %v2514 = vmul.f32 %v2511, %v325
      %v2515 = vpack.c.bf16 %v2512, %v2512
      %v2516 = vpack.c.bf16 %v2513, %v2513
      %v2517 = vpack.c.bf16 %v2514, %v2514
      %v2518 = vld [vmem:[#allocation3] sm:$0xff]
      %v2519 = vld [vmem:[#allocation3 + $0x8] sm:$0xff]
      %v2520 = vld [vmem:[#allocation3 + $0x10] sm:$0xff]
      %v2521 = vld [vmem:[#allocation3 + $0x18] sm:$0xf]
      %v2522 = vld [vmem:[#allocation3 + $0x20] sm:$0xf]
      %v2523 = vld [vmem:[#allocation3 + $0x28] sm:$0xf]
      %s2524 = scalar_lea.vmem %s6, 8
      %v2525 = vld [vmem:[%s2524] sm:$0xf]
      %v2526 = vld [vmem:[%s2524 + $0x4] sm:$0x3]
      %v2529 = vunpack.c.l.b16 %v2525
      %v2530 = vunpack.c.l.b16 %v2526
      %v2531 = vpack.c.b16 %v2530, %v2529
      %v2533 = vsel %vm393, %v2531, 0
      %v2536 = vsel %vm397, %v2515, 0
      %v2539 = vsel %vm397, %v2516, 0
      %v2542 = vsel %vm397, %v2517, 0
      %2544 = vmatprep.subr.bf16.mxu0 %v2539
      %2545 = vmatpush1.bf16.msra.mxu0 %v2536
      %2546 = vmatprep.subr.bf16.mxu0 0
      %2547 = vmatpush1.bf16.msra.mxu0 0
      %2548 = vmatprep.subr.bf16.mxu0 0
      %2549 = vmatpush1.bf16.msra.mxu0 0
      %2550 = vmatprep.subr.bf16.mxu0 0
      %2551 = vmatpush1.bf16.msra.mxu0 0
      %2552 = vmatprep.subr.bf16.mxu0 0
      %2553 = vmatpush1.bf16.msra.mxu0 0
      %2554 = vmatprep.subr.bf16.mxu0 0
      %2555 = vmatpush1.bf16.msra.mxu0 0
      %2556 = vmatprep.subr.bf16.mxu0 0
      %2557 = vmatpush1.bf16.msra.mxu0 0
      %2558 = vmatprep.subr.bf16.mxu0 0
      %2559 = vmatpush1.bf16.msra.mxu0 0
      %2560 = vmatprep.subr.bf16.mxu0 0
      %2561 = vmatpush1.bf16.msra.mxu0 0
      %2562 = vmatprep.subr.bf16.mxu0 0
      %2563 = vmatpush1.bf16.msra.mxu0 0
      %2564 = vmatprep.subr.bf16.mxu0 0
      %2565 = vmatpush1.bf16.msra.mxu0 0
      %2566 = vmatprep.subr.bf16.mxu0 0
      %2567 = vmatpush1.bf16.msra.mxu0 0
      %2568 = vmatprep.subr.bf16.mxu0 0
      %2569 = vmatpush1.bf16.msra.mxu0 0
      %2570 = vmatprep.subr.bf16.mxu0 0
      %2571 = vmatpush1.bf16.msra.mxu0 0
      %2572 = vmatprep.subr.bf16.mxu0 0
      %2573 = vmatpush1.bf16.msra.mxu0 0
      %2574 = vmatprep.subr.bf16.mxu0 0
      %2575 = vmatpush1.bf16.msra.mxu0 0
      %2576 = vmatprep.mubr.bf16.mxu0 0
      %2577 = vmatmul.mubr.bf16.gmra.mrb[0].mxu0 %v2533
      %v2578 = vpop.f32.mrb[0].mxu0
      %v2579 = vadd.f32 0.0, %v2578
      %v2580 = vpop.f32.mrb[0].mxu0
      %v2581 = vadd.f32 0.0, %v2580
      %v2582 = vpop.f32.mrb[0].mxu0
      %v2583 = vadd.f32 0.0, %v2582
      %v2584 = vpop.f32.mrb[0].mxu0
      %v2585 = vadd.f32 0.0, %v2584
      %2586 = vdwg.mxu0
      %2587 = vmatprep.subr.bf16.mxu0 0
      %2588 = vmatpush1.bf16.msra.mxu0 %v2542
      %2589 = vmatprep.subr.bf16.mxu0 0
      %2590 = vmatpush1.bf16.msra.mxu0 0
      %2591 = vmatprep.subr.bf16.mxu0 0
      %2592 = vmatpush1.bf16.msra.mxu0 0
      %2593 = vmatprep.subr.bf16.mxu0 0
      %2594 = vmatpush1.bf16.msra.mxu0 0
      %2595 = vmatprep.subr.bf16.mxu0 0
      %2596 = vmatpush1.bf16.msra.mxu0 0
      %2597 = vmatprep.subr.bf16.mxu0 0
      %2598 = vmatpush1.bf16.msra.mxu0 0
      %2599 = vmatprep.subr.bf16.mxu0 0
      %2600 = vmatpush1.bf16.msra.mxu0 0
      %2601 = vmatprep.subr.bf16.mxu0 0
      %2602 = vmatpush1.bf16.msra.mxu0 0
      %2603 = vmatprep.subr.bf16.mxu0 0
      %2604 = vmatpush1.bf16.msra.mxu0 0
      %2605 = vmatprep.subr.bf16.mxu0 0
      %2606 = vmatpush1.bf16.msra.mxu0 0
      %2607 = vmatprep.subr.bf16.mxu0 0
      %2608 = vmatpush1.bf16.msra.mxu0 0
      %2609 = vmatprep.subr.bf16.mxu0 0
      %2610 = vmatpush1.bf16.msra.mxu0 0
      %2611 = vmatprep.subr.bf16.mxu0 0
      %2612 = vmatpush1.bf16.msra.mxu0 0
      %2613 = vmatprep.subr.bf16.mxu0 0
      %2614 = vmatpush1.bf16.msra.mxu0 0
      %2615 = vmatprep.subr.bf16.mxu0 0
      %2616 = vmatpush1.bf16.msra.mxu0 0
      %2617 = vmatprep.subr.bf16.mxu0 0
      %2618 = vmatpush1.bf16.msra.mxu0 0
      %2619 = vmatprep.mubr.bf16.mxu0 0
      %2620 = vmatmul.mubr.bf16.gmra.mrb[0].mxu0 %v2533
      %v2621 = vpop.f32.mrb[0].mxu0
      %v2622 = vadd.f32 0.0, %v2621
      %v2623 = vpop.f32.mrb[0].mxu0
      %v2624 = vpop.f32.mrb[0].mxu0
      %v2625 = vadd.f32 0.0, %v2624
      %v2626 = vpop.f32.mrb[0].mxu0
      %2627 = vdwg.mxu0
      %v2628 = vadd.f32 %v2518, %v2579
      %v2629 = vadd.f32 %v2519, %v2581
      %v2630 = vadd.f32 %v2520, %v2622
      %v2631 = vadd.f32 %v2521, %v2583
      %v2632 = vadd.f32 %v2522, %v2585
      %v2633 = vadd.f32 %v2523, %v2625
      %2634 = vst [vmem:[#allocation3] sm:$0xff] %v2628
      %2635 = vst [vmem:[#allocation3 + $0x8] sm:$0xff] %v2629
      %2636 = vst.msk [vmem:[#allocation3 + $0x10] sm:$0xff] %vm1382, %v2630
      %2637 = vst [vmem:[#allocation3 + $0x18] sm:$0xf] %v2631
      %2638 = vst [vmem:[#allocation3 + $0x20] sm:$0xf] %v2632
      %2639 = vst.msk [vmem:[#allocation3 + $0x28] sm:$0xf] %vm1386, %v2633
      %v2643 = vunpack.c.l.b16 %v2515
      %v2644 = vunpack.c.l.b16 %v2516
      %v2645 = vunpack.c.l.b16 %v2517
      %v2646 = vpack.c.b16 %v2644, %v2643
      %v2647 = vpack.c.b16 %v2645, %v2645
      %2648 = vrot.lane.b32.xlu0 %v2646, 19
      %v2649 = vpop.permute.xlu0 %2648
      %2650 = vrot.lane.b32.xlu0 %v2647, 19
      %v2651 = vpop.permute.xlu0 %2650
      %v2652 = vrot.slane %v2649, 4
      %v2653 = vsel %vm1522, %v2652, %v2649
      %v2654 = vsel %vm1522, %v2652, %v2651
      %2657 = vst.msk [vmem:[#allocation2] sm:$0xff] %vm1529, %v2653
      %2658 = vst.msk [vmem:[#allocation2 + $0x8] sm:$0xf] %vm1531, %v2654
      %s2659 = scalar_lea.vmem %s5, 4
      %v2660 = vld [vmem:[%s2659] sm:$0xf]
      %s2661 = scalar_lea.vmem %s4, 18
      %v2662 = vld [vmem:[%s2661] sm:$0x3]
      %v2663 = vld [vmem:[#allocation2] sm:$0xff]
      %v2664 = vld [vmem:[#allocation2 + $0x8] sm:$0xf]
      %s2665 = scalar_lea.vmem %s4, 20
      %v2666 = vld [vmem:[%s2665] sm:$0x3]
      %v2669 = vunpack.c.l.b16 %v2663
      %v2670 = vunpack.c.h.b16 %v2663
      %v2671 = vunpack.c.l.b16 %v2664
      %v2672 = vpack.c.b16 %v2669, %v2669
      %v2673 = vpack.c.b16 %v2670, %v2670
      %v2674 = vpack.c.b16 %v2671, %v2671
      %2675 = vrot.lane.b32.xlu0 %v2672, 127
      %v2676 = vpop.permute.xlu0 %2675
      %2677 = vrot.lane.b32.xlu0 %v2673, 127
      %v2678 = vpop.permute.xlu0 %2677
      %2679 = vrot.lane.b32.xlu0 %v2674, 127
      %v2680 = vpop.permute.xlu0 %2679
      %v2681 = vsel %vm390, %v2676, %v2678
      %v2682 = vsel %vm390, %v2678, %v2680
      %v2684 = vsel %vm393, %v2666, 0
      %v2687 = vsel %vm397, %v2681, 0
      %v2690 = vsel %vm397, %v2682, 0
      %v2693 = vsel %vm397, %v2680, 0
      %2695 = vmatprep.subr.bf16.mxu0 %v2690
      %2696 = vmatpush1.bf16.msra.mxu0 %v2687
      %2697 = vmatprep.subr.bf16.mxu0 0
      %2698 = vmatpush1.bf16.msra.mxu0 0
      %2699 = vmatprep.subr.bf16.mxu0 0
      %2700 = vmatpush1.bf16.msra.mxu0 0
      %2701 = vmatprep.subr.bf16.mxu0 0
      %2702 = vmatpush1.bf16.msra.mxu0 0
      %2703 = vmatprep.subr.bf16.mxu0 0
      %2704 = vmatpush1.bf16.msra.mxu0 0
      %2705 = vmatprep.subr.bf16.mxu0 0
      %2706 = vmatpush1.bf16.msra.mxu0 0
      %2707 = vmatprep.subr.bf16.mxu0 0
      %2708 = vmatpush1.bf16.msra.mxu0 0
      %2709 = vmatprep.subr.bf16.mxu0 0
      %2710 = vmatpush1.bf16.msra.mxu0 0
      %2711 = vmatprep.subr.bf16.mxu0 0
      %2712 = vmatpush1.bf16.msra.mxu0 0
      %2713 = vmatprep.subr.bf16.mxu0 0
      %2714 = vmatpush1.bf16.msra.mxu0 0
      %2715 = vmatprep.subr.bf16.mxu0 0
      %2716 = vmatpush1.bf16.msra.mxu0 0
      %2717 = vmatprep.subr.bf16.mxu0 0
      %2718 = vmatpush1.bf16.msra.mxu0 0
      %2719 = vmatprep.subr.bf16.mxu0 0
      %2720 = vmatpush1.bf16.msra.mxu0 0
      %2721 = vmatprep.subr.bf16.mxu0 0
      %2722 = vmatpush1.bf16.msra.mxu0 0
      %2723 = vmatprep.subr.bf16.mxu0 0
      %2724 = vmatpush1.bf16.msra.mxu0 0
      %2725 = vmatprep.subr.bf16.mxu0 0
      %2726 = vmatpush1.bf16.msra.mxu0 0
      %2727 = vmatprep.mubr.bf16.mxu0 0
      %2728 = vmatmul.mubr.bf16.gmra.mrb[0].mxu0 %v2684
      %v2729 = vpop.f32.mrb[0].mxu0
      %v2730 = vadd.f32 0.0, %v2729
      %v2731 = vpop.f32.mrb[0].mxu0
      %v2732 = vadd.f32 0.0, %v2731
      %v2733 = vpop.f32.mrb[0].mxu0
      %v2734 = vpop.f32.mrb[0].mxu0
      %2735 = vdwg.mxu0
      %2736 = vmatprep.subr.bf16.mxu0 0
      %2737 = vmatpush1.bf16.msra.mxu0 %v2693
      %2738 = vmatprep.subr.bf16.mxu0 0
      %2739 = vmatpush1.bf16.msra.mxu0 0
      %2740 = vmatprep.subr.bf16.mxu0 0
      %2741 = vmatpush1.bf16.msra.mxu0 0
      %2742 = vmatprep.subr.bf16.mxu0 0
      %2743 = vmatpush1.bf16.msra.mxu0 0
      %2744 = vmatprep.subr.bf16.mxu0 0
      %2745 = vmatpush1.bf16.msra.mxu0 0
      %2746 = vmatprep.subr.bf16.mxu0 0
      %2747 = vmatpush1.bf16.msra.mxu0 0
      %2748 = vmatprep.subr.bf16.mxu0 0
      %2749 = vmatpush1.bf16.msra.mxu0 0
      %2750 = vmatprep.subr.bf16.mxu0 0
      %2751 = vmatpush1.bf16.msra.mxu0 0
      %2752 = vmatprep.subr.bf16.mxu0 0
      %2753 = vmatpush1.bf16.msra.mxu0 0
      %2754 = vmatprep.subr.bf16.mxu0 0
      %2755 = vmatpush1.bf16.msra.mxu0 0
      %2756 = vmatprep.subr.bf16.mxu0 0
      %2757 = vmatpush1.bf16.msra.mxu0 0
      %2758 = vmatprep.subr.bf16.mxu0 0
      %2759 = vmatpush1.bf16.msra.mxu0 0
      %2760 = vmatprep.subr.bf16.mxu0 0
      %2761 = vmatpush1.bf16.msra.mxu0 0
      %2762 = vmatprep.subr.bf16.mxu0 0
      %2763 = vmatpush1.bf16.msra.mxu0 0
      %2764 = vmatprep.subr.bf16.mxu0 0
      %2765 = vmatpush1.bf16.msra.mxu0 0
      %2766 = vmatprep.subr.bf16.mxu0 0
      %2767 = vmatpush1.bf16.msra.mxu0 0
      %2768 = vmatprep.mubr.bf16.mxu0 0
      %2769 = vmatmul.mubr.bf16.gmra.mrb[0].mxu0 %v2684
      %v2770 = vpop.f32.mrb[0].mxu0
      %v2771 = vadd.f32 0.0, %v2770
      %v2772 = vpop.f32.mrb[0].mxu0
      %v2773 = vpop.f32.mrb[0].mxu0
      %v2774 = vpop.f32.mrb[0].mxu0
      %2775 = vdwg.mxu0
      %v2777 = vsel %vm393, %v2662, 0
      %v2780 = vsel %vm397, %v2672, 0
      %v2783 = vsel %vm397, %v2673, 0
      %v2786 = vsel %vm397, %v2674, 0
      %2788 = vmatprep.subr.bf16.mxu0 %v2783
      %2789 = vmatpush1.bf16.msra.mxu0 %v2780
      %2790 = vmatprep.subr.bf16.mxu0 0
      %2791 = vmatpush1.bf16.msra.mxu0 0
      %2792 = vmatprep.subr.bf16.mxu0 0
      %2793 = vmatpush1.bf16.msra.mxu0 0
      %2794 = vmatprep.subr.bf16.mxu0 0
      %2795 = vmatpush1.bf16.msra.mxu0 0
      %2796 = vmatprep.subr.bf16.mxu0 0
      %2797 = vmatpush1.bf16.msra.mxu0 0
      %2798 = vmatprep.subr.bf16.mxu0 0
      %2799 = vmatpush1.bf16.msra.mxu0 0
      %2800 = vmatprep.subr.bf16.mxu0 0
      %2801 = vmatpush1.bf16.msra.mxu0 0
      %2802 = vmatprep.subr.bf16.mxu0 0
      %2803 = vmatpush1.bf16.msra.mxu0 0
      %2804 = vmatprep.subr.bf16.mxu0 0
      %2805 = vmatpush1.bf16.msra.mxu0 0
      %2806 = vmatprep.subr.bf16.mxu0 0
      %2807 = vmatpush1.bf16.msra.mxu0 0
      %2808 = vmatprep.subr.bf16.mxu0 0
      %2809 = vmatpush1.bf16.msra.mxu0 0
      %2810 = vmatprep.subr.bf16.mxu0 0
      %2811 = vmatpush1.bf16.msra.mxu0 0
      %2812 = vmatprep.subr.bf16.mxu0 0
      %2813 = vmatpush1.bf16.msra.mxu0 0
      %2814 = vmatprep.subr.bf16.mxu0 0
      %2815 = vmatpush1.bf16.msra.mxu0 0
      %2816 = vmatprep.subr.bf16.mxu0 0
      %2817 = vmatpush1.bf16.msra.mxu0 0
      %2818 = vmatprep.subr.bf16.mxu0 0
      %2819 = vmatpush1.bf16.msra.mxu0 0
      %2820 = vmatprep.mubr.bf16.mxu0 0
      %2821 = vmatmul.mubr.bf16.gmra.mrb[0].mxu0 %v2777
      %v2822 = vpop.f32.mrb[0].mxu0
      %v2823 = vadd.f32 %v2730, %v2822
      %v2824 = vpop.f32.mrb[0].mxu0
      %v2825 = vadd.f32 %v2732, %v2824
      %v2826 = vpop.f32.mrb[0].mxu0
      %v2827 = vpop.f32.mrb[0].mxu0
      %2828 = vdwg.mxu0
      %2829 = vmatprep.subr.bf16.mxu0 0
      %2830 = vmatpush1.bf16.msra.mxu0 %v2786
      %2831 = vmatprep.subr.bf16.mxu0 0
      %2832 = vmatpush1.bf16.msra.mxu0 0
      %2833 = vmatprep.subr.bf16.mxu0 0
      %2834 = vmatpush1.bf16.msra.mxu0 0
      %2835 = vmatprep.subr.bf16.mxu0 0
      %2836 = vmatpush1.bf16.msra.mxu0 0
      %2837 = vmatprep.subr.bf16.mxu0 0
      %2838 = vmatpush1.bf16.msra.mxu0 0
      %2839 = vmatprep.subr.bf16.mxu0 0
      %2840 = vmatpush1.bf16.msra.mxu0 0
      %2841 = vmatprep.subr.bf16.mxu0 0
      %2842 = vmatpush1.bf16.msra.mxu0 0
      %2843 = vmatprep.subr.bf16.mxu0 0
      %2844 = vmatpush1.bf16.msra.mxu0 0
      %2845 = vmatprep.subr.bf16.mxu0 0
      %2846 = vmatpush1.bf16.msra.mxu0 0
      %2847 = vmatprep.subr.bf16.mxu0 0
      %2848 = vmatpush1.bf16.msra.mxu0 0
      %2849 = vmatprep.subr.bf16.mxu0 0
      %2850 = vmatpush1.bf16.msra.mxu0 0
      %2851 = vmatprep.subr.bf16.mxu0 0
      %2852 = vmatpush1.bf16.msra.mxu0 0
      %2853 = vmatprep.subr.bf16.mxu0 0
      %2854 = vmatpush1.bf16.msra.mxu0 0
      %2855 = vmatprep.subr.bf16.mxu0 0
      %2856 = vmatpush1.bf16.msra.mxu0 0
      %2857 = vmatprep.subr.bf16.mxu0 0
      %2858 = vmatpush1.bf16.msra.mxu0 0
      %2859 = vmatprep.subr.bf16.mxu0 0
      %2860 = vmatpush1.bf16.msra.mxu0 0
      %2861 = vmatprep.mubr.bf16.mxu0 0
      %2862 = vmatmul.mubr.bf16.gmra.mrb[0].mxu0 %v2777
      %v2863 = vpop.f32.mrb[0].mxu0
      %v2864 = vadd.f32 %v2771, %v2863
      %v2865 = vpop.f32.mrb[0].mxu0
      %v2866 = vpop.f32.mrb[0].mxu0
      %v2867 = vpop.f32.mrb[0].mxu0
      %2868 = vdwg.mxu0
      %s2869 = scalar_lea.vmem %s4, 22
      %v2870 = vld [vmem:[%s2869] sm:$0x3]
      %2871 = vrot.lane.b32.xlu0 %v2672, 126
      %v2872 = vpop.permute.xlu0 %2871
      %2873 = vrot.lane.b32.xlu0 %v2673, 126
      %v2874 = vpop.permute.xlu0 %2873
      %2875 = vrot.lane.b32.xlu0 %v2674, 126
      %v2876 = vpop.permute.xlu0 %2875
      %v2877 = vsel %vm589, %v2872, %v2874
      %v2878 = vsel %vm589, %v2874, %v2876
      %v2880 = vsel %vm393, %v2870, 0
      %v2883 = vsel %vm397, %v2877, 0
      %v2886 = vsel %vm397, %v2878, 0
      %v2889 = vsel %vm397, %v2876, 0
      %2891 = vmatprep.subr.bf16.mxu0 %v2886
      %2892 = vmatpush1.bf16.msra.mxu0 %v2883
      %2893 = vmatprep.subr.bf16.mxu0 0
      %2894 = vmatpush1.bf16.msra.mxu0 0
      %2895 = vmatprep.subr.bf16.mxu0 0
      %2896 = vmatpush1.bf16.msra.mxu0 0
      %2897 = vmatprep.subr.bf16.mxu0 0
      %2898 = vmatpush1.bf16.msra.mxu0 0
      %2899 = vmatprep.subr.bf16.mxu0 0
      %2900 = vmatpush1.bf16.msra.mxu0 0
      %2901 = vmatprep.subr.bf16.mxu0 0
      %2902 = vmatpush1.bf16.msra.mxu0 0
      %2903 = vmatprep.subr.bf16.mxu0 0
      %2904 = vmatpush1.bf16.msra.mxu0 0
      %2905 = vmatprep.subr.bf16.mxu0 0
      %2906 = vmatpush1.bf16.msra.mxu0 0
      %2907 = vmatprep.subr.bf16.mxu0 0
      %2908 = vmatpush1.bf16.msra.mxu0 0
      %2909 = vmatprep.subr.bf16.mxu0 0
      %2910 = vmatpush1.bf16.msra.mxu0 0
      %2911 = vmatprep.subr.bf16.mxu0 0
      %2912 = vmatpush1.bf16.msra.mxu0 0
      %2913 = vmatprep.subr.bf16.mxu0 0
      %2914 = vmatpush1.bf16.msra.mxu0 0
      %2915 = vmatprep.subr.bf16.mxu0 0
      %2916 = vmatpush1.bf16.msra.mxu0 0
      %2917 = vmatprep.subr.bf16.mxu0 0
      %2918 = vmatpush1.bf16.msra.mxu0 0
      %2919 = vmatprep.subr.bf16.mxu0 0
      %2920 = vmatpush1.bf16.msra.mxu0 0
      %2921 = vmatprep.subr.bf16.mxu0 0
      %2922 = vmatpush1.bf16.msra.mxu0 0
      %2923 = vmatprep.mubr.bf16.mxu0 0
      %2924 = vmatmul.mubr.bf16.gmra.mrb[0].mxu0 %v2880
      %v2925 = vpop.f32.mrb[0].mxu0
      %v2926 = vadd.f32 0.0, %v2925
      %v2927 = vpop.f32.mrb[0].mxu0
      %v2928 = vadd.f32 0.0, %v2927
      %v2929 = vpop.f32.mrb[0].mxu0
      %v2930 = vpop.f32.mrb[0].mxu0
      %2931 = vdwg.mxu0
      %2932 = vmatprep.subr.bf16.mxu0 0
      %2933 = vmatpush1.bf16.msra.mxu0 %v2889
      %2934 = vmatprep.subr.bf16.mxu0 0
      %2935 = vmatpush1.bf16.msra.mxu0 0
      %2936 = vmatprep.subr.bf16.mxu0 0
      %2937 = vmatpush1.bf16.msra.mxu0 0
      %2938 = vmatprep.subr.bf16.mxu0 0
      %2939 = vmatpush1.bf16.msra.mxu0 0
      %2940 = vmatprep.subr.bf16.mxu0 0
      %2941 = vmatpush1.bf16.msra.mxu0 0
      %2942 = vmatprep.subr.bf16.mxu0 0
      %2943 = vmatpush1.bf16.msra.mxu0 0
      %2944 = vmatprep.subr.bf16.mxu0 0
      %2945 = vmatpush1.bf16.msra.mxu0 0
      %2946 = vmatprep.subr.bf16.mxu0 0
      %2947 = vmatpush1.bf16.msra.mxu0 0
      %2948 = vmatprep.subr.bf16.mxu0 0
      %2949 = vmatpush1.bf16.msra.mxu0 0
      %2950 = vmatprep.subr.bf16.mxu0 0
      %2951 = vmatpush1.bf16.msra.mxu0 0
      %2952 = vmatprep.subr.bf16.mxu0 0
      %2953 = vmatpush1.bf16.msra.mxu0 0
      %2954 = vmatprep.subr.bf16.mxu0 0
      %2955 = vmatpush1.bf16.msra.mxu0 0
      %2956 = vmatprep.subr.bf16.mxu0 0
      %2957 = vmatpush1.bf16.msra.mxu0 0
      %2958 = vmatprep.subr.bf16.mxu0 0
      %2959 = vmatpush1.bf16.msra.mxu0 0
      %2960 = vmatprep.subr.bf16.mxu0 0
      %2961 = vmatpush1.bf16.msra.mxu0 0
      %2962 = vmatprep.subr.bf16.mxu0 0
      %2963 = vmatpush1.bf16.msra.mxu0 0
      %2964 = vmatprep.mubr.bf16.mxu0 0
      %2965 = vmatmul.mubr.bf16.gmra.mrb[0].mxu0 %v2880
      %v2966 = vpop.f32.mrb[0].mxu0
      %v2967 = vadd.f32 0.0, %v2966
      %v2968 = vpop.f32.mrb[0].mxu0
      %v2969 = vpop.f32.mrb[0].mxu0
      %v2970 = vpop.f32.mrb[0].mxu0
      %2971 = vdwg.mxu0
      %v2972 = vadd.f32 %v2823, %v2926
      %v2973 = vadd.f32 %v2825, %v2928
      %v2974 = vadd.f32 %v2864, %v2967
      %s2975 = scalar_lea.vmem %s4, 24
      %v2976 = vld [vmem:[%s2975] sm:$0x3]
      %2977 = vrot.lane.b32.xlu0 %v2672, 110
      %v2978 = vpop.permute.xlu0 %2977
      %2979 = vrot.lane.b32.xlu0 %v2673, 110
      %v2980 = vpop.permute.xlu0 %2979
      %2981 = vrot.lane.b32.xlu0 %v2674, 110
      %v2982 = vpop.permute.xlu0 %2981
      %v2983 = vsel %vm696, %v2978, %v2980
      %v2984 = vsel %vm696, %v2980, %v2982
      %v2986 = vsel %vm393, %v2976, 0
      %v2989 = vsel %vm397, %v2983, 0
      %v2992 = vsel %vm397, %v2984, 0
      %v2995 = vsel %vm397, %v2982, 0
      %2997 = vmatprep.subr.bf16.mxu0 %v2992
      %2998 = vmatpush1.bf16.msra.mxu0 %v2989
      %2999 = vmatprep.subr.bf16.mxu0 0
      %3000 = vmatpush1.bf16.msra.mxu0 0
      %3001 = vmatprep.subr.bf16.mxu0 0
      %3002 = vmatpush1.bf16.msra.mxu0 0
      %3003 = vmatprep.subr.bf16.mxu0 0
      %3004 = vmatpush1.bf16.msra.mxu0 0
      %3005 = vmatprep.subr.bf16.mxu0 0
      %3006 = vmatpush1.bf16.msra.mxu0 0
      %3007 = vmatprep.subr.bf16.mxu0 0
      %3008 = vmatpush1.bf16.msra.mxu0 0
      %3009 = vmatprep.subr.bf16.mxu0 0
      %3010 = vmatpush1.bf16.msra.mxu0 0
      %3011 = vmatprep.subr.bf16.mxu0 0
      %3012 = vmatpush1.bf16.msra.mxu0 0
      %3013 = vmatprep.subr.bf16.mxu0 0
      %3014 = vmatpush1.bf16.msra.mxu0 0
      %3015 = vmatprep.subr.bf16.mxu0 0
      %3016 = vmatpush1.bf16.msra.mxu0 0
      %3017 = vmatprep.subr.bf16.mxu0 0
      %3018 = vmatpush1.bf16.msra.mxu0 0
      %3019 = vmatprep.subr.bf16.mxu0 0
      %3020 = vmatpush1.bf16.msra.mxu0 0
      %3021 = vmatprep.subr.bf16.mxu0 0
      %3022 = vmatpush1.bf16.msra.mxu0 0
      %3023 = vmatprep.subr.bf16.mxu0 0
      %3024 = vmatpush1.bf16.msra.mxu0 0
      %3025 = vmatprep.subr.bf16.mxu0 0
      %3026 = vmatpush1.bf16.msra.mxu0 0
      %3027 = vmatprep.subr.bf16.mxu0 0
      %3028 = vmatpush1.bf16.msra.mxu0 0
      %3029 = vmatprep.mubr.bf16.mxu0 0
      %3030 = vmatmul.mubr.bf16.gmra.mrb[0].mxu0 %v2986
      %v3031 = vpop.f32.mrb[0].mxu0
      %v3032 = vadd.f32 0.0, %v3031
      %v3033 = vpop.f32.mrb[0].mxu0
      %v3034 = vadd.f32 0.0, %v3033
      %v3035 = vpop.f32.mrb[0].mxu0
      %v3036 = vpop.f32.mrb[0].mxu0
      %3037 = vdwg.mxu0
      %3038 = vmatprep.subr.bf16.mxu0 0
      %3039 = vmatpush1.bf16.msra.mxu0 %v2995
      %3040 = vmatprep.subr.bf16.mxu0 0
      %3041 = vmatpush1.bf16.msra.mxu0 0
      %3042 = vmatprep.subr.bf16.mxu0 0
      %3043 = vmatpush1.bf16.msra.mxu0 0
      %3044 = vmatprep.subr.bf16.mxu0 0
      %3045 = vmatpush1.bf16.msra.mxu0 0
      %3046 = vmatprep.subr.bf16.mxu0 0
      %3047 = vmatpush1.bf16.msra.mxu0 0
      %3048 = vmatprep.subr.bf16.mxu0 0
      %3049 = vmatpush1.bf16.msra.mxu0 0
      %3050 = vmatprep.subr.bf16.mxu0 0
      %3051 = vmatpush1.bf16.msra.mxu0 0
      %3052 = vmatprep.subr.bf16.mxu0 0
      %3053 = vmatpush1.bf16.msra.mxu0 0
      %3054 = vmatprep.subr.bf16.mxu0 0
      %3055 = vmatpush1.bf16.msra.mxu0 0
      %3056 = vmatprep.subr.bf16.mxu0 0
      %3057 = vmatpush1.bf16.msra.mxu0 0
      %3058 = vmatprep.subr.bf16.mxu0 0
      %3059 = vmatpush1.bf16.msra.mxu0 0
      %3060 = vmatprep.subr.bf16.mxu0 0
      %3061 = vmatpush1.bf16.msra.mxu0 0
      %3062 = vmatprep.subr.bf16.mxu0 0
      %3063 = vmatpush1.bf16.msra.mxu0 0
      %3064 = vmatprep.subr.bf16.mxu0 0
      %3065 = vmatpush1.bf16.msra.mxu0 0
      %3066 = vmatprep.subr.bf16.mxu0 0
      %3067 = vmatpush1.bf16.msra.mxu0 0
      %3068 = vmatprep.subr.bf16.mxu0 0
      %3069 = vmatpush1.bf16.msra.mxu0 0
      %3070 = vmatprep.mubr.bf16.mxu0 0
      %3071 = vmatmul.mubr.bf16.gmra.mrb[0].mxu0 %v2986
      %v3072 = vpop.f32.mrb[0].mxu0
      %v3073 = vadd.f32 0.0, %v3072
      %v3074 = vpop.f32.mrb[0].mxu0
      %v3075 = vpop.f32.mrb[0].mxu0
      %v3076 = vpop.f32.mrb[0].mxu0
      %3077 = vdwg.mxu0
      %v3078 = vadd.f32 %v2972, %v3032
      %v3079 = vadd.f32 %v2973, %v3034
      %v3080 = vadd.f32 %v2974, %v3073
      %s3081 = scalar_lea.vmem %s4, 26
      %v3082 = vld [vmem:[%s3081] sm:$0x3]
      %3083 = vrot.lane.b32.xlu0 %v2672, 109
      %v3084 = vpop.permute.xlu0 %3083
      %3085 = vrot.lane.b32.xlu0 %v2673, 109
      %v3086 = vpop.permute.xlu0 %3085
      %3087 = vrot.lane.b32.xlu0 %v2674, 109
      %v3088 = vpop.permute.xlu0 %3087
      %v3089 = vsel %vm803, %v3084, %v3086
      %v3090 = vsel %vm803, %v3086, %v3088
      %v3092 = vsel %vm393, %v3082, 0
      %v3095 = vsel %vm397, %v3089, 0
      %v3098 = vsel %vm397, %v3090, 0
      %v3101 = vsel %vm397, %v3088, 0
      %3103 = vmatprep.subr.bf16.mxu0 %v3098
      %3104 = vmatpush1.bf16.msra.mxu0 %v3095
      %3105 = vmatprep.subr.bf16.mxu0 0
      %3106 = vmatpush1.bf16.msra.mxu0 0
      %3107 = vmatprep.subr.bf16.mxu0 0
      %3108 = vmatpush1.bf16.msra.mxu0 0
      %3109 = vmatprep.subr.bf16.mxu0 0
      %3110 = vmatpush1.bf16.msra.mxu0 0
      %3111 = vmatprep.subr.bf16.mxu0 0
      %3112 = vmatpush1.bf16.msra.mxu0 0
      %3113 = vmatprep.subr.bf16.mxu0 0
      %3114 = vmatpush1.bf16.msra.mxu0 0
      %3115 = vmatprep.subr.bf16.mxu0 0
      %3116 = vmatpush1.bf16.msra.mxu0 0
      %3117 = vmatprep.subr.bf16.mxu0 0
      %3118 = vmatpush1.bf16.msra.mxu0 0
      %3119 = vmatprep.subr.bf16.mxu0 0
      %3120 = vmatpush1.bf16.msra.mxu0 0
      %3121 = vmatprep.subr.bf16.mxu0 0
      %3122 = vmatpush1.bf16.msra.mxu0 0
      %3123 = vmatprep.subr.bf16.mxu0 0
      %3124 = vmatpush1.bf16.msra.mxu0 0
      %3125 = vmatprep.subr.bf16.mxu0 0
      %3126 = vmatpush1.bf16.msra.mxu0 0
      %3127 = vmatprep.subr.bf16.mxu0 0
      %3128 = vmatpush1.bf16.msra.mxu0 0
      %3129 = vmatprep.subr.bf16.mxu0 0
      %3130 = vmatpush1.bf16.msra.mxu0 0
      %3131 = vmatprep.subr.bf16.mxu0 0
      %3132 = vmatpush1.bf16.msra.mxu0 0
      %3133 = vmatprep.subr.bf16.mxu0 0
      %3134 = vmatpush1.bf16.msra.mxu0 0
      %3135 = vmatprep.mubr.bf16.mxu0 0
      %3136 = vmatmul.mubr.bf16.gmra.mrb[0].mxu0 %v3092
      %v3137 = vpop.f32.mrb[0].mxu0
      %v3138 = vadd.f32 0.0, %v3137
      %v3139 = vpop.f32.mrb[0].mxu0
      %v3140 = vadd.f32 0.0, %v3139
      %v3141 = vpop.f32.mrb[0].mxu0
      %v3142 = vpop.f32.mrb[0].mxu0
      %3143 = vdwg.mxu0
      %3144 = vmatprep.subr.bf16.mxu0 0
      %3145 = vmatpush1.bf16.msra.mxu0 %v3101
      %3146 = vmatprep.subr.bf16.mxu0 0
      %3147 = vmatpush1.bf16.msra.mxu0 0
      %3148 = vmatprep.subr.bf16.mxu0 0
      %3149 = vmatpush1.bf16.msra.mxu0 0
      %3150 = vmatprep.subr.bf16.mxu0 0
      %3151 = vmatpush1.bf16.msra.mxu0 0
      %3152 = vmatprep.subr.bf16.mxu0 0
      %3153 = vmatpush1.bf16.msra.mxu0 0
      %3154 = vmatprep.subr.bf16.mxu0 0
      %3155 = vmatpush1.bf16.msra.mxu0 0
      %3156 = vmatprep.subr.bf16.mxu0 0
      %3157 = vmatpush1.bf16.msra.mxu0 0
      %3158 = vmatprep.subr.bf16.mxu0 0
      %3159 = vmatpush1.bf16.msra.mxu0 0
      %3160 = vmatprep.subr.bf16.mxu0 0
      %3161 = vmatpush1.bf16.msra.mxu0 0
      %3162 = vmatprep.subr.bf16.mxu0 0
      %3163 = vmatpush1.bf16.msra.mxu0 0
      %3164 = vmatprep.subr.bf16.mxu0 0
      %3165 = vmatpush1.bf16.msra.mxu0 0
      %3166 = vmatprep.subr.bf16.mxu0 0
      %3167 = vmatpush1.bf16.msra.mxu0 0
      %3168 = vmatprep.subr.bf16.mxu0 0
      %3169 = vmatpush1.bf16.msra.mxu0 0
      %3170 = vmatprep.subr.bf16.mxu0 0
      %3171 = vmatpush1.bf16.msra.mxu0 0
      %3172 = vmatprep.subr.bf16.mxu0 0
      %3173 = vmatpush1.bf16.msra.mxu0 0
      %3174 = vmatprep.subr.bf16.mxu0 0
      %3175 = vmatpush1.bf16.msra.mxu0 0
      %3176 = vmatprep.mubr.bf16.mxu0 0
      %3177 = vmatmul.mubr.bf16.gmra.mrb[0].mxu0 %v3092
      %v3178 = vpop.f32.mrb[0].mxu0
      %v3179 = vadd.f32 0.0, %v3178
      %v3180 = vpop.f32.mrb[0].mxu0
      %v3181 = vpop.f32.mrb[0].mxu0
      %v3182 = vpop.f32.mrb[0].mxu0
      %3183 = vdwg.mxu0
      %v3184 = vadd.f32 %v3078, %v3138
      %v3185 = vadd.f32 %v3079, %v3140
      %v3186 = vadd.f32 %v3080, %v3179
      %s3187 = scalar_lea.vmem %s4, 28
      %v3188 = vld [vmem:[%s3187] sm:$0x3]
      %3189 = vrot.lane.b32.xlu0 %v2672, 108
      %v3190 = vpop.permute.xlu0 %3189
      %3191 = vrot.lane.b32.xlu0 %v2673, 108
      %v3192 = vpop.permute.xlu0 %3191
      %3193 = vrot.lane.b32.xlu0 %v2674, 108
      %v3194 = vpop.permute.xlu0 %3193
      %v3195 = vsel %vm910, %v3190, %v3192
      %v3196 = vsel %vm910, %v3192, %v3194
      %v3198 = vsel %vm393, %v3188, 0
      %v3201 = vsel %vm397, %v3195, 0
      %v3204 = vsel %vm397, %v3196, 0
      %v3207 = vsel %vm397, %v3194, 0
      %3209 = vmatprep.subr.bf16.mxu0 %v3204
      %3210 = vmatpush1.bf16.msra.mxu0 %v3201
      %3211 = vmatprep.subr.bf16.mxu0 0
      %3212 = vmatpush1.bf16.msra.mxu0 0
      %3213 = vmatprep.subr.bf16.mxu0 0
      %3214 = vmatpush1.bf16.msra.mxu0 0
      %3215 = vmatprep.subr.bf16.mxu0 0
      %3216 = vmatpush1.bf16.msra.mxu0 0
      %3217 = vmatprep.subr.bf16.mxu0 0
      %3218 = vmatpush1.bf16.msra.mxu0 0
      %3219 = vmatprep.subr.bf16.mxu0 0
      %3220 = vmatpush1.bf16.msra.mxu0 0
      %3221 = vmatprep.subr.bf16.mxu0 0
      %3222 = vmatpush1.bf16.msra.mxu0 0
      %3223 = vmatprep.subr.bf16.mxu0 0
      %3224 = vmatpush1.bf16.msra.mxu0 0
      %3225 = vmatprep.subr.bf16.mxu0 0
      %3226 = vmatpush1.bf16.msra.mxu0 0
      %3227 = vmatprep.subr.bf16.mxu0 0
      %3228 = vmatpush1.bf16.msra.mxu0 0
      %3229 = vmatprep.subr.bf16.mxu0 0
      %3230 = vmatpush1.bf16.msra.mxu0 0
      %3231 = vmatprep.subr.bf16.mxu0 0
      %3232 = vmatpush1.bf16.msra.mxu0 0
      %3233 = vmatprep.subr.bf16.mxu0 0
      %3234 = vmatpush1.bf16.msra.mxu0 0
      %3235 = vmatprep.subr.bf16.mxu0 0
      %3236 = vmatpush1.bf16.msra.mxu0 0
      %3237 = vmatprep.subr.bf16.mxu0 0
      %3238 = vmatpush1.bf16.msra.mxu0 0
      %3239 = vmatprep.subr.bf16.mxu0 0
      %3240 = vmatpush1.bf16.msra.mxu0 0
      %3241 = vmatprep.mubr.bf16.mxu0 0
      %3242 = vmatmul.mubr.bf16.gmra.mrb[0].mxu0 %v3198
      %v3243 = vpop.f32.mrb[0].mxu0
      %v3244 = vadd.f32 0.0, %v3243
      %v3245 = vpop.f32.mrb[0].mxu0
      %v3246 = vadd.f32 0.0, %v3245
      %v3247 = vpop.f32.mrb[0].mxu0
      %v3248 = vpop.f32.mrb[0].mxu0
      %3249 = vdwg.mxu0
      %3250 = vmatprep.subr.bf16.mxu0 0
      %3251 = vmatpush1.bf16.msra.mxu0 %v3207
      %3252 = vmatprep.subr.bf16.mxu0 0
      %3253 = vmatpush1.bf16.msra.mxu0 0
      %3254 = vmatprep.subr.bf16.mxu0 0
      %3255 = vmatpush1.bf16.msra.mxu0 0
      %3256 = vmatprep.subr.bf16.mxu0 0
      %3257 = vmatpush1.bf16.msra.mxu0 0
      %3258 = vmatprep.subr.bf16.mxu0 0
      %3259 = vmatpush1.bf16.msra.mxu0 0
      %3260 = vmatprep.subr.bf16.mxu0 0
      %3261 = vmatpush1.bf16.msra.mxu0 0
      %3262 = vmatprep.subr.bf16.mxu0 0
      %3263 = vmatpush1.bf16.msra.mxu0 0
      %3264 = vmatprep.subr.bf16.mxu0 0
      %3265 = vmatpush1.bf16.msra.mxu0 0
      %3266 = vmatprep.subr.bf16.mxu0 0
      %3267 = vmatpush1.bf16.msra.mxu0 0
      %3268 = vmatprep.subr.bf16.mxu0 0
      %3269 = vmatpush1.bf16.msra.mxu0 0
      %3270 = vmatprep.subr.bf16.mxu0 0
      %3271 = vmatpush1.bf16.msra.mxu0 0
      %3272 = vmatprep.subr.bf16.mxu0 0
      %3273 = vmatpush1.bf16.msra.mxu0 0
      %3274 = vmatprep.subr.bf16.mxu0 0
      %3275 = vmatpush1.bf16.msra.mxu0 0
      %3276 = vmatprep.subr.bf16.mxu0 0
      %3277 = vmatpush1.bf16.msra.mxu0 0
      %3278 = vmatprep.subr.bf16.mxu0 0
      %3279 = vmatpush1.bf16.msra.mxu0 0
      %3280 = vmatprep.subr.bf16.mxu0 0
      %3281 = vmatpush1.bf16.msra.mxu0 0
      %3282 = vmatprep.mubr.bf16.mxu0 0
      %3283 = vmatmul.mubr.bf16.gmra.mrb[0].mxu0 %v3198
      %v3284 = vpop.f32.mrb[0].mxu0
      %v3285 = vadd.f32 0.0, %v3284
      %v3286 = vpop.f32.mrb[0].mxu0
      %v3287 = vpop.f32.mrb[0].mxu0
      %v3288 = vpop.f32.mrb[0].mxu0
      %3289 = vdwg.mxu0
      %v3290 = vadd.f32 %v3184, %v3244
      %v3291 = vadd.f32 %v3185, %v3246
      %v3292 = vadd.f32 %v3186, %v3285
      %s3293 = scalar_lea.vmem %s4, 30
      %v3294 = vld [vmem:[%s3293] sm:$0x3]
      %3295 = vrot.lane.b32.xlu0 %v2672, 92
      %v3296 = vpop.permute.xlu0 %3295
      %3297 = vrot.lane.b32.xlu0 %v2673, 92
      %v3298 = vpop.permute.xlu0 %3297
      %3299 = vrot.lane.b32.xlu0 %v2674, 92
      %v3300 = vpop.permute.xlu0 %3299
      %v3301 = vsel %vm1017, %v3296, %v3298
      %v3302 = vsel %vm1017, %v3298, %v3300
      %v3304 = vsel %vm393, %v3294, 0
      %v3307 = vsel %vm397, %v3301, 0
      %v3310 = vsel %vm397, %v3302, 0
      %v3313 = vsel %vm397, %v3300, 0
      %3315 = vmatprep.subr.bf16.mxu0 %v3310
      %3316 = vmatpush1.bf16.msra.mxu0 %v3307
      %3317 = vmatprep.subr.bf16.mxu0 0
      %3318 = vmatpush1.bf16.msra.mxu0 0
      %3319 = vmatprep.subr.bf16.mxu0 0
      %3320 = vmatpush1.bf16.msra.mxu0 0
      %3321 = vmatprep.subr.bf16.mxu0 0
      %3322 = vmatpush1.bf16.msra.mxu0 0
      %3323 = vmatprep.subr.bf16.mxu0 0
      %3324 = vmatpush1.bf16.msra.mxu0 0
      %3325 = vmatprep.subr.bf16.mxu0 0
      %3326 = vmatpush1.bf16.msra.mxu0 0
      %3327 = vmatprep.subr.bf16.mxu0 0
      %3328 = vmatpush1.bf16.msra.mxu0 0
      %3329 = vmatprep.subr.bf16.mxu0 0
      %3330 = vmatpush1.bf16.msra.mxu0 0
      %3331 = vmatprep.subr.bf16.mxu0 0
      %3332 = vmatpush1.bf16.msra.mxu0 0
      %3333 = vmatprep.subr.bf16.mxu0 0
      %3334 = vmatpush1.bf16.msra.mxu0 0
      %3335 = vmatprep.subr.bf16.mxu0 0
      %3336 = vmatpush1.bf16.msra.mxu0 0
      %3337 = vmatprep.subr.bf16.mxu0 0
      %3338 = vmatpush1.bf16.msra.mxu0 0
      %3339 = vmatprep.subr.bf16.mxu0 0
      %3340 = vmatpush1.bf16.msra.mxu0 0
      %3341 = vmatprep.subr.bf16.mxu0 0
      %3342 = vmatpush1.bf16.msra.mxu0 0
      %3343 = vmatprep.subr.bf16.mxu0 0
      %3344 = vmatpush1.bf16.msra.mxu0 0
      %3345 = vmatprep.subr.bf16.mxu0 0
      %3346 = vmatpush1.bf16.msra.mxu0 0
      %3347 = vmatprep.mubr.bf16.mxu0 0
      %3348 = vmatmul.mubr.bf16.gmra.mrb[0].mxu0 %v3304
      %v3349 = vpop.f32.mrb[0].mxu0
      %v3350 = vadd.f32 0.0, %v3349
      %v3351 = vpop.f32.mrb[0].mxu0
      %v3352 = vadd.f32 0.0, %v3351
      %v3353 = vpop.f32.mrb[0].mxu0
      %v3354 = vpop.f32.mrb[0].mxu0
      %3355 = vdwg.mxu0
      %3356 = vmatprep.subr.bf16.mxu0 0
      %3357 = vmatpush1.bf16.msra.mxu0 %v3313
      %3358 = vmatprep.subr.bf16.mxu0 0
      %3359 = vmatpush1.bf16.msra.mxu0 0
      %3360 = vmatprep.subr.bf16.mxu0 0
      %3361 = vmatpush1.bf16.msra.mxu0 0
      %3362 = vmatprep.subr.bf16.mxu0 0
      %3363 = vmatpush1.bf16.msra.mxu0 0
      %3364 = vmatprep.subr.bf16.mxu0 0
      %3365 = vmatpush1.bf16.msra.mxu0 0
      %3366 = vmatprep.subr.bf16.mxu0 0
      %3367 = vmatpush1.bf16.msra.mxu0 0
      %3368 = vmatprep.subr.bf16.mxu0 0
      %3369 = vmatpush1.bf16.msra.mxu0 0
      %3370 = vmatprep.subr.bf16.mxu0 0
      %3371 = vmatpush1.bf16.msra.mxu0 0
      %3372 = vmatprep.subr.bf16.mxu0 0
      %3373 = vmatpush1.bf16.msra.mxu0 0
      %3374 = vmatprep.subr.bf16.mxu0 0
      %3375 = vmatpush1.bf16.msra.mxu0 0
      %3376 = vmatprep.subr.bf16.mxu0 0
      %3377 = vmatpush1.bf16.msra.mxu0 0
      %3378 = vmatprep.subr.bf16.mxu0 0
      %3379 = vmatpush1.bf16.msra.mxu0 0
      %3380 = vmatprep.subr.bf16.mxu0 0
      %3381 = vmatpush1.bf16.msra.mxu0 0
      %3382 = vmatprep.subr.bf16.mxu0 0
      %3383 = vmatpush1.bf16.msra.mxu0 0
      %3384 = vmatprep.subr.bf16.mxu0 0
      %3385 = vmatpush1.bf16.msra.mxu0 0
      %3386 = vmatprep.subr.bf16.mxu0 0
      %3387 = vmatpush1.bf16.msra.mxu0 0
      %3388 = vmatprep.mubr.bf16.mxu0 0
      %3389 = vmatmul.mubr.bf16.gmra.mrb[0].mxu0 %v3304
      %v3390 = vpop.f32.mrb[0].mxu0
      %v3391 = vadd.f32 0.0, %v3390
      %v3392 = vpop.f32.mrb[0].mxu0
      %v3393 = vpop.f32.mrb[0].mxu0
      %v3394 = vpop.f32.mrb[0].mxu0
      %3395 = vdwg.mxu0
      %v3396 = vadd.f32 %v3290, %v3350
      %v3397 = vadd.f32 %v3291, %v3352
      %v3398 = vadd.f32 %v3292, %v3391
      %s3399 = scalar_lea.vmem %s4, 32
      %v3400 = vld [vmem:[%s3399] sm:$0x3]
      %3401 = vrot.lane.b32.xlu0 %v2672, 91
      %v3402 = vpop.permute.xlu0 %3401
      %3403 = vrot.lane.b32.xlu0 %v2673, 91
      %v3404 = vpop.permute.xlu0 %3403
      %3405 = vrot.lane.b32.xlu0 %v2674, 91
      %v3406 = vpop.permute.xlu0 %3405
      %v3407 = vsel %vm1124, %v3402, %v3404
      %v3408 = vsel %vm1124, %v3404, %v3406
      %v3410 = vsel %vm393, %v3400, 0
      %v3413 = vsel %vm397, %v3407, 0
      %v3416 = vsel %vm397, %v3408, 0
      %v3419 = vsel %vm397, %v3406, 0
      %3421 = vmatprep.subr.bf16.mxu0 %v3416
      %3422 = vmatpush1.bf16.msra.mxu0 %v3413
      %3423 = vmatprep.subr.bf16.mxu0 0
      %3424 = vmatpush1.bf16.msra.mxu0 0
      %3425 = vmatprep.subr.bf16.mxu0 0
      %3426 = vmatpush1.bf16.msra.mxu0 0
      %3427 = vmatprep.subr.bf16.mxu0 0
      %3428 = vmatpush1.bf16.msra.mxu0 0
      %3429 = vmatprep.subr.bf16.mxu0 0
      %3430 = vmatpush1.bf16.msra.mxu0 0
      %3431 = vmatprep.subr.bf16.mxu0 0
      %3432 = vmatpush1.bf16.msra.mxu0 0
      %3433 = vmatprep.subr.bf16.mxu0 0
      %3434 = vmatpush1.bf16.msra.mxu0 0
      %3435 = vmatprep.subr.bf16.mxu0 0
      %3436 = vmatpush1.bf16.msra.mxu0 0
      %3437 = vmatprep.subr.bf16.mxu0 0
      %3438 = vmatpush1.bf16.msra.mxu0 0
      %3439 = vmatprep.subr.bf16.mxu0 0
      %3440 = vmatpush1.bf16.msra.mxu0 0
      %3441 = vmatprep.subr.bf16.mxu0 0
      %3442 = vmatpush1.bf16.msra.mxu0 0
      %3443 = vmatprep.subr.bf16.mxu0 0
      %3444 = vmatpush1.bf16.msra.mxu0 0
      %3445 = vmatprep.subr.bf16.mxu0 0
      %3446 = vmatpush1.bf16.msra.mxu0 0
      %3447 = vmatprep.subr.bf16.mxu0 0
      %3448 = vmatpush1.bf16.msra.mxu0 0
      %3449 = vmatprep.subr.bf16.mxu0 0
      %3450 = vmatpush1.bf16.msra.mxu0 0
      %3451 = vmatprep.subr.bf16.mxu0 0
      %3452 = vmatpush1.bf16.msra.mxu0 0
      %3453 = vmatprep.mubr.bf16.mxu0 0
      %3454 = vmatmul.mubr.bf16.gmra.mrb[0].mxu0 %v3410
      %v3455 = vpop.f32.mrb[0].mxu0
      %v3456 = vadd.f32 0.0, %v3455
      %v3457 = vpop.f32.mrb[0].mxu0
      %v3458 = vadd.f32 0.0, %v3457
      %v3459 = vpop.f32.mrb[0].mxu0
      %v3460 = vpop.f32.mrb[0].mxu0
      %3461 = vdwg.mxu0
      %3462 = vmatprep.subr.bf16.mxu0 0
      %3463 = vmatpush1.bf16.msra.mxu0 %v3419
      %3464 = vmatprep.subr.bf16.mxu0 0
      %3465 = vmatpush1.bf16.msra.mxu0 0
      %3466 = vmatprep.subr.bf16.mxu0 0
      %3467 = vmatpush1.bf16.msra.mxu0 0
      %3468 = vmatprep.subr.bf16.mxu0 0
      %3469 = vmatpush1.bf16.msra.mxu0 0
      %3470 = vmatprep.subr.bf16.mxu0 0
      %3471 = vmatpush1.bf16.msra.mxu0 0
      %3472 = vmatprep.subr.bf16.mxu0 0
      %3473 = vmatpush1.bf16.msra.mxu0 0
      %3474 = vmatprep.subr.bf16.mxu0 0
      %3475 = vmatpush1.bf16.msra.mxu0 0
      %3476 = vmatprep.subr.bf16.mxu0 0
      %3477 = vmatpush1.bf16.msra.mxu0 0
      %3478 = vmatprep.subr.bf16.mxu0 0
      %3479 = vmatpush1.bf16.msra.mxu0 0
      %3480 = vmatprep.subr.bf16.mxu0 0
      %3481 = vmatpush1.bf16.msra.mxu0 0
      %3482 = vmatprep.subr.bf16.mxu0 0
      %3483 = vmatpush1.bf16.msra.mxu0 0
      %3484 = vmatprep.subr.bf16.mxu0 0
      %3485 = vmatpush1.bf16.msra.mxu0 0
      %3486 = vmatprep.subr.bf16.mxu0 0
      %3487 = vmatpush1.bf16.msra.mxu0 0
      %3488 = vmatprep.subr.bf16.mxu0 0
      %3489 = vmatpush1.bf16.msra.mxu0 0
      %3490 = vmatprep.subr.bf16.mxu0 0
      %3491 = vmatpush1.bf16.msra.mxu0 0
      %3492 = vmatprep.subr.bf16.mxu0 0
      %3493 = vmatpush1.bf16.msra.mxu0 0
      %3494 = vmatprep.mubr.bf16.mxu0 0
      %3495 = vmatmul.mubr.bf16.gmra.mrb[0].mxu0 %v3410
      %v3496 = vpop.f32.mrb[0].mxu0
      %v3497 = vadd.f32 0.0, %v3496
      %v3498 = vpop.f32.mrb[0].mxu0
      %v3499 = vpop.f32.mrb[0].mxu0
      %v3500 = vpop.f32.mrb[0].mxu0
      %3501 = vdwg.mxu0
      %v3502 = vadd.f32 %v3396, %v3456
      %v3503 = vadd.f32 %v3397, %v3458
      %v3504 = vadd.f32 %v3398, %v3497
      %s3505 = scalar_lea.vmem %s4, 34
      %v3506 = vld [vmem:[%s3505] sm:$0x3]
      %3507 = vrot.lane.b32.xlu0 %v2672, 90
      %v3508 = vpop.permute.xlu0 %3507
      %3509 = vrot.lane.b32.xlu0 %v2673, 90
      %v3510 = vpop.permute.xlu0 %3509
      %3511 = vrot.lane.b32.xlu0 %v2674, 90
      %v3512 = vpop.permute.xlu0 %3511
      %v3513 = vsel %vm1231, %v3508, %v3510
      %v3514 = vsel %vm1231, %v3510, %v3512
      %v3516 = vsel %vm393, %v3506, 0
      %v3519 = vsel %vm397, %v3513, 0
      %v3522 = vsel %vm397, %v3514, 0
      %v3525 = vsel %vm397, %v3512, 0
      %3527 = vmatprep.subr.bf16.mxu0 %v3522
      %3528 = vmatpush1.bf16.msra.mxu0 %v3519
      %3529 = vmatprep.subr.bf16.mxu0 0
      %3530 = vmatpush1.bf16.msra.mxu0 0
      %3531 = vmatprep.subr.bf16.mxu0 0
      %3532 = vmatpush1.bf16.msra.mxu0 0
      %3533 = vmatprep.subr.bf16.mxu0 0
      %3534 = vmatpush1.bf16.msra.mxu0 0
      %3535 = vmatprep.subr.bf16.mxu0 0
      %3536 = vmatpush1.bf16.msra.mxu0 0
      %3537 = vmatprep.subr.bf16.mxu0 0
      %3538 = vmatpush1.bf16.msra.mxu0 0
      %3539 = vmatprep.subr.bf16.mxu0 0
      %3540 = vmatpush1.bf16.msra.mxu0 0
      %3541 = vmatprep.subr.bf16.mxu0 0
      %3542 = vmatpush1.bf16.msra.mxu0 0
      %3543 = vmatprep.subr.bf16.mxu0 0
      %3544 = vmatpush1.bf16.msra.mxu0 0
      %3545 = vmatprep.subr.bf16.mxu0 0
      %3546 = vmatpush1.bf16.msra.mxu0 0
      %3547 = vmatprep.subr.bf16.mxu0 0
      %3548 = vmatpush1.bf16.msra.mxu0 0
      %3549 = vmatprep.subr.bf16.mxu0 0
      %3550 = vmatpush1.bf16.msra.mxu0 0
      %3551 = vmatprep.subr.bf16.mxu0 0
      %3552 = vmatpush1.bf16.msra.mxu0 0
      %3553 = vmatprep.subr.bf16.mxu0 0
      %3554 = vmatpush1.bf16.msra.mxu0 0
      %3555 = vmatprep.subr.bf16.mxu0 0
      %3556 = vmatpush1.bf16.msra.mxu0 0
      %3557 = vmatprep.subr.bf16.mxu0 0
      %3558 = vmatpush1.bf16.msra.mxu0 0
      %3559 = vmatprep.mubr.bf16.mxu0 0
      %3560 = vmatmul.mubr.bf16.gmra.mrb[0].mxu0 %v3516
      %v3561 = vpop.f32.mrb[0].mxu0
      %v3562 = vadd.f32 0.0, %v3561
      %v3563 = vpop.f32.mrb[0].mxu0
      %v3564 = vadd.f32 0.0, %v3563
      %v3565 = vpop.f32.mrb[0].mxu0
      %v3566 = vpop.f32.mrb[0].mxu0
      %3567 = vdwg.mxu0
      %3568 = vmatprep.subr.bf16.mxu0 0
      %3569 = vmatpush1.bf16.msra.mxu0 %v3525
      %3570 = vmatprep.subr.bf16.mxu0 0
      %3571 = vmatpush1.bf16.msra.mxu0 0
      %3572 = vmatprep.subr.bf16.mxu0 0
      %3573 = vmatpush1.bf16.msra.mxu0 0
      %3574 = vmatprep.subr.bf16.mxu0 0
      %3575 = vmatpush1.bf16.msra.mxu0 0
      %3576 = vmatprep.subr.bf16.mxu0 0
      %3577 = vmatpush1.bf16.msra.mxu0 0
      %3578 = vmatprep.subr.bf16.mxu0 0
      %3579 = vmatpush1.bf16.msra.mxu0 0
      %3580 = vmatprep.subr.bf16.mxu0 0
      %3581 = vmatpush1.bf16.msra.mxu0 0
      %3582 = vmatprep.subr.bf16.mxu0 0
      %3583 = vmatpush1.bf16.msra.mxu0 0
      %3584 = vmatprep.subr.bf16.mxu0 0
      %3585 = vmatpush1.bf16.msra.mxu0 0
      %3586 = vmatprep.subr.bf16.mxu0 0
      %3587 = vmatpush1.bf16.msra.mxu0 0
      %3588 = vmatprep.subr.bf16.mxu0 0
      %3589 = vmatpush1.bf16.msra.mxu0 0
      %3590 = vmatprep.subr.bf16.mxu0 0
      %3591 = vmatpush1.bf16.msra.mxu0 0
      %3592 = vmatprep.subr.bf16.mxu0 0
      %3593 = vmatpush1.bf16.msra.mxu0 0
      %3594 = vmatprep.subr.bf16.mxu0 0
      %3595 = vmatpush1.bf16.msra.mxu0 0
      %3596 = vmatprep.subr.bf16.mxu0 0
      %3597 = vmatpush1.bf16.msra.mxu0 0
      %3598 = vmatprep.subr.bf16.mxu0 0
      %3599 = vmatpush1.bf16.msra.mxu0 0
      %3600 = vmatprep.mubr.bf16.mxu0 0
      %3601 = vmatmul.mubr.bf16.gmra.mrb[0].mxu0 %v3516
      %v3602 = vpop.f32.mrb[0].mxu0
      %v3603 = vadd.f32 0.0, %v3602
      %v3604 = vpop.f32.mrb[0].mxu0
      %v3605 = vpop.f32.mrb[0].mxu0
      %v3606 = vpop.f32.mrb[0].mxu0
      %3607 = vdwg.mxu0
      %v3608 = vadd.f32 %v3502, %v3562
      %v3609 = vadd.f32 %v3503, %v3564
      %v3610 = vadd.f32 %v3504, %v3603
      %3612 = vset.pattern.permute.xlu0 0
      %3613 = vperm.xlu0 %3612, %v2660
      %v3614 = vpop.permute.xlu0 %3613
      %v3616 = vadd.f32 %v3608, %v3614
      %v3617 = vadd.f32 %v3609, %v3614
      %v3618 = vadd.f32 %v3610, %v3614
      %v3619 = vmax.f32 %v3616, 0.0
      %v3620 = vmax.f32 %v3617, 0.0
      %v3621 = vmax.f32 %v3618, 0.0
      %v3622 = vsub.f32 0.0, %v3616
      %v3623 = vsub.f32 0.0, %v3617
      %v3624 = vsub.f32 0.0, %v3618
      %v3625 = vmax.f32 %v3622, 0.0
      %v3626 = vmax.f32 %v3623, 0.0
      %v3627 = vmax.f32 %v3624, 0.0
      %v3631 = vrot.slane %v3625, 4
      %v3632 = vrot.slane %v3626, 4
      %v3633 = vrot.slane %v3627, 4
      %v3637 = vsel %vm397, %v3619, %v3631
      %v3638 = vsel %vm397, %v3620, %v3632
      %v3639 = vsel %vm397, %v3621, %v3633
      %v3640 = vmul.f32 %v3637, %v317
      %v3641 = vmul.f32 %v3638, %v321
      %v3642 = vmul.f32 %v3639, %v325
      %v3643 = vpack.c.bf16 %v3640, %v3640
      %v3644 = vpack.c.bf16 %v3641, %v3641
      %v3645 = vpack.c.bf16 %v3642, %v3642
      %v3646 = vld [vmem:[#allocation3] sm:$0xff]
      %v3647 = vld [vmem:[#allocation3 + $0x8] sm:$0xff]
      %v3648 = vld [vmem:[#allocation3 + $0x10] sm:$0xff]
      %v3649 = vld [vmem:[#allocation3 + $0x18] sm:$0xf]
      %v3650 = vld [vmem:[#allocation3 + $0x20] sm:$0xf]
      %v3651 = vld [vmem:[#allocation3 + $0x28] sm:$0xf]
      %s3652 = scalar_lea.vmem %s6, 16
      %v3653 = vld [vmem:[%s3652] sm:$0xf]
      %v3654 = vld [vmem:[%s3652 + $0x4] sm:$0x3]
      %v3657 = vunpack.c.l.b16 %v3653
      %v3658 = vunpack.c.l.b16 %v3654
      %v3659 = vpack.c.b16 %v3658, %v3657
      %v3661 = vsel %vm393, %v3659, 0
      %v3664 = vsel %vm397, %v3643, 0
      %v3667 = vsel %vm397, %v3644, 0
      %v3670 = vsel %vm397, %v3645, 0
      %3672 = vmatprep.subr.bf16.mxu0 %v3667
      %3673 = vmatpush1.bf16.msra.mxu0 %v3664
      %3674 = vmatprep.subr.bf16.mxu0 0
      %3675 = vmatpush1.bf16.msra.mxu0 0
      %3676 = vmatprep.subr.bf16.mxu0 0
      %3677 = vmatpush1.bf16.msra.mxu0 0
      %3678 = vmatprep.subr.bf16.mxu0 0
      %3679 = vmatpush1.bf16.msra.mxu0 0
      %3680 = vmatprep.subr.bf16.mxu0 0
      %3681 = vmatpush1.bf16.msra.mxu0 0
      %3682 = vmatprep.subr.bf16.mxu0 0
      %3683 = vmatpush1.bf16.msra.mxu0 0
      %3684 = vmatprep.subr.bf16.mxu0 0
      %3685 = vmatpush1.bf16.msra.mxu0 0
      %3686 = vmatprep.subr.bf16.mxu0 0
      %3687 = vmatpush1.bf16.msra.mxu0 0
      %3688 = vmatprep.subr.bf16.mxu0 0
      %3689 = vmatpush1.bf16.msra.mxu0 0
      %3690 = vmatprep.subr.bf16.mxu0 0
      %3691 = vmatpush1.bf16.msra.mxu0 0
      %3692 = vmatprep.subr.bf16.mxu0 0
      %3693 = vmatpush1.bf16.msra.mxu0 0
      %3694 = vmatprep.subr.bf16.mxu0 0
      %3695 = vmatpush1.bf16.msra.mxu0 0
      %3696 = vmatprep.subr.bf16.mxu0 0
      %3697 = vmatpush1.bf16.msra.mxu0 0
      %3698 = vmatprep.subr.bf16.mxu0 0
      %3699 = vmatpush1.bf16.msra.mxu0 0
      %3700 = vmatprep.subr.bf16.mxu0 0
      %3701 = vmatpush1.bf16.msra.mxu0 0
      %3702 = vmatprep.subr.bf16.mxu0 0
      %3703 = vmatpush1.bf16.msra.mxu0 0
      %3704 = vmatprep.mubr.bf16.mxu0 0
      %3705 = vmatmul.mubr.bf16.gmra.mrb[0].mxu0 %v3661
      %v3706 = vpop.f32.mrb[0].mxu0
      %v3707 = vadd.f32 0.0, %v3706
      %v3708 = vpop.f32.mrb[0].mxu0
      %v3709 = vadd.f32 0.0, %v3708
      %v3710 = vpop.f32.mrb[0].mxu0
      %v3711 = vadd.f32 0.0, %v3710
      %v3712 = vpop.f32.mrb[0].mxu0
      %v3713 = vadd.f32 0.0, %v3712
      %3714 = vdwg.mxu0
      %3715 = vmatprep.subr.bf16.mxu0 0
      %3716 = vmatpush1.bf16.msra.mxu0 %v3670
      %3717 = vmatprep.subr.bf16.mxu0 0
      %3718 = vmatpush1.bf16.msra.mxu0 0
      %3719 = vmatprep.subr.bf16.mxu0 0
      %3720 = vmatpush1.bf16.msra.mxu0 0
      %3721 = vmatprep.subr.bf16.mxu0 0
      %3722 = vmatpush1.bf16.msra.mxu0 0
      %3723 = vmatprep.subr.bf16.mxu0 0
      %3724 = vmatpush1.bf16.msra.mxu0 0
      %3725 = vmatprep.subr.bf16.mxu0 0
      %3726 = vmatpush1.bf16.msra.mxu0 0
      %3727 = vmatprep.subr.bf16.mxu0 0
      %3728 = vmatpush1.bf16.msra.mxu0 0
      %3729 = vmatprep.subr.bf16.mxu0 0
      %3730 = vmatpush1.bf16.msra.mxu0 0
      %3731 = vmatprep.subr.bf16.mxu0 0
      %3732 = vmatpush1.bf16.msra.mxu0 0
      %3733 = vmatprep.subr.bf16.mxu0 0
      %3734 = vmatpush1.bf16.msra.mxu0 0
      %3735 = vmatprep.subr.bf16.mxu0 0
      %3736 = vmatpush1.bf16.msra.mxu0 0
      %3737 = vmatprep.subr.bf16.mxu0 0
      %3738 = vmatpush1.bf16.msra.mxu0 0
      %3739 = vmatprep.subr.bf16.mxu0 0
      %3740 = vmatpush1.bf16.msra.mxu0 0
      %3741 = vmatprep.subr.bf16.mxu0 0
      %3742 = vmatpush1.bf16.msra.mxu0 0
      %3743 = vmatprep.subr.bf16.mxu0 0
      %3744 = vmatpush1.bf16.msra.mxu0 0
      %3745 = vmatprep.subr.bf16.mxu0 0
      %3746 = vmatpush1.bf16.msra.mxu0 0
      %3747 = vmatprep.mubr.bf16.mxu0 0
      %3748 = vmatmul.mubr.bf16.gmra.mrb[0].mxu0 %v3661
      %v3749 = vpop.f32.mrb[0].mxu0
      %v3750 = vadd.f32 0.0, %v3749
      %v3751 = vpop.f32.mrb[0].mxu0
      %v3752 = vpop.f32.mrb[0].mxu0
      %v3753 = vadd.f32 0.0, %v3752
      %v3754 = vpop.f32.mrb[0].mxu0
      %3755 = vdwg.mxu0
      %v3756 = vadd.f32 %v3646, %v3707
      %v3757 = vadd.f32 %v3647, %v3709
      %v3758 = vadd.f32 %v3648, %v3750
      %v3759 = vadd.f32 %v3649, %v3711
      %v3760 = vadd.f32 %v3650, %v3713
      %v3761 = vadd.f32 %v3651, %v3753
      %3762 = vst [vmem:[#allocation3] sm:$0xff] %v3756
      %3763 = vst [vmem:[#allocation3 + $0x8] sm:$0xff] %v3757
      %3764 = vst.msk [vmem:[#allocation3 + $0x10] sm:$0xff] %vm1382, %v3758
      %3765 = vst [vmem:[#allocation3 + $0x18] sm:$0xf] %v3759
      %3766 = vst [vmem:[#allocation3 + $0x20] sm:$0xf] %v3760
      %3767 = vst.msk [vmem:[#allocation3 + $0x28] sm:$0xf] %vm1386, %v3761
      %v3771 = vunpack.c.l.b16 %v3643
      %v3772 = vunpack.c.l.b16 %v3644
      %v3773 = vunpack.c.l.b16 %v3645
      %v3774 = vpack.c.b16 %v3772, %v3771
      %v3775 = vpack.c.b16 %v3773, %v3773
      %3776 = vrot.lane.b32.xlu0 %v3774, 19
      %v3777 = vpop.permute.xlu0 %3776
      %3778 = vrot.lane.b32.xlu0 %v3775, 19
      %v3779 = vpop.permute.xlu0 %3778
      %v3780 = vrot.slane %v3777, 4
      %v3781 = vsel %vm1522, %v3780, %v3777
      %v3782 = vsel %vm1522, %v3780, %v3779
      %3785 = vst.msk [vmem:[#allocation2] sm:$0xff] %vm1529, %v3781
      %3786 = vst.msk [vmem:[#allocation2 + $0x8] sm:$0xf] %vm1531, %v3782
      %s3787 = scalar_lea.vmem %s5, 8
      %v3788 = vld [vmem:[%s3787] sm:$0xf]
      %s3789 = scalar_lea.vmem %s4, 36
      %v3790 = vld [vmem:[%s3789] sm:$0x3]
      %v3791 = vld [vmem:[#allocation2] sm:$0xff]
      %v3792 = vld [vmem:[#allocation2 + $0x8] sm:$0xf]
      %s3793 = scalar_lea.vmem %s4, 38
      %v3794 = vld [vmem:[%s3793] sm:$0x3]
      %v3797 = vunpack.c.l.b16 %v3791
      %v3798 = vunpack.c.h.b16 %v3791
      %v3799 = vunpack.c.l.b16 %v3792
      %v3800 = vpack.c.b16 %v3797, %v3797
      %v3801 = vpack.c.b16 %v3798, %v3798
      %v3802 = vpack.c.b16 %v3799, %v3799
      %3803 = vrot.lane.b32.xlu0 %v3800, 127
      %v3804 = vpop.permute.xlu0 %3803
      %3805 = vrot.lane.b32.xlu0 %v3801, 127
      %v3806 = vpop.permute.xlu0 %3805
      %3807 = vrot.lane.b32.xlu0 %v3802, 127
      %v3808 = vpop.permute.xlu0 %3807
      %v3809 = vsel %vm390, %v3804, %v3806
      %v3810 = vsel %vm390, %v3806, %v3808
      %v3812 = vsel %vm393, %v3794, 0
      %v3815 = vsel %vm397, %v3809, 0
      %v3818 = vsel %vm397, %v3810, 0
      %v3821 = vsel %vm397, %v3808, 0
      %3823 = vmatprep.subr.bf16.mxu0 %v3818
      %3824 = vmatpush1.bf16.msra.mxu0 %v3815
      %3825 = vmatprep.subr.bf16.mxu0 0
      %3826 = vmatpush1.bf16.msra.mxu0 0
      %3827 = vmatprep.subr.bf16.mxu0 0
      %3828 = vmatpush1.bf16.msra.mxu0 0
      %3829 = vmatprep.subr.bf16.mxu0 0
      %3830 = vmatpush1.bf16.msra.mxu0 0
      %3831 = vmatprep.subr.bf16.mxu0 0
      %3832 = vmatpush1.bf16.msra.mxu0 0
      %3833 = vmatprep.subr.bf16.mxu0 0
      %3834 = vmatpush1.bf16.msra.mxu0 0
      %3835 = vmatprep.subr.bf16.mxu0 0
      %3836 = vmatpush1.bf16.msra.mxu0 0
      %3837 = vmatprep.subr.bf16.mxu0 0
      %3838 = vmatpush1.bf16.msra.mxu0 0
      %3839 = vmatprep.subr.bf16.mxu0 0
      %3840 = vmatpush1.bf16.msra.mxu0 0
      %3841 = vmatprep.subr.bf16.mxu0 0
      %3842 = vmatpush1.bf16.msra.mxu0 0
      %3843 = vmatprep.subr.bf16.mxu0 0
      %3844 = vmatpush1.bf16.msra.mxu0 0
      %3845 = vmatprep.subr.bf16.mxu0 0
      %3846 = vmatpush1.bf16.msra.mxu0 0
      %3847 = vmatprep.subr.bf16.mxu0 0
      %3848 = vmatpush1.bf16.msra.mxu0 0
      %3849 = vmatprep.subr.bf16.mxu0 0
      %3850 = vmatpush1.bf16.msra.mxu0 0
      %3851 = vmatprep.subr.bf16.mxu0 0
      %3852 = vmatpush1.bf16.msra.mxu0 0
      %3853 = vmatprep.subr.bf16.mxu0 0
      %3854 = vmatpush1.bf16.msra.mxu0 0
      %3855 = vmatprep.mubr.bf16.mxu0 0
      %3856 = vmatmul.mubr.bf16.gmra.mrb[0].mxu0 %v3812
      %v3857 = vpop.f32.mrb[0].mxu0
      %v3858 = vadd.f32 0.0, %v3857
      %v3859 = vpop.f32.mrb[0].mxu0
      %v3860 = vadd.f32 0.0, %v3859
      %v3861 = vpop.f32.mrb[0].mxu0
      %v3862 = vpop.f32.mrb[0].mxu0
      %3863 = vdwg.mxu0
      %3864 = vmatprep.subr.bf16.mxu0 0
      %3865 = vmatpush1.bf16.msra.mxu0 %v3821
      %3866 = vmatprep.subr.bf16.mxu0 0
      %3867 = vmatpush1.bf16.msra.mxu0 0
      %3868 = vmatprep.subr.bf16.mxu0 0
      %3869 = vmatpush1.bf16.msra.mxu0 0
      %3870 = vmatprep.subr.bf16.mxu0 0
      %3871 = vmatpush1.bf16.msra.mxu0 0
      %3872 = vmatprep.subr.bf16.mxu0 0
      %3873 = vmatpush1.bf16.msra.mxu0 0
      %3874 = vmatprep.subr.bf16.mxu0 0
      %3875 = vmatpush1.bf16.msra.mxu0 0
      %3876 = vmatprep.subr.bf16.mxu0 0
      %3877 = vmatpush1.bf16.msra.mxu0 0
      %3878 = vmatprep.subr.bf16.mxu0 0
      %3879 = vmatpush1.bf16.msra.mxu0 0
      %3880 = vmatprep.subr.bf16.mxu0 0
      %3881 = vmatpush1.bf16.msra.mxu0 0
      %3882 = vmatprep.subr.bf16.mxu0 0
      %3883 = vmatpush1.bf16.msra.mxu0 0
      %3884 = vmatprep.subr.bf16.mxu0 0
      %3885 = vmatpush1.bf16.msra.mxu0 0
      %3886 = vmatprep.subr.bf16.mxu0 0
      %3887 = vmatpush1.bf16.msra.mxu0 0
      %3888 = vmatprep.subr.bf16.mxu0 0
      %3889 = vmatpush1.bf16.msra.mxu0 0
      %3890 = vmatprep.subr.bf16.mxu0 0
      %3891 = vmatpush1.bf16.msra.mxu0 0
      %3892 = vmatprep.subr.bf16.mxu0 0
      %3893 = vmatpush1.bf16.msra.mxu0 0
      %3894 = vmatprep.subr.bf16.mxu0 0
      %3895 = vmatpush1.bf16.msra.mxu0 0
      %3896 = vmatprep.mubr.bf16.mxu0 0
      %3897 = vmatmul.mubr.bf16.gmra.mrb[0].mxu0 %v3812
      %v3898 = vpop.f32.mrb[0].mxu0
      %v3899 = vadd.f32 0.0, %v3898
      %v3900 = vpop.f32.mrb[0].mxu0
      %v3901 = vpop.f32.mrb[0].mxu0
      %v3902 = vpop.f32.mrb[0].mxu0
      %3903 = vdwg.mxu0
      %v3905 = vsel %vm393, %v3790, 0
      %v3908 = vsel %vm397, %v3800, 0
      %v3911 = vsel %vm397, %v3801, 0
      %v3914 = vsel %vm397, %v3802, 0
      %3916 = vmatprep.subr.bf16.mxu0 %v3911
      %3917 = vmatpush1.bf16.msra.mxu0 %v3908
      %3918 = vmatprep.subr.bf16.mxu0 0
      %3919 = vmatpush1.bf16.msra.mxu0 0
      %3920 = vmatprep.subr.bf16.mxu0 0
      %3921 = vmatpush1.bf16.msra.mxu0 0
      %3922 = vmatprep.subr.bf16.mxu0 0
      %3923 = vmatpush1.bf16.msra.mxu0 0
      %3924 = vmatprep.subr.bf16.mxu0 0
      %3925 = vmatpush1.bf16.msra.mxu0 0
      %3926 = vmatprep.subr.bf16.mxu0 0
      %3927 = vmatpush1.bf16.msra.mxu0 0
      %3928 = vmatprep.subr.bf16.mxu0 0
      %3929 = vmatpush1.bf16.msra.mxu0 0
      %3930 = vmatprep.subr.bf16.mxu0 0
      %3931 = vmatpush1.bf16.msra.mxu0 0
      %3932 = vmatprep.subr.bf16.mxu0 0
      %3933 = vmatpush1.bf16.msra.mxu0 0
      %3934 = vmatprep.subr.bf16.mxu0 0
      %3935 = vmatpush1.bf16.msra.mxu0 0
      %3936 = vmatprep.subr.bf16.mxu0 0
      %3937 = vmatpush1.bf16.msra.mxu0 0
      %3938 = vmatprep.subr.bf16.mxu0 0
      %3939 = vmatpush1.bf16.msra.mxu0 0
      %3940 = vmatprep.subr.bf16.mxu0 0
      %3941 = vmatpush1.bf16.msra.mxu0 0
      %3942 = vmatprep.subr.bf16.mxu0 0
      %3943 = vmatpush1.bf16.msra.mxu0 0
      %3944 = vmatprep.subr.bf16.mxu0 0
      %3945 = vmatpush1.bf16.msra.mxu0 0
      %3946 = vmatprep.subr.bf16.mxu0 0
      %3947 = vmatpush1.bf16.msra.mxu0 0
      %3948 = vmatprep.mubr.bf16.mxu0 0
      %3949 = vmatmul.mubr.bf16.gmra.mrb[0].mxu0 %v3905
      %v3950 = vpop.f32.mrb[0].mxu0
      %v3951 = vadd.f32 %v3858, %v3950
      %v3952 = vpop.f32.mrb[0].mxu0
      %v3953 = vadd.f32 %v3860, %v3952
      %v3954 = vpop.f32.mrb[0].mxu0
      %v3955 = vpop.f32.mrb[0].mxu0
      %3956 = vdwg.mxu0
      %3957 = vmatprep.subr.bf16.mxu0 0
      %3958 = vmatpush1.bf16.msra.mxu0 %v3914
      %3959 = vmatprep.subr.bf16.mxu0 0
      %3960 = vmatpush1.bf16.msra.mxu0 0
      %3961 = vmatprep.subr.bf16.mxu0 0
      %3962 = vmatpush1.bf16.msra.mxu0 0
      %3963 = vmatprep.subr.bf16.mxu0 0
      %3964 = vmatpush1.bf16.msra.mxu0 0
      %3965 = vmatprep.subr.bf16.mxu0 0
      %3966 = vmatpush1.bf16.msra.mxu0 0
      %3967 = vmatprep.subr.bf16.mxu0 0
      %3968 = vmatpush1.bf16.msra.mxu0 0
      %3969 = vmatprep.subr.bf16.mxu0 0
      %3970 = vmatpush1.bf16.msra.mxu0 0
      %3971 = vmatprep.subr.bf16.mxu0 0
      %3972 = vmatpush1.bf16.msra.mxu0 0
      %3973 = vmatprep.subr.bf16.mxu0 0
      %3974 = vmatpush1.bf16.msra.mxu0 0
      %3975 = vmatprep.subr.bf16.mxu0 0
      %3976 = vmatpush1.bf16.msra.mxu0 0
      %3977 = vmatprep.subr.bf16.mxu0 0
      %3978 = vmatpush1.bf16.msra.mxu0 0
      %3979 = vmatprep.subr.bf16.mxu0 0
      %3980 = vmatpush1.bf16.msra.mxu0 0
      %3981 = vmatprep.subr.bf16.mxu0 0
      %3982 = vmatpush1.bf16.msra.mxu0 0
      %3983 = vmatprep.subr.bf16.mxu0 0
      %3984 = vmatpush1.bf16.msra.mxu0 0
      %3985 = vmatprep.subr.bf16.mxu0 0
      %3986 = vmatpush1.bf16.msra.mxu0 0
      %3987 = vmatprep.subr.bf16.mxu0 0
      %3988 = vmatpush1.bf16.msra.mxu0 0
      %3989 = vmatprep.mubr.bf16.mxu0 0
      %3990 = vmatmul.mubr.bf16.gmra.mrb[0].mxu0 %v3905
      %v3991 = vpop.f32.mrb[0].mxu0
      %v3992 = vadd.f32 %v3899, %v3991
      %v3993 = vpop.f32.mrb[0].mxu0
      %v3994 = vpop.f32.mrb[0].mxu0
      %v3995 = vpop.f32.mrb[0].mxu0
      %3996 = vdwg.mxu0
      %s3997 = scalar_lea.vmem %s4, 40
      %v3998 = vld [vmem:[%s3997] sm:$0x3]
      %3999 = vrot.lane.b32.xlu0 %v3800, 126
      %v4000 = vpop.permute.xlu0 %3999
      %4001 = vrot.lane.b32.xlu0 %v3801, 126
      %v4002 = vpop.permute.xlu0 %4001
      %4003 = vrot.lane.b32.xlu0 %v3802, 126
      %v4004 = vpop.permute.xlu0 %4003
      %v4005 = vsel %vm589, %v4000, %v4002
      %v4006 = vsel %vm589, %v4002, %v4004
      %v4008 = vsel %vm393, %v3998, 0
      %v4011 = vsel %vm397, %v4005, 0
      %v4014 = vsel %vm397, %v4006, 0
      %v4017 = vsel %vm397, %v4004, 0
      %4019 = vmatprep.subr.bf16.mxu0 %v4014
      %4020 = vmatpush1.bf16.msra.mxu0 %v4011
      %4021 = vmatprep.subr.bf16.mxu0 0
      %4022 = vmatpush1.bf16.msra.mxu0 0
      %4023 = vmatprep.subr.bf16.mxu0 0
      %4024 = vmatpush1.bf16.msra.mxu0 0
      %4025 = vmatprep.subr.bf16.mxu0 0
      %4026 = vmatpush1.bf16.msra.mxu0 0
      %4027 = vmatprep.subr.bf16.mxu0 0
      %4028 = vmatpush1.bf16.msra.mxu0 0
      %4029 = vmatprep.subr.bf16.mxu0 0
      %4030 = vmatpush1.bf16.msra.mxu0 0
      %4031 = vmatprep.subr.bf16.mxu0 0
      %4032 = vmatpush1.bf16.msra.mxu0 0
      %4033 = vmatprep.subr.bf16.mxu0 0
      %4034 = vmatpush1.bf16.msra.mxu0 0
      %4035 = vmatprep.subr.bf16.mxu0 0
      %4036 = vmatpush1.bf16.msra.mxu0 0
      %4037 = vmatprep.subr.bf16.mxu0 0
      %4038 = vmatpush1.bf16.msra.mxu0 0
      %4039 = vmatprep.subr.bf16.mxu0 0
      %4040 = vmatpush1.bf16.msra.mxu0 0
      %4041 = vmatprep.subr.bf16.mxu0 0
      %4042 = vmatpush1.bf16.msra.mxu0 0
      %4043 = vmatprep.subr.bf16.mxu0 0
      %4044 = vmatpush1.bf16.msra.mxu0 0
      %4045 = vmatprep.subr.bf16.mxu0 0
      %4046 = vmatpush1.bf16.msra.mxu0 0
      %4047 = vmatprep.subr.bf16.mxu0 0
      %4048 = vmatpush1.bf16.msra.mxu0 0
      %4049 = vmatprep.subr.bf16.mxu0 0
      %4050 = vmatpush1.bf16.msra.mxu0 0
      %4051 = vmatprep.mubr.bf16.mxu0 0
      %4052 = vmatmul.mubr.bf16.gmra.mrb[0].mxu0 %v4008
      %v4053 = vpop.f32.mrb[0].mxu0
      %v4054 = vadd.f32 0.0, %v4053
      %v4055 = vpop.f32.mrb[0].mxu0
      %v4056 = vadd.f32 0.0, %v4055
      %v4057 = vpop.f32.mrb[0].mxu0
      %v4058 = vpop.f32.mrb[0].mxu0
      %4059 = vdwg.mxu0
      %4060 = vmatprep.subr.bf16.mxu0 0
      %4061 = vmatpush1.bf16.msra.mxu0 %v4017
      %4062 = vmatprep.subr.bf16.mxu0 0
      %4063 = vmatpush1.bf16.msra.mxu0 0
      %4064 = vmatprep.subr.bf16.mxu0 0
      %4065 = vmatpush1.bf16.msra.mxu0 0
      %4066 = vmatprep.subr.bf16.mxu0 0
      %4067 = vmatpush1.bf16.msra.mxu0 0
      %4068 = vmatprep.subr.bf16.mxu0 0
      %4069 = vmatpush1.bf16.msra.mxu0 0
      %4070 = vmatprep.subr.bf16.mxu0 0
      %4071 = vmatpush1.bf16.msra.mxu0 0
      %4072 = vmatprep.subr.bf16.mxu0 0
      %4073 = vmatpush1.bf16.msra.mxu0 0
      %4074 = vmatprep.subr.bf16.mxu0 0
      %4075 = vmatpush1.bf16.msra.mxu0 0
      %4076 = vmatprep.subr.bf16.mxu0 0
      %4077 = vmatpush1.bf16.msra.mxu0 0
      %4078 = vmatprep.subr.bf16.mxu0 0
      %4079 = vmatpush1.bf16.msra.mxu0 0
      %4080 = vmatprep.subr.bf16.mxu0 0
      %4081 = vmatpush1.bf16.msra.mxu0 0
      %4082 = vmatprep.subr.bf16.mxu0 0
      %4083 = vmatpush1.bf16.msra.mxu0 0
      %4084 = vmatprep.subr.bf16.mxu0 0
      %4085 = vmatpush1.bf16.msra.mxu0 0
      %4086 = vmatprep.subr.bf16.mxu0 0
      %4087 = vmatpush1.bf16.msra.mxu0 0
      %4088 = vmatprep.subr.bf16.mxu0 0
      %4089 = vmatpush1.bf16.msra.mxu0 0
      %4090 = vmatprep.subr.bf16.mxu0 0
      %4091 = vmatpush1.bf16.msra.mxu0 0
      %4092 = vmatprep.mubr.bf16.mxu0 0
      %4093 = vmatmul.mubr.bf16.gmra.mrb[0].mxu0 %v4008
      %v4094 = vpop.f32.mrb[0].mxu0
      %v4095 = vadd.f32 0.0, %v4094
      %v4096 = vpop.f32.mrb[0].mxu0
      %v4097 = vpop.f32.mrb[0].mxu0
      %v4098 = vpop.f32.mrb[0].mxu0
      %4099 = vdwg.mxu0
      %v4100 = vadd.f32 %v3951, %v4054
      %v4101 = vadd.f32 %v3953, %v4056
      %v4102 = vadd.f32 %v3992, %v4095
      %s4103 = scalar_lea.vmem %s4, 42
      %v4104 = vld [vmem:[%s4103] sm:$0x3]
      %4105 = vrot.lane.b32.xlu0 %v3800, 110
      %v4106 = vpop.permute.xlu0 %4105
      %4107 = vrot.lane.b32.xlu0 %v3801, 110
      %v4108 = vpop.permute.xlu0 %4107
      %4109 = vrot.lane.b32.xlu0 %v3802, 110
      %v4110 = vpop.permute.xlu0 %4109
      %v4111 = vsel %vm696, %v4106, %v4108
      %v4112 = vsel %vm696, %v4108, %v4110
      %v4114 = vsel %vm393, %v4104, 0
      %v4117 = vsel %vm397, %v4111, 0
      %v4120 = vsel %vm397, %v4112, 0
      %v4123 = vsel %vm397, %v4110, 0
      %4125 = vmatprep.subr.bf16.mxu0 %v4120
      %4126 = vmatpush1.bf16.msra.mxu0 %v4117
      %4127 = vmatprep.subr.bf16.mxu0 0
      %4128 = vmatpush1.bf16.msra.mxu0 0
      %4129 = vmatprep.subr.bf16.mxu0 0
      %4130 = vmatpush1.bf16.msra.mxu0 0
      %4131 = vmatprep.subr.bf16.mxu0 0
      %4132 = vmatpush1.bf16.msra.mxu0 0
      %4133 = vmatprep.subr.bf16.mxu0 0
      %4134 = vmatpush1.bf16.msra.mxu0 0
      %4135 = vmatprep.subr.bf16.mxu0 0
      %4136 = vmatpush1.bf16.msra.mxu0 0
      %4137 = vmatprep.subr.bf16.mxu0 0
      %4138 = vmatpush1.bf16.msra.mxu0 0
      %4139 = vmatprep.subr.bf16.mxu0 0
      %4140 = vmatpush1.bf16.msra.mxu0 0
      %4141 = vmatprep.subr.bf16.mxu0 0
      %4142 = vmatpush1.bf16.msra.mxu0 0
      %4143 = vmatprep.subr.bf16.mxu0 0
      %4144 = vmatpush1.bf16.msra.mxu0 0
      %4145 = vmatprep.subr.bf16.mxu0 0
      %4146 = vmatpush1.bf16.msra.mxu0 0
      %4147 = vmatprep.subr.bf16.mxu0 0
      %4148 = vmatpush1.bf16.msra.mxu0 0
      %4149 = vmatprep.subr.bf16.mxu0 0
      %4150 = vmatpush1.bf16.msra.mxu0 0
      %4151 = vmatprep.subr.bf16.mxu0 0
      %4152 = vmatpush1.bf16.msra.mxu0 0
      %4153 = vmatprep.subr.bf16.mxu0 0
      %4154 = vmatpush1.bf16.msra.mxu0 0
      %4155 = vmatprep.subr.bf16.mxu0 0
      %4156 = vmatpush1.bf16.msra.mxu0 0
      %4157 = vmatprep.mubr.bf16.mxu0 0
      %4158 = vmatmul.mubr.bf16.gmra.mrb[0].mxu0 %v4114
      %v4159 = vpop.f32.mrb[0].mxu0
      %v4160 = vadd.f32 0.0, %v4159
      %v4161 = vpop.f32.mrb[0].mxu0
      %v4162 = vadd.f32 0.0, %v4161
      %v4163 = vpop.f32.mrb[0].mxu0
      %v4164 = vpop.f32.mrb[0].mxu0
      %4165 = vdwg.mxu0
      %4166 = vmatprep.subr.bf16.mxu0 0
      %4167 = vmatpush1.bf16.msra.mxu0 %v4123
      %4168 = vmatprep.subr.bf16.mxu0 0
      %4169 = vmatpush1.bf16.msra.mxu0 0
      %4170 = vmatprep.subr.bf16.mxu0 0
      %4171 = vmatpush1.bf16.msra.mxu0 0
      %4172 = vmatprep.subr.bf16.mxu0 0
      %4173 = vmatpush1.bf16.msra.mxu0 0
      %4174 = vmatprep.subr.bf16.mxu0 0
      %4175 = vmatpush1.bf16.msra.mxu0 0
      %4176 = vmatprep.subr.bf16.mxu0 0
      %4177 = vmatpush1.bf16.msra.mxu0 0
      %4178 = vmatprep.subr.bf16.mxu0 0
      %4179 = vmatpush1.bf16.msra.mxu0 0
      %4180 = vmatprep.subr.bf16.mxu0 0
      %4181 = vmatpush1.bf16.msra.mxu0 0
      %4182 = vmatprep.subr.bf16.mxu0 0
      %4183 = vmatpush1.bf16.msra.mxu0 0
      %4184 = vmatprep.subr.bf16.mxu0 0
      %4185 = vmatpush1.bf16.msra.mxu0 0
      %4186 = vmatprep.subr.bf16.mxu0 0
      %4187 = vmatpush1.bf16.msra.mxu0 0
      %4188 = vmatprep.subr.bf16.mxu0 0
      %4189 = vmatpush1.bf16.msra.mxu0 0
      %4190 = vmatprep.subr.bf16.mxu0 0
      %4191 = vmatpush1.bf16.msra.mxu0 0
      %4192 = vmatprep.subr.bf16.mxu0 0
      %4193 = vmatpush1.bf16.msra.mxu0 0
      %4194 = vmatprep.subr.bf16.mxu0 0
      %4195 = vmatpush1.bf16.msra.mxu0 0
      %4196 = vmatprep.subr.bf16.mxu0 0
      %4197 = vmatpush1.bf16.msra.mxu0 0
      %4198 = vmatprep.mubr.bf16.mxu0 0
      %4199 = vmatmul.mubr.bf16.gmra.mrb[0].mxu0 %v4114
      %v4200 = vpop.f32.mrb[0].mxu0
      %v4201 = vadd.f32 0.0, %v4200
      %v4202 = vpop.f32.mrb[0].mxu0
      %v4203 = vpop.f32.mrb[0].mxu0
      %v4204 = vpop.f32.mrb[0].mxu0
      %4205 = vdwg.mxu0
      %v4206 = vadd.f32 %v4100, %v4160
      %v4207 = vadd.f32 %v4101, %v4162
      %v4208 = vadd.f32 %v4102, %v4201
      %s4209 = scalar_lea.vmem %s4, 44
      %v4210 = vld [vmem:[%s4209] sm:$0x3]
      %4211 = vrot.lane.b32.xlu0 %v3800, 109
      %v4212 = vpop.permute.xlu0 %4211
      %4213 = vrot.lane.b32.xlu0 %v3801, 109
      %v4214 = vpop.permute.xlu0 %4213
      %4215 = vrot.lane.b32.xlu0 %v3802, 109
      %v4216 = vpop.permute.xlu0 %4215
      %v4217 = vsel %vm803, %v4212, %v4214
      %v4218 = vsel %vm803, %v4214, %v4216
      %v4220 = vsel %vm393, %v4210, 0
      %v4223 = vsel %vm397, %v4217, 0
      %v4226 = vsel %vm397, %v4218, 0
      %v4229 = vsel %vm397, %v4216, 0
      %4231 = vmatprep.subr.bf16.mxu0 %v4226
      %4232 = vmatpush1.bf16.msra.mxu0 %v4223
      %4233 = vmatprep.subr.bf16.mxu0 0
      %4234 = vmatpush1.bf16.msra.mxu0 0
      %4235 = vmatprep.subr.bf16.mxu0 0
      %4236 = vmatpush1.bf16.msra.mxu0 0
      %4237 = vmatprep.subr.bf16.mxu0 0
      %4238 = vmatpush1.bf16.msra.mxu0 0
      %4239 = vmatprep.subr.bf16.mxu0 0
      %4240 = vmatpush1.bf16.msra.mxu0 0
      %4241 = vmatprep.subr.bf16.mxu0 0
      %4242 = vmatpush1.bf16.msra.mxu0 0
      %4243 = vmatprep.subr.bf16.mxu0 0
      %4244 = vmatpush1.bf16.msra.mxu0 0
      %4245 = vmatprep.subr.bf16.mxu0 0
      %4246 = vmatpush1.bf16.msra.mxu0 0
      %4247 = vmatprep.subr.bf16.mxu0 0
      %4248 = vmatpush1.bf16.msra.mxu0 0
      %4249 = vmatprep.subr.bf16.mxu0 0
      %4250 = vmatpush1.bf16.msra.mxu0 0
      %4251 = vmatprep.subr.bf16.mxu0 0
      %4252 = vmatpush1.bf16.msra.mxu0 0
      %4253 = vmatprep.subr.bf16.mxu0 0
      %4254 = vmatpush1.bf16.msra.mxu0 0
      %4255 = vmatprep.subr.bf16.mxu0 0
      %4256 = vmatpush1.bf16.msra.mxu0 0
      %4257 = vmatprep.subr.bf16.mxu0 0
      %4258 = vmatpush1.bf16.msra.mxu0 0
      %4259 = vmatprep.subr.bf16.mxu0 0
      %4260 = vmatpush1.bf16.msra.mxu0 0
      %4261 = vmatprep.subr.bf16.mxu0 0
      %4262 = vmatpush1.bf16.msra.mxu0 0
      %4263 = vmatprep.mubr.bf16.mxu0 0
      %4264 = vmatmul.mubr.bf16.gmra.mrb[0].mxu0 %v4220
      %v4265 = vpop.f32.mrb[0].mxu0
      %v4266 = vadd.f32 0.0, %v4265
      %v4267 = vpop.f32.mrb[0].mxu0
      %v4268 = vadd.f32 0.0, %v4267
      %v4269 = vpop.f32.mrb[0].mxu0
      %v4270 = vpop.f32.mrb[0].mxu0
      %4271 = vdwg.mxu0
      %4272 = vmatprep.subr.bf16.mxu0 0
      %4273 = vmatpush1.bf16.msra.mxu0 %v4229
      %4274 = vmatprep.subr.bf16.mxu0 0
      %4275 = vmatpush1.bf16.msra.mxu0 0
      %4276 = vmatprep.subr.bf16.mxu0 0
      %4277 = vmatpush1.bf16.msra.mxu0 0
      %4278 = vmatprep.subr.bf16.mxu0 0
      %4279 = vmatpush1.bf16.msra.mxu0 0
      %4280 = vmatprep.subr.bf16.mxu0 0
      %4281 = vmatpush1.bf16.msra.mxu0 0
      %4282 = vmatprep.subr.bf16.mxu0 0
      %4283 = vmatpush1.bf16.msra.mxu0 0
      %4284 = vmatprep.subr.bf16.mxu0 0
      %4285 = vmatpush1.bf16.msra.mxu0 0
      %4286 = vmatprep.subr.bf16.mxu0 0
      %4287 = vmatpush1.bf16.msra.mxu0 0
      %4288 = vmatprep.subr.bf16.mxu0 0
      %4289 = vmatpush1.bf16.msra.mxu0 0
      %4290 = vmatprep.subr.bf16.mxu0 0
      %4291 = vmatpush1.bf16.msra.mxu0 0
      %4292 = vmatprep.subr.bf16.mxu0 0
      %4293 = vmatpush1.bf16.msra.mxu0 0
      %4294 = vmatprep.subr.bf16.mxu0 0
      %4295 = vmatpush1.bf16.msra.mxu0 0
      %4296 = vmatprep.subr.bf16.mxu0 0
      %4297 = vmatpush1.bf16.msra.mxu0 0
      %4298 = vmatprep.subr.bf16.mxu0 0
      %4299 = vmatpush1.bf16.msra.mxu0 0
      %4300 = vmatprep.subr.bf16.mxu0 0
      %4301 = vmatpush1.bf16.msra.mxu0 0
      %4302 = vmatprep.subr.bf16.mxu0 0
      %4303 = vmatpush1.bf16.msra.mxu0 0
      %4304 = vmatprep.mubr.bf16.mxu0 0
      %4305 = vmatmul.mubr.bf16.gmra.mrb[0].mxu0 %v4220
      %v4306 = vpop.f32.mrb[0].mxu0
      %v4307 = vadd.f32 0.0, %v4306
      %v4308 = vpop.f32.mrb[0].mxu0
      %v4309 = vpop.f32.mrb[0].mxu0
      %v4310 = vpop.f32.mrb[0].mxu0
      %4311 = vdwg.mxu0
      %v4312 = vadd.f32 %v4206, %v4266
      %v4313 = vadd.f32 %v4207, %v4268
      %v4314 = vadd.f32 %v4208, %v4307
      %s4315 = scalar_lea.vmem %s4, 46
      %v4316 = vld [vmem:[%s4315] sm:$0x3]
      %4317 = vrot.lane.b32.xlu0 %v3800, 108
      %v4318 = vpop.permute.xlu0 %4317
      %4319 = vrot.lane.b32.xlu0 %v3801, 108
      %v4320 = vpop.permute.xlu0 %4319
      %4321 = vrot.lane.b32.xlu0 %v3802, 108
      %v4322 = vpop.permute.xlu0 %4321
      %v4323 = vsel %vm910, %v4318, %v4320
      %v4324 = vsel %vm910, %v4320, %v4322
      %v4326 = vsel %vm393, %v4316, 0
      %v4329 = vsel %vm397, %v4323, 0
      %v4332 = vsel %vm397, %v4324, 0
      %v4335 = vsel %vm397, %v4322, 0
      %4337 = vmatprep.subr.bf16.mxu0 %v4332
      %4338 = vmatpush1.bf16.msra.mxu0 %v4329
      %4339 = vmatprep.subr.bf16.mxu0 0
      %4340 = vmatpush1.bf16.msra.mxu0 0
      %4341 = vmatprep.subr.bf16.mxu0 0
      %4342 = vmatpush1.bf16.msra.mxu0 0
      %4343 = vmatprep.subr.bf16.mxu0 0
      %4344 = vmatpush1.bf16.msra.mxu0 0
      %4345 = vmatprep.subr.bf16.mxu0 0
      %4346 = vmatpush1.bf16.msra.mxu0 0
      %4347 = vmatprep.subr.bf16.mxu0 0
      %4348 = vmatpush1.bf16.msra.mxu0 0
      %4349 = vmatprep.subr.bf16.mxu0 0
      %4350 = vmatpush1.bf16.msra.mxu0 0
      %4351 = vmatprep.subr.bf16.mxu0 0
      %4352 = vmatpush1.bf16.msra.mxu0 0
      %4353 = vmatprep.subr.bf16.mxu0 0
      %4354 = vmatpush1.bf16.msra.mxu0 0
      %4355 = vmatprep.subr.bf16.mxu0 0
      %4356 = vmatpush1.bf16.msra.mxu0 0
      %4357 = vmatprep.subr.bf16.mxu0 0
      %4358 = vmatpush1.bf16.msra.mxu0 0
      %4359 = vmatprep.subr.bf16.mxu0 0
      %4360 = vmatpush1.bf16.msra.mxu0 0
      %4361 = vmatprep.subr.bf16.mxu0 0
      %4362 = vmatpush1.bf16.msra.mxu0 0
      %4363 = vmatprep.subr.bf16.mxu0 0
      %4364 = vmatpush1.bf16.msra.mxu0 0
      %4365 = vmatprep.subr.bf16.mxu0 0
      %4366 = vmatpush1.bf16.msra.mxu0 0
      %4367 = vmatprep.subr.bf16.mxu0 0
      %4368 = vmatpush1.bf16.msra.mxu0 0
      %4369 = vmatprep.mubr.bf16.mxu0 0
      %4370 = vmatmul.mubr.bf16.gmra.mrb[0].mxu0 %v4326
      %v4371 = vpop.f32.mrb[0].mxu0
      %v4372 = vadd.f32 0.0, %v4371
      %v4373 = vpop.f32.mrb[0].mxu0
      %v4374 = vadd.f32 0.0, %v4373
      %v4375 = vpop.f32.mrb[0].mxu0
      %v4376 = vpop.f32.mrb[0].mxu0
      %4377 = vdwg.mxu0
      %4378 = vmatprep.subr.bf16.mxu0 0
      %4379 = vmatpush1.bf16.msra.mxu0 %v4335
      %4380 = vmatprep.subr.bf16.mxu0 0
      %4381 = vmatpush1.bf16.msra.mxu0 0
      %4382 = vmatprep.subr.bf16.mxu0 0
      %4383 = vmatpush1.bf16.msra.mxu0 0
      %4384 = vmatprep.subr.bf16.mxu0 0
      %4385 = vmatpush1.bf16.msra.mxu0 0
      %4386 = vmatprep.subr.bf16.mxu0 0
      %4387 = vmatpush1.bf16.msra.mxu0 0
      %4388 = vmatprep.subr.bf16.mxu0 0
      %4389 = vmatpush1.bf16.msra.mxu0 0
      %4390 = vmatprep.subr.bf16.mxu0 0
      %4391 = vmatpush1.bf16.msra.mxu0 0
      %4392 = vmatprep.subr.bf16.mxu0 0
      %4393 = vmatpush1.bf16.msra.mxu0 0
      %4394 = vmatprep.subr.bf16.mxu0 0
      %4395 = vmatpush1.bf16.msra.mxu0 0
      %4396 = vmatprep.subr.bf16.mxu0 0
      %4397 = vmatpush1.bf16.msra.mxu0 0
      %4398 = vmatprep.subr.bf16.mxu0 0
      %4399 = vmatpush1.bf16.msra.mxu0 0
      %4400 = vmatprep.subr.bf16.mxu0 0
      %4401 = vmatpush1.bf16.msra.mxu0 0
      %4402 = vmatprep.subr.bf16.mxu0 0
      %4403 = vmatpush1.bf16.msra.mxu0 0
      %4404 = vmatprep.subr.bf16.mxu0 0
      %4405 = vmatpush1.bf16.msra.mxu0 0
      %4406 = vmatprep.subr.bf16.mxu0 0
      %4407 = vmatpush1.bf16.msra.mxu0 0
      %4408 = vmatprep.subr.bf16.mxu0 0
      %4409 = vmatpush1.bf16.msra.mxu0 0
      %4410 = vmatprep.mubr.bf16.mxu0 0
      %4411 = vmatmul.mubr.bf16.gmra.mrb[0].mxu0 %v4326
      %v4412 = vpop.f32.mrb[0].mxu0
      %v4413 = vadd.f32 0.0, %v4412
      %v4414 = vpop.f32.mrb[0].mxu0
      %v4415 = vpop.f32.mrb[0].mxu0
      %v4416 = vpop.f32.mrb[0].mxu0
      %4417 = vdwg.mxu0
      %v4418 = vadd.f32 %v4312, %v4372
      %v4419 = vadd.f32 %v4313, %v4374
      %v4420 = vadd.f32 %v4314, %v4413
      %s4421 = scalar_lea.vmem %s4, 48
      %v4422 = vld [vmem:[%s4421] sm:$0x3]
      %4423 = vrot.lane.b32.xlu0 %v3800, 92
      %v4424 = vpop.permute.xlu0 %4423
      %4425 = vrot.lane.b32.xlu0 %v3801, 92
      %v4426 = vpop.permute.xlu0 %4425
      %4427 = vrot.lane.b32.xlu0 %v3802, 92
      %v4428 = vpop.permute.xlu0 %4427
      %v4429 = vsel %vm1017, %v4424, %v4426
      %v4430 = vsel %vm1017, %v4426, %v4428
      %v4432 = vsel %vm393, %v4422, 0
      %v4435 = vsel %vm397, %v4429, 0
      %v4438 = vsel %vm397, %v4430, 0
      %v4441 = vsel %vm397, %v4428, 0
      %4443 = vmatprep.subr.bf16.mxu0 %v4438
      %4444 = vmatpush1.bf16.msra.mxu0 %v4435
      %4445 = vmatprep.subr.bf16.mxu0 0
      %4446 = vmatpush1.bf16.msra.mxu0 0
      %4447 = vmatprep.subr.bf16.mxu0 0
      %4448 = vmatpush1.bf16.msra.mxu0 0
      %4449 = vmatprep.subr.bf16.mxu0 0
      %4450 = vmatpush1.bf16.msra.mxu0 0
      %4451 = vmatprep.subr.bf16.mxu0 0
      %4452 = vmatpush1.bf16.msra.mxu0 0
      %4453 = vmatprep.subr.bf16.mxu0 0
      %4454 = vmatpush1.bf16.msra.mxu0 0
      %4455 = vmatprep.subr.bf16.mxu0 0
      %4456 = vmatpush1.bf16.msra.mxu0 0
      %4457 = vmatprep.subr.bf16.mxu0 0
      %4458 = vmatpush1.bf16.msra.mxu0 0
      %4459 = vmatprep.subr.bf16.mxu0 0
      %4460 = vmatpush1.bf16.msra.mxu0 0
      %4461 = vmatprep.subr.bf16.mxu0 0
      %4462 = vmatpush1.bf16.msra.mxu0 0
      %4463 = vmatprep.subr.bf16.mxu0 0
      %4464 = vmatpush1.bf16.msra.mxu0 0
      %4465 = vmatprep.subr.bf16.mxu0 0
      %4466 = vmatpush1.bf16.msra.mxu0 0
      %4467 = vmatprep.subr.bf16.mxu0 0
      %4468 = vmatpush1.bf16.msra.mxu0 0
      %4469 = vmatprep.subr.bf16.mxu0 0
      %4470 = vmatpush1.bf16.msra.mxu0 0
      %4471 = vmatprep.subr.bf16.mxu0 0
      %4472 = vmatpush1.bf16.msra.mxu0 0
      %4473 = vmatprep.subr.bf16.mxu0 0
      %4474 = vmatpush1.bf16.msra.mxu0 0
      %4475 = vmatprep.mubr.bf16.mxu0 0
      %4476 = vmatmul.mubr.bf16.gmra.mrb[0].mxu0 %v4432
      %v4477 = vpop.f32.mrb[0].mxu0
      %v4478 = vadd.f32 0.0, %v4477
      %v4479 = vpop.f32.mrb[0].mxu0
      %v4480 = vadd.f32 0.0, %v4479
      %v4481 = vpop.f32.mrb[0].mxu0
      %v4482 = vpop.f32.mrb[0].mxu0
      %4483 = vdwg.mxu0
      %4484 = vmatprep.subr.bf16.mxu0 0
      %4485 = vmatpush1.bf16.msra.mxu0 %v4441
      %4486 = vmatprep.subr.bf16.mxu0 0
      %4487 = vmatpush1.bf16.msra.mxu0 0
      %4488 = vmatprep.subr.bf16.mxu0 0
      %4489 = vmatpush1.bf16.msra.mxu0 0
      %4490 = vmatprep.subr.bf16.mxu0 0
      %4491 = vmatpush1.bf16.msra.mxu0 0
      %4492 = vmatprep.subr.bf16.mxu0 0
      %4493 = vmatpush1.bf16.msra.mxu0 0
      %4494 = vmatprep.subr.bf16.mxu0 0
      %4495 = vmatpush1.bf16.msra.mxu0 0
      %4496 = vmatprep.subr.bf16.mxu0 0
      %4497 = vmatpush1.bf16.msra.mxu0 0
      %4498 = vmatprep.subr.bf16.mxu0 0
      %4499 = vmatpush1.bf16.msra.mxu0 0
      %4500 = vmatprep.subr.bf16.mxu0 0
      %4501 = vmatpush1.bf16.msra.mxu0 0
      %4502 = vmatprep.subr.bf16.mxu0 0
      %4503 = vmatpush1.bf16.msra.mxu0 0
      %4504 = vmatprep.subr.bf16.mxu0 0
      %4505 = vmatpush1.bf16.msra.mxu0 0
      %4506 = vmatprep.subr.bf16.mxu0 0
      %4507 = vmatpush1.bf16.msra.mxu0 0
      %4508 = vmatprep.subr.bf16.mxu0 0
      %4509 = vmatpush1.bf16.msra.mxu0 0
      %4510 = vmatprep.subr.bf16.mxu0 0
      %4511 = vmatpush1.bf16.msra.mxu0 0
      %4512 = vmatprep.subr.bf16.mxu0 0
      %4513 = vmatpush1.bf16.msra.mxu0 0
      %4514 = vmatprep.subr.bf16.mxu0 0
      %4515 = vmatpush1.bf16.msra.mxu0 0
      %4516 = vmatprep.mubr.bf16.mxu0 0
      %4517 = vmatmul.mubr.bf16.gmra.mrb[0].mxu0 %v4432
      %v4518 = vpop.f32.mrb[0].mxu0
      %v4519 = vadd.f32 0.0, %v4518
      %v4520 = vpop.f32.mrb[0].mxu0
      %v4521 = vpop.f32.mrb[0].mxu0
      %v4522 = vpop.f32.mrb[0].mxu0
      %4523 = vdwg.mxu0
      %v4524 = vadd.f32 %v4418, %v4478
      %v4525 = vadd.f32 %v4419, %v4480
      %v4526 = vadd.f32 %v4420, %v4519
      %s4527 = scalar_lea.vmem %s4, 50
      %v4528 = vld [vmem:[%s4527] sm:$0x3]
      %4529 = vrot.lane.b32.xlu0 %v3800, 91
      %v4530 = vpop.permute.xlu0 %4529
      %4531 = vrot.lane.b32.xlu0 %v3801, 91
      %v4532 = vpop.permute.xlu0 %4531
      %4533 = vrot.lane.b32.xlu0 %v3802, 91
      %v4534 = vpop.permute.xlu0 %4533
      %v4535 = vsel %vm1124, %v4530, %v4532
      %v4536 = vsel %vm1124, %v4532, %v4534
      %v4538 = vsel %vm393, %v4528, 0
      %v4541 = vsel %vm397, %v4535, 0
      %v4544 = vsel %vm397, %v4536, 0
      %v4547 = vsel %vm397, %v4534, 0
      %4549 = vmatprep.subr.bf16.mxu0 %v4544
      %4550 = vmatpush1.bf16.msra.mxu0 %v4541
      %4551 = vmatprep.subr.bf16.mxu0 0
      %4552 = vmatpush1.bf16.msra.mxu0 0
      %4553 = vmatprep.subr.bf16.mxu0 0
      %4554 = vmatpush1.bf16.msra.mxu0 0
      %4555 = vmatprep.subr.bf16.mxu0 0
      %4556 = vmatpush1.bf16.msra.mxu0 0
      %4557 = vmatprep.subr.bf16.mxu0 0
      %4558 = vmatpush1.bf16.msra.mxu0 0
      %4559 = vmatprep.subr.bf16.mxu0 0
      %4560 = vmatpush1.bf16.msra.mxu0 0
      %4561 = vmatprep.subr.bf16.mxu0 0
      %4562 = vmatpush1.bf16.msra.mxu0 0
      %4563 = vmatprep.subr.bf16.mxu0 0
      %4564 = vmatpush1.bf16.msra.mxu0 0
      %4565 = vmatprep.subr.bf16.mxu0 0
      %4566 = vmatpush1.bf16.msra.mxu0 0
      %4567 = vmatprep.subr.bf16.mxu0 0
      %4568 = vmatpush1.bf16.msra.mxu0 0
      %4569 = vmatprep.subr.bf16.mxu0 0
      %4570 = vmatpush1.bf16.msra.mxu0 0
      %4571 = vmatprep.subr.bf16.mxu0 0
      %4572 = vmatpush1.bf16.msra.mxu0 0
      %4573 = vmatprep.subr.bf16.mxu0 0
      %4574 = vmatpush1.bf16.msra.mxu0 0
      %4575 = vmatprep.subr.bf16.mxu0 0
      %4576 = vmatpush1.bf16.msra.mxu0 0
      %4577 = vmatprep.subr.bf16.mxu0 0
      %4578 = vmatpush1.bf16.msra.mxu0 0
      %4579 = vmatprep.subr.bf16.mxu0 0
      %4580 = vmatpush1.bf16.msra.mxu0 0
      %4581 = vmatprep.mubr.bf16.mxu0 0
      %4582 = vmatmul.mubr.bf16.gmra.mrb[0].mxu0 %v4538
      %v4583 = vpop.f32.mrb[0].mxu0
      %v4584 = vadd.f32 0.0, %v4583
      %v4585 = vpop.f32.mrb[0].mxu0
      %v4586 = vadd.f32 0.0, %v4585
      %v4587 = vpop.f32.mrb[0].mxu0
      %v4588 = vpop.f32.mrb[0].mxu0
      %4589 = vdwg.mxu0
      %4590 = vmatprep.subr.bf16.mxu0 0
      %4591 = vmatpush1.bf16.msra.mxu0 %v4547
      %4592 = vmatprep.subr.bf16.mxu0 0
      %4593 = vmatpush1.bf16.msra.mxu0 0
      %4594 = vmatprep.subr.bf16.mxu0 0
      %4595 = vmatpush1.bf16.msra.mxu0 0
      %4596 = vmatprep.subr.bf16.mxu0 0
      %4597 = vmatpush1.bf16.msra.mxu0 0
      %4598 = vmatprep.subr.bf16.mxu0 0
      %4599 = vmatpush1.bf16.msra.mxu0 0
      %4600 = vmatprep.subr.bf16.mxu0 0
      %4601 = vmatpush1.bf16.msra.mxu0 0
      %4602 = vmatprep.subr.bf16.mxu0 0
      %4603 = vmatpush1.bf16.msra.mxu0 0
      %4604 = vmatprep.subr.bf16.mxu0 0
      %4605 = vmatpush1.bf16.msra.mxu0 0
      %4606 = vmatprep.subr.bf16.mxu0 0
      %4607 = vmatpush1.bf16.msra.mxu0 0
      %4608 = vmatprep.subr.bf16.mxu0 0
      %4609 = vmatpush1.bf16.msra.mxu0 0
      %4610 = vmatprep.subr.bf16.mxu0 0
      %4611 = vmatpush1.bf16.msra.mxu0 0
      %4612 = vmatprep.subr.bf16.mxu0 0
      %4613 = vmatpush1.bf16.msra.mxu0 0
      %4614 = vmatprep.subr.bf16.mxu0 0
      %4615 = vmatpush1.bf16.msra.mxu0 0
      %4616 = vmatprep.subr.bf16.mxu0 0
      %4617 = vmatpush1.bf16.msra.mxu0 0
      %4618 = vmatprep.subr.bf16.mxu0 0
      %4619 = vmatpush1.bf16.msra.mxu0 0
      %4620 = vmatprep.subr.bf16.mxu0 0
      %4621 = vmatpush1.bf16.msra.mxu0 0
      %4622 = vmatprep.mubr.bf16.mxu0 0
      %4623 = vmatmul.mubr.bf16.gmra.mrb[0].mxu0 %v4538
      %v4624 = vpop.f32.mrb[0].mxu0
      %v4625 = vadd.f32 0.0, %v4624
      %v4626 = vpop.f32.mrb[0].mxu0
      %v4627 = vpop.f32.mrb[0].mxu0
      %v4628 = vpop.f32.mrb[0].mxu0
      %4629 = vdwg.mxu0
      %v4630 = vadd.f32 %v4524, %v4584
      %v4631 = vadd.f32 %v4525, %v4586
      %v4632 = vadd.f32 %v4526, %v4625
      %s4633 = scalar_lea.vmem %s4, 52
      %v4634 = vld [vmem:[%s4633] sm:$0x3]
      %4635 = vrot.lane.b32.xlu0 %v3800, 90
      %v4636 = vpop.permute.xlu0 %4635
      %4637 = vrot.lane.b32.xlu0 %v3801, 90
      %v4638 = vpop.permute.xlu0 %4637
      %4639 = vrot.lane.b32.xlu0 %v3802, 90
      %v4640 = vpop.permute.xlu0 %4639
      %v4641 = vsel %vm1231, %v4636, %v4638
      %v4642 = vsel %vm1231, %v4638, %v4640
      %v4644 = vsel %vm393, %v4634, 0
      %v4647 = vsel %vm397, %v4641, 0
      %v4650 = vsel %vm397, %v4642, 0
      %v4653 = vsel %vm397, %v4640, 0
      %4655 = vmatprep.subr.bf16.mxu0 %v4650
      %4656 = vmatpush1.bf16.msra.mxu0 %v4647
      %4657 = vmatprep.subr.bf16.mxu0 0
      %4658 = vmatpush1.bf16.msra.mxu0 0
      %4659 = vmatprep.subr.bf16.mxu0 0
      %4660 = vmatpush1.bf16.msra.mxu0 0
      %4661 = vmatprep.subr.bf16.mxu0 0
      %4662 = vmatpush1.bf16.msra.mxu0 0
      %4663 = vmatprep.subr.bf16.mxu0 0
      %4664 = vmatpush1.bf16.msra.mxu0 0
      %4665 = vmatprep.subr.bf16.mxu0 0
      %4666 = vmatpush1.bf16.msra.mxu0 0
      %4667 = vmatprep.subr.bf16.mxu0 0
      %4668 = vmatpush1.bf16.msra.mxu0 0
      %4669 = vmatprep.subr.bf16.mxu0 0
      %4670 = vmatpush1.bf16.msra.mxu0 0
      %4671 = vmatprep.subr.bf16.mxu0 0
      %4672 = vmatpush1.bf16.msra.mxu0 0
      %4673 = vmatprep.subr.bf16.mxu0 0
      %4674 = vmatpush1.bf16.msra.mxu0 0
      %4675 = vmatprep.subr.bf16.mxu0 0
      %4676 = vmatpush1.bf16.msra.mxu0 0
      %4677 = vmatprep.subr.bf16.mxu0 0
      %4678 = vmatpush1.bf16.msra.mxu0 0
      %4679 = vmatprep.subr.bf16.mxu0 0
      %4680 = vmatpush1.bf16.msra.mxu0 0
      %4681 = vmatprep.subr.bf16.mxu0 0
      %4682 = vmatpush1.bf16.msra.mxu0 0
      %4683 = vmatprep.subr.bf16.mxu0 0
      %4684 = vmatpush1.bf16.msra.mxu0 0
      %4685 = vmatprep.subr.bf16.mxu0 0
      %4686 = vmatpush1.bf16.msra.mxu0 0
      %4687 = vmatprep.mubr.bf16.mxu0 0
      %4688 = vmatmul.mubr.bf16.gmra.mrb[0].mxu0 %v4644
      %v4689 = vpop.f32.mrb[0].mxu0
      %v4690 = vadd.f32 0.0, %v4689
      %v4691 = vpop.f32.mrb[0].mxu0
      %v4692 = vadd.f32 0.0, %v4691
      %v4693 = vpop.f32.mrb[0].mxu0
      %v4694 = vpop.f32.mrb[0].mxu0
      %4695 = vdwg.mxu0
      %4696 = vmatprep.subr.bf16.mxu0 0
      %4697 = vmatpush1.bf16.msra.mxu0 %v4653
      %4698 = vmatprep.subr.bf16.mxu0 0
      %4699 = vmatpush1.bf16.msra.mxu0 0
      %4700 = vmatprep.subr.bf16.mxu0 0
      %4701 = vmatpush1.bf16.msra.mxu0 0
      %4702 = vmatprep.subr.bf16.mxu0 0
      %4703 = vmatpush1.bf16.msra.mxu0 0
      %4704 = vmatprep.subr.bf16.mxu0 0
      %4705 = vmatpush1.bf16.msra.mxu0 0
      %4706 = vmatprep.subr.bf16.mxu0 0
      %4707 = vmatpush1.bf16.msra.mxu0 0
      %4708 = vmatprep.subr.bf16.mxu0 0
      %4709 = vmatpush1.bf16.msra.mxu0 0
      %4710 = vmatprep.subr.bf16.mxu0 0
      %4711 = vmatpush1.bf16.msra.mxu0 0
      %4712 = vmatprep.subr.bf16.mxu0 0
      %4713 = vmatpush1.bf16.msra.mxu0 0
      %4714 = vmatprep.subr.bf16.mxu0 0
      %4715 = vmatpush1.bf16.msra.mxu0 0
      %4716 = vmatprep.subr.bf16.mxu0 0
      %4717 = vmatpush1.bf16.msra.mxu0 0
      %4718 = vmatprep.subr.bf16.mxu0 0
      %4719 = vmatpush1.bf16.msra.mxu0 0
      %4720 = vmatprep.subr.bf16.mxu0 0
      %4721 = vmatpush1.bf16.msra.mxu0 0
      %4722 = vmatprep.subr.bf16.mxu0 0
      %4723 = vmatpush1.bf16.msra.mxu0 0
      %4724 = vmatprep.subr.bf16.mxu0 0
      %4725 = vmatpush1.bf16.msra.mxu0 0
      %4726 = vmatprep.subr.bf16.mxu0 0
      %4727 = vmatpush1.bf16.msra.mxu0 0
      %4728 = vmatprep.mubr.bf16.mxu0 0
      %4729 = vmatmul.mubr.bf16.gmra.mrb[0].mxu0 %v4644
      %v4730 = vpop.f32.mrb[0].mxu0
      %v4731 = vadd.f32 0.0, %v4730
      %v4732 = vpop.f32.mrb[0].mxu0
      %v4733 = vpop.f32.mrb[0].mxu0
      %v4734 = vpop.f32.mrb[0].mxu0
      %4735 = vdwg.mxu0
      %v4736 = vadd.f32 %v4630, %v4690
      %v4737 = vadd.f32 %v4631, %v4692
      %v4738 = vadd.f32 %v4632, %v4731
      %4740 = vset.pattern.permute.xlu0 0
      %4741 = vperm.xlu0 %4740, %v3788
      %v4742 = vpop.permute.xlu0 %4741
      %v4744 = vadd.f32 %v4736, %v4742
      %v4745 = vadd.f32 %v4737, %v4742
      %v4746 = vadd.f32 %v4738, %v4742
      %v4747 = vmax.f32 %v4744, 0.0
      %v4748 = vmax.f32 %v4745, 0.0
      %v4749 = vmax.f32 %v4746, 0.0
      %v4750 = vsub.f32 0.0, %v4744
      %v4751 = vsub.f32 0.0, %v4745
      %v4752 = vsub.f32 0.0, %v4746
      %v4753 = vmax.f32 %v4750, 0.0
      %v4754 = vmax.f32 %v4751, 0.0
      %v4755 = vmax.f32 %v4752, 0.0
      %v4759 = vrot.slane %v4753, 4
      %v4760 = vrot.slane %v4754, 4
      %v4761 = vrot.slane %v4755, 4
      %v4765 = vsel %vm397, %v4747, %v4759
      %v4766 = vsel %vm397, %v4748, %v4760
      %v4767 = vsel %vm397, %v4749, %v4761
      %v4768 = vmul.f32 %v4765, %v317
      %v4769 = vmul.f32 %v4766, %v321
      %v4770 = vmul.f32 %v4767, %v325
      %v4771 = vpack.c.bf16 %v4768, %v4768
      %v4772 = vpack.c.bf16 %v4769, %v4769
      %v4773 = vpack.c.bf16 %v4770, %v4770
      %v4774 = vld [vmem:[#allocation3] sm:$0xff]
      %v4775 = vld [vmem:[#allocation3 + $0x8] sm:$0xff]
      %v4776 = vld [vmem:[#allocation3 + $0x10] sm:$0xff]
      %v4777 = vld [vmem:[#allocation3 + $0x18] sm:$0xf]
      %v4778 = vld [vmem:[#allocation3 + $0x20] sm:$0xf]
      %v4779 = vld [vmem:[#allocation3 + $0x28] sm:$0xf]
      %s4780 = scalar_lea.vmem %s6, 24
      %v4781 = vld [vmem:[%s4780] sm:$0xf]
      %v4782 = vld [vmem:[%s4780 + $0x4] sm:$0x3]
      %v4785 = vunpack.c.l.b16 %v4781
      %v4786 = vunpack.c.l.b16 %v4782
      %v4787 = vpack.c.b16 %v4786, %v4785
      %v4789 = vsel %vm393, %v4787, 0
      %v4792 = vsel %vm397, %v4771, 0
      %v4795 = vsel %vm397, %v4772, 0
      %v4798 = vsel %vm397, %v4773, 0
      %4800 = vmatprep.subr.bf16.mxu0 %v4795
      %4801 = vmatpush1.bf16.msra.mxu0 %v4792
      %4802 = vmatprep.subr.bf16.mxu0 0
      %4803 = vmatpush1.bf16.msra.mxu0 0
      %4804 = vmatprep.subr.bf16.mxu0 0
      %4805 = vmatpush1.bf16.msra.mxu0 0
      %4806 = vmatprep.subr.bf16.mxu0 0
      %4807 = vmatpush1.bf16.msra.mxu0 0
      %4808 = vmatprep.subr.bf16.mxu0 0
      %4809 = vmatpush1.bf16.msra.mxu0 0
      %4810 = vmatprep.subr.bf16.mxu0 0
      %4811 = vmatpush1.bf16.msra.mxu0 0
      %4812 = vmatprep.subr.bf16.mxu0 0
      %4813 = vmatpush1.bf16.msra.mxu0 0
      %4814 = vmatprep.subr.bf16.mxu0 0
      %4815 = vmatpush1.bf16.msra.mxu0 0
      %4816 = vmatprep.subr.bf16.mxu0 0
      %4817 = vmatpush1.bf16.msra.mxu0 0
      %4818 = vmatprep.subr.bf16.mxu0 0
      %4819 = vmatpush1.bf16.msra.mxu0 0
      %4820 = vmatprep.subr.bf16.mxu0 0
      %4821 = vmatpush1.bf16.msra.mxu0 0
      %4822 = vmatprep.subr.bf16.mxu0 0
      %4823 = vmatpush1.bf16.msra.mxu0 0
      %4824 = vmatprep.subr.bf16.mxu0 0
      %4825 = vmatpush1.bf16.msra.mxu0 0
      %4826 = vmatprep.subr.bf16.mxu0 0
      %4827 = vmatpush1.bf16.msra.mxu0 0
      %4828 = vmatprep.subr.bf16.mxu0 0
      %4829 = vmatpush1.bf16.msra.mxu0 0
      %4830 = vmatprep.subr.bf16.mxu0 0
      %4831 = vmatpush1.bf16.msra.mxu0 0
      %4832 = vmatprep.mubr.bf16.mxu0 0
      %4833 = vmatmul.mubr.bf16.gmra.mrb[0].mxu0 %v4789
      %v4834 = vpop.f32.mrb[0].mxu0
      %v4835 = vadd.f32 0.0, %v4834
      %v4836 = vpop.f32.mrb[0].mxu0
      %v4837 = vadd.f32 0.0, %v4836
      %v4838 = vpop.f32.mrb[0].mxu0
      %v4839 = vadd.f32 0.0, %v4838
      %v4840 = vpop.f32.mrb[0].mxu0
      %v4841 = vadd.f32 0.0, %v4840
      %4842 = vdwg.mxu0
      %4843 = vmatprep.subr.bf16.mxu0 0
      %4844 = vmatpush1.bf16.msra.mxu0 %v4798
      %4845 = vmatprep.subr.bf16.mxu0 0
      %4846 = vmatpush1.bf16.msra.mxu0 0
      %4847 = vmatprep.subr.bf16.mxu0 0
      %4848 = vmatpush1.bf16.msra.mxu0 0
      %4849 = vmatprep.subr.bf16.mxu0 0
      %4850 = vmatpush1.bf16.msra.mxu0 0
      %4851 = vmatprep.subr.bf16.mxu0 0
      %4852 = vmatpush1.bf16.msra.mxu0 0
      %4853 = vmatprep.subr.bf16.mxu0 0
      %4854 = vmatpush1.bf16.msra.mxu0 0
      %4855 = vmatprep.subr.bf16.mxu0 0
      %4856 = vmatpush1.bf16.msra.mxu0 0
      %4857 = vmatprep.subr.bf16.mxu0 0
      %4858 = vmatpush1.bf16.msra.mxu0 0
      %4859 = vmatprep.subr.bf16.mxu0 0
      %4860 = vmatpush1.bf16.msra.mxu0 0
      %4861 = vmatprep.subr.bf16.mxu0 0
      %4862 = vmatpush1.bf16.msra.mxu0 0
      %4863 = vmatprep.subr.bf16.mxu0 0
      %4864 = vmatpush1.bf16.msra.mxu0 0
      %4865 = vmatprep.subr.bf16.mxu0 0
      %4866 = vmatpush1.bf16.msra.mxu0 0
      %4867 = vmatprep.subr.bf16.mxu0 0
      %4868 = vmatpush1.bf16.msra.mxu0 0
      %4869 = vmatprep.subr.bf16.mxu0 0
      %4870 = vmatpush1.bf16.msra.mxu0 0
      %4871 = vmatprep.subr.bf16.mxu0 0
      %4872 = vmatpush1.bf16.msra.mxu0 0
      %4873 = vmatprep.subr.bf16.mxu0 0
      %4874 = vmatpush1.bf16.msra.mxu0 0
      %4875 = vmatprep.mubr.bf16.mxu0 0
      %4876 = vmatmul.mubr.bf16.gmra.mrb[0].mxu0 %v4789
      %v4877 = vpop.f32.mrb[0].mxu0
      %v4878 = vadd.f32 0.0, %v4877
      %v4879 = vpop.f32.mrb[0].mxu0
      %v4880 = vpop.f32.mrb[0].mxu0
      %v4881 = vadd.f32 0.0, %v4880
      %v4882 = vpop.f32.mrb[0].mxu0
      %4883 = vdwg.mxu0
      %v4884 = vadd.f32 %v4774, %v4835
      %v4885 = vadd.f32 %v4775, %v4837
      %v4886 = vadd.f32 %v4776, %v4878
      %v4887 = vadd.f32 %v4777, %v4839
      %v4888 = vadd.f32 %v4778, %v4841
      %v4889 = vadd.f32 %v4779, %v4881
      %4890 = vst [vmem:[#allocation3] sm:$0xff] %v4884
      %4891 = vst [vmem:[#allocation3 + $0x8] sm:$0xff] %v4885
      %4892 = vst.msk [vmem:[#allocation3 + $0x10] sm:$0xff] %vm1382, %v4886
      %4893 = vst [vmem:[#allocation3 + $0x18] sm:$0xf] %v4887
      %4894 = vst [vmem:[#allocation3 + $0x20] sm:$0xf] %v4888
      %4895 = vst.msk [vmem:[#allocation3 + $0x28] sm:$0xf] %vm1386, %v4889
      %v4896 = vld [vmem:[%s300] sm:$0x77]
      %v4897 = vld [vmem:[%s300 + $0x8] sm:$0x7]
      %v4898 = vmul.f32 %v4896, 0.0625
      %v4899 = vmul.f32 %v4897, 0.0625
      %v4900 = vadd.f32 %v4898, 0.0
      %v4901 = vadd.f32 %v4899, 0.0
      %v4902 = vmul.f32 %v4896, 0.1875
      %v4903 = vmul.f32 %v4897, 0.1875
      %4906 = vrot.lane.b32.xlu0 %v4902, 127
      %v4907 = vpop.permute.xlu0 %4906
      %4908 = vrot.lane.b32.xlu0 %v4903, 127
      %v4909 = vpop.permute.xlu0 %4908
      %v4910 = vrot.slane %v4907, 4
      %v4911 = vrot.slane %v4909, 4
      %v4912 = vsel %vm397, %v4910, %v4911
      %vm4913 = vcmask 1039360
      %v4914 = vsel %vm4913, %v4907, %v4912
      %v4917 = vadd.f32 %v4900, %v4914
      %v4918 = vadd.f32 %v4901, %v4909
      %4919 = vrot.lane.b32.xlu0 %v4902, 110
      %v4920 = vpop.permute.xlu0 %4919
      %4921 = vrot.lane.b32.xlu0 %v4903, 110
      %v4922 = vpop.permute.xlu0 %4921
      %v4923 = vrot.slane %v4920, 4
      %v4924 = vrot.slane %v4922, 4
      %v4925 = vsel %vm397, %v4923, %v4924
      %vm4926 = vcmask 900096
      %v4927 = vsel %vm4926, %v4920, %v4925
      %v4930 = vadd.f32 %v4917, %v4927
      %v4931 = vadd.f32 %v4918, %v4922
      %v4932 = vmul.f32 %v311, 0.5625
      %v4933 = vmul.f32 %v312, 0.5625
      %4936 = vrot.lane.b32.xlu0 %v4932, 109
      %v4937 = vpop.permute.xlu0 %4936
      %4938 = vrot.lane.b32.xlu0 %v4933, 109
      %v4939 = vpop.permute.xlu0 %4938
      %v4940 = vrot.slane %v4937, 4
      %v4941 = vrot.slane %v4939, 4
      %v4942 = vsel %vm397, %v4940, %v4941
      %vm4943 = vcmask 891904
      %v4944 = vsel %vm4943, %v4937, %v4942
      %v4947 = vadd.f32 %v4930, %v4944
      %v4948 = vadd.f32 %v4931, %v4939
      %v4949 = vadd.f32 %v4902, 0.0
      %v4950 = vadd.f32 %v4903, 0.0
      %4953 = vrot.lane.b32.xlu0 %v4898, 127
      %v4954 = vpop.permute.xlu0 %4953
      %4955 = vrot.lane.b32.xlu0 %v4899, 127
      %v4956 = vpop.permute.xlu0 %4955
      %v4957 = vrot.slane %v4954, 4
      %v4958 = vrot.slane %v4956, 4
      %v4959 = vsel %vm397, %v4957, %v4958
      %v4960 = vsel %vm4913, %v4954, %v4959
      %v4963 = vadd.f32 %v4949, %v4960
      %v4964 = vadd.f32 %v4950, %v4956
      %4965 = vrot.lane.b32.xlu0 %v4932, 110
      %v4966 = vpop.permute.xlu0 %4965
      %4967 = vrot.lane.b32.xlu0 %v4933, 110
      %v4968 = vpop.permute.xlu0 %4967
      %v4969 = vrot.slane %v4966, 4
      %v4970 = vrot.slane %v4968, 4
      %v4971 = vsel %vm397, %v4969, %v4970
      %v4972 = vsel %vm4926, %v4966, %v4971
      %v4975 = vadd.f32 %v4963, %v4972
      %v4976 = vadd.f32 %v4964, %v4968
      %4977 = vrot.lane.b32.xlu0 %v4902, 109
      %v4978 = vpop.permute.xlu0 %4977
      %4979 = vrot.lane.b32.xlu0 %v4903, 109
      %v4980 = vpop.permute.xlu0 %4979
      %v4981 = vrot.slane %v4978, 4
      %v4982 = vrot.slane %v4980, 4
      %v4983 = vsel %vm397, %v4981, %v4982
      %v4984 = vsel %vm4943, %v4978, %v4983
      %v4987 = vadd.f32 %v4975, %v4984
      %v4988 = vadd.f32 %v4976, %v4980
      %4989 = vrot.lane.b32.xlu0 %v4932, 127
      %v4990 = vpop.permute.xlu0 %4989
      %4991 = vrot.lane.b32.xlu0 %v4933, 127
      %v4992 = vpop.permute.xlu0 %4991
      %v4993 = vrot.slane %v4990, 4
      %v4994 = vrot.slane %v4992, 4
      %v4995 = vsel %vm397, %v4993, %v4994
      %v4996 = vsel %vm4913, %v4990, %v4995
      %v4999 = vadd.f32 %v4949, %v4996
      %v5000 = vadd.f32 %v4950, %v4992
      %5001 = vrot.lane.b32.xlu0 %v4898, 110
      %v5002 = vpop.permute.xlu0 %5001
      %5003 = vrot.lane.b32.xlu0 %v4899, 110
      %v5004 = vpop.permute.xlu0 %5003
      %v5005 = vrot.slane %v5002, 4
      %v5006 = vrot.slane %v5004, 4
      %v5007 = vsel %vm397, %v5005, %v5006
      %v5008 = vsel %vm4926, %v5002, %v5007
      %v5011 = vadd.f32 %v4999, %v5008
      %v5012 = vadd.f32 %v5000, %v5004
      %v5013 = vadd.f32 %v5011, %v4984
      %v5014 = vadd.f32 %v5012, %v4980
      %v5015 = vadd.f32 %v4932, 0.0
      %v5016 = vadd.f32 %v4933, 0.0
      %v5017 = vadd.f32 %v5015, %v4914
      %v5018 = vadd.f32 %v5016, %v4909
      %v5019 = vadd.f32 %v5017, %v4927
      %v5020 = vadd.f32 %v5018, %v4922
      %5021 = vrot.lane.b32.xlu0 %v4898, 109
      %v5022 = vpop.permute.xlu0 %5021
      %5023 = vrot.lane.b32.xlu0 %v4899, 109
      %v5024 = vpop.permute.xlu0 %5023
      %v5025 = vrot.slane %v5022, 4
      %v5026 = vrot.slane %v5024, 4
      %v5027 = vsel %vm397, %v5025, %v5026
      %v5028 = vsel %vm4943, %v5022, %v5027
      %v5031 = vadd.f32 %v5019, %v5028
      %v5032 = vadd.f32 %v5020, %v5024
      %v5034 = vcombine.high %v4947, %v4947
      %v5038 = vcombine.high %v4987, %v4987
      %v5039 = vrot.slane %v4987, 5
      %v5040 = vrot.slane %v5038, 5
      %v5041 = vrot.slane %v4988, 5
      %5042 = vrot.lane.b32.xlu0 %v5039, 127
      %v5043 = vpop.permute.xlu0 %5042
      %5044 = vrot.lane.b32.xlu0 %v5040, 127
      %v5045 = vpop.permute.xlu0 %5044
      %5046 = vrot.lane.b32.xlu0 %v5041, 127
      %v5047 = vpop.permute.xlu0 %5046
      %v5048 = vsel %vm4913, %v5043, %v5045
      %v5049 = vsel %vm4913, %v5045, %v5047
      %v5055 = vcombine.high %v5013, %v5013
      %v5056 = vrot.slane %v5013, 2
      %v5057 = vrot.slane %v5055, 2
      %v5058 = vrot.slane %v5014, 2
      %5059 = vrot.lane.b32.xlu0 %v5056, 110
      %v5060 = vpop.permute.xlu0 %5059
      %5061 = vrot.lane.b32.xlu0 %v5057, 110
      %v5062 = vpop.permute.xlu0 %5061
      %5063 = vrot.lane.b32.xlu0 %v5058, 110
      %v5064 = vpop.permute.xlu0 %5063
      %v5065 = vsel %vm4926, %v5060, %v5062
      %v5066 = vsel %vm4926, %v5062, %v5064
      %v5072 = vcombine.high %v5031, %v5031
      %v5073 = vrot.slane %v5031, 7
      %v5074 = vrot.slane %v5072, 7
      %v5075 = vrot.slane %v5032, 7
      %5076 = vrot.lane.b32.xlu0 %v5073, 109
      %v5077 = vpop.permute.xlu0 %5076
      %5078 = vrot.lane.b32.xlu0 %v5074, 109
      %v5079 = vpop.permute.xlu0 %5078
      %5080 = vrot.lane.b32.xlu0 %v5075, 109
      %v5081 = vpop.permute.xlu0 %5080
      %v5082 = vsel %vm4943, %v5077, %v5079
      %v5083 = vsel %vm4943, %v5079, %v5081
      %vm5087 = vcmask 1042432
      %v5088 = vsel %vm5087, %v4947, %v5048
      %v5089 = vsel %vm5087, %v5034, %v5049
      %v5090 = vsel %vm5087, %v4948, %v5047
      %vm5091 = vcmask 1045504
      %v5092 = vsel %vm5091, %v5088, %v5065
      %v5093 = vsel %vm5091, %v5089, %v5066
      %v5094 = vsel %vm5091, %v5090, %v5064
      %vm5095 = vcmask 1040384
      %v5096 = vsel %vm5095, %v5065, %v5082
      %v5097 = vsel %vm5095, %v5066, %v5083
      %v5098 = vsel %vm5095, %v5064, %v5081
      %v5099 = vld [vmem:[#allocation3] sm:$0xff]
      %v5100 = vld [vmem:[#allocation3 + $0x8] sm:$0xff]
      %v5101 = vld [vmem:[#allocation3 + $0x10] sm:$0xff]
      %v5102 = vld [vmem:[#allocation3 + $0x18] sm:$0xf]
      %v5103 = vld [vmem:[#allocation3 + $0x20] sm:$0xf]
      %v5104 = vld [vmem:[#allocation3 + $0x28] sm:$0xf]
      %v5105 = vadd.f32 %v5092, %v5099
      %v5106 = vadd.f32 %v5093, %v5100
      %v5107 = vadd.f32 %v5094, %v5101
      %v5108 = vadd.f32 %v5096, %v5102
      %v5109 = vadd.f32 %v5097, %v5103
      %v5110 = vadd.f32 %v5098, %v5104
      %5111 = vst [vmem:[%s305] sm:$0xff] %v5105
      %5112 = vst [vmem:[%s305 + $0x8] sm:$0xff] %v5106
      %5113 = vst.msk [vmem:[%s305 + $0x10] sm:$0xff] %vm1382, %v5107
      %5114 = vst [vmem:[%s305 + $0x18] sm:$0xf] %v5108
      %5115 = vst [vmem:[%s305 + $0x20] sm:$0xf] %v5109
      %5116 = vst.msk [vmem:[%s305 + $0x28] sm:$0xf] %vm1386, %v5110
      %p5117 = scmp.lt.s32.totalorder %s19, 1
      %s5118 = scalar_select %p5117, %s19, 1
      %s5119 = smul.addr %s5118, 6
      %s5120 = smul.addr %s5119, 8
      %s5121 = scalar_lea.vmem %s8, %s5120
      // Predicated region
      $region53: #{anime4k_forward.1} parent=51 // pred_check
        %p5122 = pneg %p210
      $region54: #{anime4k_forward.1} parent=51 // pred_check_branch
        %5124 = sbr.rel (%p5122) target = $region56
      $region55: #{anime4k_forward.1} parent=51 // pred_region
        _
      $region56: #{anime4k_forward.1} parent=51 // pred_fallthru
        _
    $region52: #{anime4k_forward.1} parent=5 // pred_fallthru
      _
    %p5125 = scmp.le.s32.totalorder 2, %s14
    // Predicated region
    $region57: #{anime4k_forward.1} parent=5 // pred_check
      %p5126 = pneg %p5125
    $region58: #{anime4k_forward.1} parent=5 // pred_check_branch
      %5128 = sbr.rel (%p5126) target = $region60
    $region59: #{anime4k_forward.1} parent=5 // pred_region
      %s5129 = ssub.s32 %s14, 2
      // Predicated region
      $region61: #{anime4k_forward.1} parent=59 // pred_check
        %p5130 = pneg %p216
      $region62: #{anime4k_forward.1} parent=59 // pred_check_branch
        %5132 = sbr.rel (%p5130) target = $region64
      $region63: #{anime4k_forward.1} parent=59 // pred_region
        %p5133 = scmp.lt.s32.totalorder %s20, 1
        %s5134 = scalar_select %p5133, %s20, 1
        %s5135 = smul.addr %s5134, 6
        %s5136 = smul.addr %s5135, 8
        %s5137 = scalar_lea.vmem %s8, %s5136
      $region64: #{anime4k_forward.1} parent=59 // pred_fallthru
        _
    $region60: #{anime4k_forward.1} parent=5 // pred_fallthru
      _
  $region6: #{anime4k_forward.1} parent=0 // loop_footer
    %s18 = sadd.s32 1, %s14
  $region7: #{anime4k_forward.1} parent=0 // loop_footer_branch
    %13 = sbr.rel target = $region3
  $region8: #{anime4k_forward.1} parent=0 // loop_exit
    _

</llo_original>
